<compile_context>
chip_gen: v7x
topology: tpu7x:2x2x1
jax: 0.10.0
libtpu: 0.0.40
codegen_flags: <defaults>
</compile_context>

<pallas_src>
import functools
import math

import jax
import jax.numpy as jnp
from jax.experimental import pallas as pl
from jax.experimental.pallas import tpu as pltpu


# ----------------------------------------------------------------------------
# Kernel
# ----------------------------------------------------------------------------
def _window_attention_kernel(*refs, num_heads, real_c, self_attn, has_mask,
                             compute_dtype):
    """One grid step = `wb` independent attention windows."""
    idx = 0
    xq_ref = refs[idx]; idx += 1
    if self_attn:
        xk_ref = xq_ref
    else:
        xk_ref = refs[idx]; idx += 1
    (wq_ref, bq_ref, wk_ref, bk_ref, wv_ref, bv_ref,
     bias_ref, wp_ref, bp_ref) = refs[idx:idx + 9]
    idx += 9
    mask_ref = refs[idx] if has_mask else None
    if has_mask:
        idx += 1
    o_ref = refs[idx]

    wb, n_tok, cp = xq_ref.shape            # cp = channel dim padded to 128
    hd = real_c // num_heads
    cd = compute_dtype
    rows = wb * n_tok

    # ---- projections: bf16 MXU matmuls with full contraction cp, f32 acc ----
    xq = xq_ref[...].reshape(rows, cp)                       # already bf16
    q = jnp.dot(xq, wq_ref[...], preferred_element_type=jnp.float32) + bq_ref[...]
    xk = xq if self_attn else xk_ref[...].reshape(rows, cp)
    k = jnp.dot(xk, wk_ref[...], preferred_element_type=jnp.float32) + bk_ref[...]
    v = jnp.dot(xk, wv_ref[...], preferred_element_type=jnp.float32) + bv_ref[...]

    mask_val = mask_ref[...] if mask_ref is not None else None   # (wb, N, N) f32

    # ---- per-head attention (scale already folded into Wq / bq) ----
    ctx_parts = []
    for h in range(num_heads):
        lo = h * hd
        qh = q[:, lo:lo + hd].reshape(wb, n_tok, hd).astype(cd)
        kh = k[:, lo:lo + hd].reshape(wb, n_tok, hd).astype(cd)
        vh = v[:, lo:lo + hd].reshape(wb, n_tok, hd).astype(cd)

        s = jnp.einsum("bnd,bmd->bnm", qh, kh,
                       preferred_element_type=jnp.float32)      # (wb, N, N)
        s = s + bias_ref[h][None]                               # rel-pos bias
        if mask_val is not None:
            s = s + mask_val                                    # shifted-window mask

        # numerically stable softmax in f32; divide -> EUP reciprocal
        s = s - jnp.max(s, axis=-1, keepdims=True)
        p = jnp.exp(s)
        p = p * pl.reciprocal(jnp.sum(p, axis=-1, keepdims=True), approx=True)

        ctx_h = jnp.einsum("bnm,bmd->bnd", p.astype(cd), vh,
                           preferred_element_type=jnp.float32)  # (wb, N, hd)
        ctx_parts.append(ctx_h.reshape(rows, hd))

    if cp > real_c:                                             # zero lane padding
        ctx_parts.append(jnp.zeros((rows, cp - real_c), jnp.float32))
    ctx = jnp.concatenate(ctx_parts, axis=-1).astype(cd)        # (rows, cp)

    # ---- single output projection, contraction = cp (full 128 lanes) ----
    out = jnp.dot(ctx, wp_ref[...], preferred_element_type=jnp.float32) + bp_ref[...]
    o_ref[...] = out.reshape(wb, n_tok, cp).astype(o_ref.dtype)


# ----------------------------------------------------------------------------
# Wrapper helpers
# ----------------------------------------------------------------------------
def _relative_position_bias(table, window_size, num_heads):
    """table[(2Wh-1)*(2Ww-1), nH] -> (nH, N, N), exactly as the PyTorch module."""
    wh, ww = window_size
    n = wh * ww
    coords = jnp.stack(jnp.meshgrid(jnp.arange(wh), jnp.arange(ww), indexing="ij"))
    coords = coords.reshape(2, -1)                                  # (2, N)
    rel = coords[:, :, None] - coords[:, None, :]                   # (2, N, N)
    rel = rel.transpose(1, 2, 0)
    rel = rel.at[:, :, 0].add(wh - 1)
    rel = rel.at[:, :, 1].add(ww - 1)
    rel = rel.at[:, :, 0].multiply(2 * ww - 1)
    idx = rel.sum(-1).reshape(-1)                                   # (N*N,)
    bias = table[idx].reshape(n, n, num_heads)                      # JAX-side gather
    return bias.transpose(2, 0, 1).astype(jnp.float32)              # (nH, N, N)


def _device_vmem_bytes():
    """Best-effort per-core VMEM capacity probe (not a correctness fallback)."""
    if hasattr(pltpu, "get_tpu_info"):
        try:
            cap = getattr(pltpu.get_tpu_info(), "vmem_capacity_bytes", None)
            if cap:
                return int(cap)
        except Exception:
            pass
    return 64 << 20   # conservative: v7x per-TensorCore VMEM


def _choose_windows_per_block(num_windows, tokens_per_window, mask_windows=None,
                              target_tokens=512):
    """Largest divisor of num_windows (and of nW if masked) with wb*N <= target,
    keeping >=2 grid steps and preferring an even grid length (v7x megacore)."""
    best, best_even = 1, None
    for cand in range(1, num_windows + 1):
        if num_windows % cand:
            continue
        if mask_windows is not None and mask_windows % cand:
            continue
        if cand * tokens_per_window > max(target_tokens, tokens_per_window):
            continue
        steps = num_windows // cand
        if steps < 2 and num_windows > 1:
            continue
        best = cand
        if steps % 2 == 0:
            best_even = cand
    return best_even if best_even is not None else best


def window_attention_pallas(x_q, params, x_k=None, mask=None, *,
                            num_heads, window_size, qk_scale=None,
                            compute_dtype=jnp.bfloat16, windows_per_block=None):
    """x_q/x_k: (num_windows*B, N, C); mask: (nW, N, N) additive or None.

    Row ordering must be (batch-major, window-minor): global window index b
    uses mask[b % nW], matching PyTorch's attn.view(B_//nW, nW, ...) convention.
    """
    B_, N, C = x_q.shape
    wh, ww = window_size
    assert N == wh * ww, "N must equal window_size[0] * window_size[1]"
    assert C % num_heads == 0
    head_dim = C // num_heads
    scale = float(qk_scale) if qk_scale is not None else head_dim ** (-0.5)

    self_attn = x_k is None                 # PyTorch path: k = q.clone()
    cd = compute_dtype

    # ---- lane-dense channel padding (zeros -> results unchanged) ----
    Cp = max(128, ((C + 127) // 128) * 128)
    pad_c = Cp - C

    def pad_mat(w):
        return jnp.pad(w, ((0, Cp - w.shape[0]), (0, Cp - w.shape[1])))

    def pad_vec(b):
        return jnp.pad(b, (0, Cp - b.shape[0])).reshape(1, Cp)

    # Fold the qk scale into Wq / bq; split Wkv/bkv into separate k / v params.
    wq = pad_mat(params["wq"] * scale).astype(cd)
    bq = pad_vec(params["bq"] * scale).astype(jnp.float32)
    wk = pad_mat(params["wkv"][:, :C]).astype(cd)
    wv = pad_mat(params["wkv"][:, C:]).astype(cd)
    bk = pad_vec(params["bkv"][:C]).astype(jnp.float32)
    bv = pad_vec(params["bkv"][C:]).astype(jnp.float32)
    wp = pad_mat(params["wp"]).astype(cd)
    bp = pad_vec(params["bp"]).astype(jnp.float32)

    bias = _relative_position_bias(params["table"], window_size, num_heads)

    # Stream activations as bf16 (identical numerics to the in-kernel cast).
    xq = jnp.pad(x_q, ((0, 0), (0, 0), (0, pad_c))).astype(cd)
    inputs = [xq]
    if not self_attn:
        assert x_k.shape == x_q.shape
        inputs.append(jnp.pad(x_k, ((0, 0), (0, 0), (0, pad_c))).astype(cd))
    inputs += [wq, bq, wk, bk, wv, bv, bias, wp, bp]

    nW = None
    if mask is not None:
        nW = mask.shape[0]
        assert B_ % nW == 0, "num_windows*B must be a multiple of mask.shape[0]"
        inputs.append(mask.astype(jnp.float32))          # keep (nW, N, N): no tiling

    # ---- per-generation block-size / VMEM tuning ----
    vmem_cap = _device_vmem_bytes()
    target_tokens = 1024 if vmem_cap >= (96 << 20) else 512
    wb = windows_per_block or _choose_windows_per_block(
        B_, N, mask_windows=nW, target_tokens=target_tokens)
    assert B_ % wb == 0, "windows_per_block must divide the number of windows"
    if nW is not None:
        assert nW % wb == 0, "windows_per_block must divide mask.shape[0]"
    grid = (B_ // wb,)
    mask_blocks = (nW // wb) if nW is not None else None

    kernel = functools.partial(
        _window_attention_kernel, num_heads=num_heads, real_c=C,
        self_attn=self_attn, has_mask=mask is not None, compute_dtype=cd)

    # Advisory cost estimate so XLA schedules surrounding ops sensibly.
    flops = (2 * B_ * N * Cp * Cp * 3          # q / k / v projections
             + 2 * B_ * N * N * C * 2          # q@k^T and attn@v (all heads)
             + 2 * B_ * N * Cp * Cp)           # output projection
    transcendentals = B_ * num_heads * N * N
    bytes_accessed = int(sum(int(a.size) * a.dtype.itemsize for a in inputs)
                         + B_ * N * Cp * x_q.dtype.itemsize)
    cost = pl.CostEstimate(flops=int(flops), transcendentals=int(transcendentals),
                           bytes_accessed=bytes_accessed)

    # Scoped-VMEM budget: double-buffered streamed blocks + resident constants
    # + f32 intermediates + headroom, capped below physical capacity.
    n_act = 1 if self_attn else 2
    stream_bytes = (wb * N * Cp * 2 * n_act                # bf16 activation blocks
                    + wb * N * Cp * x_q.dtype.itemsize     # output block
                    + (wb * N * N * 4 if mask is not None else 0))
    const_bytes = 4 * Cp * Cp * 2 + 4 * Cp * 4 + num_heads * N * N * 4
    interm_bytes = wb * N * (4 * Cp + 2 * num_heads * N) * 4
    vmem_budget = min(max(vmem_cap - (16 << 20), 32 << 20), 100 << 20)
    vmem_limit = int(min(vmem_budget,
                         max(32 << 20,
                             2 * stream_bytes + 2 * const_bytes
                             + interm_bytes + (8 << 20))))

    def _const_spec(shape):
        rank = len(shape)
        return pl.BlockSpec(shape, lambda i, _r=rank: (0,) * _r)

    in_specs = [pl.BlockSpec((wb, N, Cp), lambda i: (i, 0, 0))]      # q tokens
    if not self_attn:
        in_specs.append(pl.BlockSpec((wb, N, Cp), lambda i: (i, 0, 0)))  # k tokens
    in_specs += [
        _const_spec((Cp, Cp)),             # Wq (scale folded)
        _const_spec((1, Cp)),              # bq
        _const_spec((Cp, Cp)),             # Wk
        _const_spec((1, Cp)),              # bk
        _const_spec((Cp, Cp)),             # Wv
        _const_spec((1, Cp)),              # bv
        _const_spec((num_heads, N, N)),    # rel-pos bias
        _const_spec((Cp, Cp)),             # Wproj
        _const_spec((1, Cp)),              # bproj
    ]
    if mask is not None:
        in_specs.append(
            pl.BlockSpec((wb, N, N), lambda i: (i % mask_blocks, 0, 0)))

    out = pl.pallas_call(
        kernel,
        out_shape=jax.ShapeDtypeStruct((B_, N, Cp), x_q.dtype),
        grid_spec=pltpu.PrefetchScalarGridSpec(
            num_scalar_prefetch=0,
            grid=grid,
            in_specs=in_specs,
            out_specs=pl.BlockSpec((wb, N, Cp), lambda i: (i, 0, 0)),
        ),
        compiler_params=pltpu.CompilerParams(
            dimension_semantics=("parallel",),
            vmem_limit_bytes=vmem_limit,
        ),
        cost_estimate=cost,
    )(*inputs)

    return out[..., :C] if pad_c else out


# ----------------------------------------------------------------------------
# Parameter init (nn.Linear-style) and pure-JAX reference
# ----------------------------------------------------------------------------
def init_window_attention_params(key, dim, window_size, num_heads,
                                 dtype=jnp.float32):
    n_bias = (2 * window_size[0] - 1) * (2 * window_size[1] - 1)
    ks = jax.random.split(key, 7)
    lim = 1.0 / math.sqrt(dim)
    return dict(
        wq=jax.random.uniform(ks[0], (dim, dim), dtype, -lim, lim),
        bq=jax.random.uniform(ks[1], (dim,), dtype, -lim, lim),
        wkv=jax.random.uniform(ks[2], (dim, 2 * dim), dtype, -lim, lim),
        bkv=jax.random.uniform(ks[3], (2 * dim,), dtype, -lim, lim),
        wp=jax.random.uniform(ks[4], (dim, dim), dtype, -lim, lim),
        bp=jax.random.uniform(ks[5], (dim,), dtype, -lim, lim),
        table=0.02 * jax.random.truncated_normal(ks[6], -2.0, 2.0,
                                                 (n_bias, num_heads), dtype),
    )


def window_attention_reference(x_q, params, x_k=None, mask=None, *,
                               num_heads, window_size, qk_scale=None):
    B_, N, C = x_q.shape
    hd = C // num_heads
    scale = qk_scale if qk_scale is not None else hd ** (-0.5)
    if x_k is None:
        x_k = x_q
    q = x_q @ params["wq"] + params["bq"]
    kv = x_k @ params["wkv"] + params["bkv"]
    q = q.reshape(B_, N, num_heads, hd).transpose(0, 2, 1, 3) * scale
    k = kv[..., :C].reshape(B_, N, num_heads, hd).transpose(0, 2, 1, 3)
    v = kv[..., C:].reshape(B_, N, num_heads, hd).transpose(0, 2, 1, 3)
    attn = jnp.einsum("bhnd,bhmd->bhnm", q, k)
    bias = _relative_position_bias(params["table"], window_size, num_heads)
    attn = attn + bias[None]
    if mask is not None:
        nW = mask.shape[0]
        attn = attn.reshape(B_ // nW, nW, num_heads, N, N) \
               + mask[None, :, None].astype(attn.dtype)
        attn = attn.reshape(B_, num_heads, N, N)
    attn = jax.nn.softmax(attn, axis=-1)
    out = jnp.einsum("bhnm,bhmd->bhnd", attn, v)
    out = out.transpose(0, 2, 1, 3).reshape(B_, N, C)
    return out @ params["wp"] + params["bp"]


# ----------------------------------------------------------------------------
# Demo / correctness check
# ----------------------------------------------------------------------------
if __name__ == "__main__":
    key = jax.random.PRNGKey(0)
    k_x, k_p, k_m = jax.random.split(key, 3)

    # Small Swin-style shapes: batch 2, 8x8 feature map, 4x4 windows -> 4 windows/img.
    dim, num_heads = 64, 4
    window_size = (4, 4)
    N = window_size[0] * window_size[1]
    num_windows_per_image, batch = 4, 2
    B_ = batch * num_windows_per_image          # 8 windows total

    x = jax.random.normal(k_x, (B_, N, dim), dtype=jnp.float32)
    params = init_window_attention_params(k_p, dim, window_size, num_heads)

    # Shifted-window style additive mask (0 / -100), one per window position.
    mask = jnp.where(jax.random.bernoulli(k_m, 0.25, (num_windows_per_image, N, N)),
                     jnp.float32(-100.0), jnp.float32(0.0))

    # Path 1: self-attention, no mask (k=None branch of the PyTorch forward).
    y = window_attention_pallas(x, params, num_heads=num_heads,
                                window_size=window_size)
    y = jax.block_until_ready(y)
    y_ref = window_attention_reference(x, params, num_heads=num_heads,
                                       window_size=window_size)
    assert y.shape == (B_, N, dim)
    # bf16 MXU operands + approx reciprocal (f32 accumulation) -> loosened tol.
    assert jnp.allclose(y, y_ref, atol=4e-2, rtol=4e-2), \
        float(jnp.max(jnp.abs(y - y_ref)))

    # Path 2: with shifted-window attention mask.
    y_m = window_attention_pallas(x, params, mask=mask, num_heads=num_heads,
                                  window_size=window_size)
    y_m = jax.block_until_ready(y_m)
    y_m_ref = window_attention_reference(x, params, mask=mask,
                                         num_heads=num_heads,
                                         window_size=window_size)
    assert jnp.allclose(y_m, y_m_ref, atol=4e-2, rtol=4e-2), \
        float(jnp.max(jnp.abs(y_m - y_m_ref)))

    print("KERNEL_OK")
</pallas_src>

<mosaic_0001>
module attributes {stable_mosaic.version = 11 : i64} {
  func.func @_window_attention_kernel(%arg0: i32, %arg1: memref<4x16x128xbf16, #tpu.memory_space<vmem>>, %arg2: memref<128x128xbf16, #tpu.memory_space<vmem>>, %arg3: memref<1x128xf32, #tpu.memory_space<vmem>>, %arg4: memref<128x128xbf16, #tpu.memory_space<vmem>>, %arg5: memref<1x128xf32, #tpu.memory_space<vmem>>, %arg6: memref<128x128xbf16, #tpu.memory_space<vmem>>, %arg7: memref<1x128xf32, #tpu.memory_space<vmem>>, %arg8: memref<4x16x16xf32, #tpu.memory_space<vmem>>, %arg9: memref<128x128xbf16, #tpu.memory_space<vmem>>, %arg10: memref<1x128xf32, #tpu.memory_space<vmem>>, %arg11: memref<4x16x128xf32, #tpu.memory_space<vmem>>) attributes {dimension_semantics = [#tpu.dimension_semantics<parallel>], iteration_bounds = array<i64: 2>, scalar_prefetch = 0 : i64, scratch_operands = 0 : i64, tpu.core_type = #tpu.core_type<tc>, window_params = [{transform_indices = @transform_0, window_bounds = array<i64: 4, 16, 128>}, {pipeline_mode = #tpu.pipeline_mode<synchronous>, transform_indices = @transform_1, window_bounds = array<i64: 128, 128>}, {pipeline_mode = #tpu.pipeline_mode<synchronous>, transform_indices = @transform_2, window_bounds = array<i64: 1, 128>}, {pipeline_mode = #tpu.pipeline_mode<synchronous>, transform_indices = @transform_3, window_bounds = array<i64: 128, 128>}, {pipeline_mode = #tpu.pipeline_mode<synchronous>, transform_indices = @transform_4, window_bounds = array<i64: 1, 128>}, {pipeline_mode = #tpu.pipeline_mode<synchronous>, transform_indices = @transform_5, window_bounds = array<i64: 128, 128>}, {pipeline_mode = #tpu.pipeline_mode<synchronous>, transform_indices = @transform_6, window_bounds = array<i64: 1, 128>}, {pipeline_mode = #tpu.pipeline_mode<synchronous>, transform_indices = @transform_7, window_bounds = array<i64: 4, 16, 16>}, {pipeline_mode = #tpu.pipeline_mode<synchronous>, transform_indices = @transform_8, window_bounds = array<i64: 128, 128>}, {pipeline_mode = #tpu.pipeline_mode<synchronous>, transform_indices = @transform_9, window_bounds = array<i64: 1, 128>}, {transform_indices = @transform_10, window_bounds = array<i64: 4, 16, 128>}]} {
    %c0 = arith.constant 0 : index
    %c0_0 = arith.constant 0 : index
    %c0_1 = arith.constant 0 : index
    %0 = vector.load %arg1[%c0, %c0_0, %c0_1] : memref<4x16x128xbf16, #tpu.memory_space<vmem>>, vector<4x16x128xbf16>
    %1 = vector.shape_cast %0 : vector<4x16x128xbf16> to vector<64x128xbf16>
    %c0_2 = arith.constant 0 : index
    %c0_3 = arith.constant 0 : index
    %2 = vector.load %arg2[%c0_2, %c0_3] : memref<128x128xbf16, #tpu.memory_space<vmem>>, vector<128x128xbf16>
    %cst = arith.constant dense<0.000000e+00> : vector<64x128xf32>
    %3 = tpu.matmul %1, %2, %cst {dimension_numbers = #tpu.dot_dimension_numbers<[1], [0], [0], [1], [0, 0, 1, 1], [], []>} : vector<64x128xbf16>, vector<128x128xbf16>, vector<64x128xf32> -> vector<64x128xf32>
    %c0_4 = arith.constant 0 : index
    %c0_5 = arith.constant 0 : index
    %4 = vector.load %arg3[%c0_4, %c0_5] : memref<1x128xf32, #tpu.memory_space<vmem>>, vector<1x128xf32>
    %5 = vector.broadcast %4 : vector<1x128xf32> to vector<64x128xf32>
    %6 = arith.addf %3, %5 : vector<64x128xf32>
    %c0_6 = arith.constant 0 : index
    %c0_7 = arith.constant 0 : index
    %7 = vector.load %arg4[%c0_6, %c0_7] : memref<128x128xbf16, #tpu.memory_space<vmem>>, vector<128x128xbf16>
    %cst_8 = arith.constant dense<0.000000e+00> : vector<64x128xf32>
    %8 = tpu.matmul %1, %7, %cst_8 {dimension_numbers = #tpu.dot_dimension_numbers<[1], [0], [0], [1], [0, 0, 1, 1], [], []>} : vector<64x128xbf16>, vector<128x128xbf16>, vector<64x128xf32> -> vector<64x128xf32>
    %c0_9 = arith.constant 0 : index
    %c0_10 = arith.constant 0 : index
    %9 = vector.load %arg5[%c0_9, %c0_10] : memref<1x128xf32, #tpu.memory_space<vmem>>, vector<1x128xf32>
    %10 = vector.broadcast %9 : vector<1x128xf32> to vector<64x128xf32>
    %11 = arith.addf %8, %10 : vector<64x128xf32>
    %c0_11 = arith.constant 0 : index
    %c0_12 = arith.constant 0 : index
    %12 = vector.load %arg6[%c0_11, %c0_12] : memref<128x128xbf16, #tpu.memory_space<vmem>>, vector<128x128xbf16>
    %cst_13 = arith.constant dense<0.000000e+00> : vector<64x128xf32>
    %13 = tpu.matmul %1, %12, %cst_13 {dimension_numbers = #tpu.dot_dimension_numbers<[1], [0], [0], [1], [0, 0, 1, 1], [], []>} : vector<64x128xbf16>, vector<128x128xbf16>, vector<64x128xf32> -> vector<64x128xf32>
    %c0_14 = arith.constant 0 : index
    %c0_15 = arith.constant 0 : index
    %14 = vector.load %arg7[%c0_14, %c0_15] : memref<1x128xf32, #tpu.memory_space<vmem>>, vector<1x128xf32>
    %15 = vector.broadcast %14 : vector<1x128xf32> to vector<64x128xf32>
    %16 = arith.addf %13, %15 : vector<64x128xf32>
    %17 = vector.extract_strided_slice %6 {offsets = [0, 0], sizes = [64, 16], strides = [1, 1]} : vector<64x128xf32> to vector<64x16xf32>
    %18 = vector.shape_cast %17 : vector<64x16xf32> to vector<4x16x16xf32>
    %19 = arith.truncf %18 : vector<4x16x16xf32> to vector<4x16x16xbf16>
    %20 = vector.extract_strided_slice %11 {offsets = [0, 0], sizes = [64, 16], strides = [1, 1]} : vector<64x128xf32> to vector<64x16xf32>
    %21 = vector.shape_cast %20 : vector<64x16xf32> to vector<4x16x16xf32>
    %22 = arith.truncf %21 : vector<4x16x16xf32> to vector<4x16x16xbf16>
    %23 = vector.extract_strided_slice %16 {offsets = [0, 0], sizes = [64, 16], strides = [1, 1]} : vector<64x128xf32> to vector<64x16xf32>
    %24 = vector.shape_cast %23 : vector<64x16xf32> to vector<4x16x16xf32>
    %25 = arith.truncf %24 : vector<4x16x16xf32> to vector<4x16x16xbf16>
    "tpu.trace_start"() <{level = 10 : i32, message = "bnd,bmd->bnm"}> : () -> ()
    %cst_16 = arith.constant dense<0.000000e+00> : vector<4x16x16xf32>
    %26 = tpu.matmul %19, %22, %cst_16 {dimension_numbers = #tpu.dot_dimension_numbers<[2], [2], [1], [1], [0, 0, 0, 1, 1, 1], [0], [0]>} : vector<4x16x16xbf16>, vector<4x16x16xbf16>, vector<4x16x16xf32> -> vector<4x16x16xf32>
    "tpu.trace_stop"() : () -> ()
    %c0_17 = arith.constant 0 : index
    %c0_18 = arith.constant 0 : index
    %c0_19 = arith.constant 0 : index
    %27 = vector.load %arg8[%c0_17, %c0_18, %c0_19] : memref<4x16x16xf32, #tpu.memory_space<vmem>>, vector<1x16x16xf32>
    %28 = vector.shape_cast %27 : vector<1x16x16xf32> to vector<16x16xf32>
    %29 = vector.shape_cast %28 : vector<16x16xf32> to vector<1x16x16xf32>
    %30 = vector.broadcast %29 : vector<1x16x16xf32> to vector<4x16x16xf32>
    %31 = arith.addf %26, %30 : vector<4x16x16xf32>
    %cst_20 = arith.constant dense<0xFF800000> : vector<4x16xf32>
    %32 = vector.multi_reduction <maximumf>, %31, %cst_20 [2] : vector<4x16x16xf32> to vector<4x16xf32>
    %33 = vector.shape_cast %32 : vector<4x16xf32> to vector<4x16x1xf32>
    %34 = vector.broadcast %33 : vector<4x16x1xf32> to vector<4x16x16xf32>
    %35 = arith.subf %31, %34 : vector<4x16x16xf32>
    %36 = math.exp %35 : vector<4x16x16xf32>
    %cst_21 = arith.constant dense<0.000000e+00> : vector<4x16xf32>
    %37 = vector.multi_reduction <add>, %36, %cst_21 [2] : vector<4x16x16xf32> to vector<4x16xf32>
    %38 = vector.shape_cast %37 : vector<4x16xf32> to vector<4x16x1xf32>
    %39 = tpu.reciprocal %38 {approx = true} : vector<4x16x1xf32> -> vector<4x16x1xf32>
    %40 = vector.broadcast %39 : vector<4x16x1xf32> to vector<4x16x16xf32>
    %41 = arith.mulf %36, %40 : vector<4x16x16xf32>
    %42 = arith.truncf %41 : vector<4x16x16xf32> to vector<4x16x16xbf16>
    "tpu.trace_start"() <{level = 10 : i32, message = "bnm,bmd->bnd"}> : () -> ()
    %cst_22 = arith.constant dense<0.000000e+00> : vector<4x16x16xf32>
    %43 = tpu.matmul %42, %25, %cst_22 {dimension_numbers = #tpu.dot_dimension_numbers<[2], [1], [1], [2], [0, 0, 0, 1, 1, 2], [0], [0]>} : vector<4x16x16xbf16>, vector<4x16x16xbf16>, vector<4x16x16xf32> -> vector<4x16x16xf32>
    "tpu.trace_stop"() : () -> ()
    %44 = vector.shape_cast %43 : vector<4x16x16xf32> to vector<64x16xf32>
    %45 = vector.extract_strided_slice %6 {offsets = [0, 16], sizes = [64, 16], strides = [1, 1]} : vector<64x128xf32> to vector<64x16xf32>
    %46 = vector.shape_cast %45 : vector<64x16xf32> to vector<4x16x16xf32>
    %47 = arith.truncf %46 : vector<4x16x16xf32> to vector<4x16x16xbf16>
    %48 = vector.extract_strided_slice %11 {offsets = [0, 16], sizes = [64, 16], strides = [1, 1]} : vector<64x128xf32> to vector<64x16xf32>
    %49 = vector.shape_cast %48 : vector<64x16xf32> to vector<4x16x16xf32>
    %50 = arith.truncf %49 : vector<4x16x16xf32> to vector<4x16x16xbf16>
    %51 = vector.extract_strided_slice %16 {offsets = [0, 16], sizes = [64, 16], strides = [1, 1]} : vector<64x128xf32> to vector<64x16xf32>
    %52 = vector.shape_cast %51 : vector<64x16xf32> to vector<4x16x16xf32>
    %53 = arith.truncf %52 : vector<4x16x16xf32> to vector<4x16x16xbf16>
    "tpu.trace_start"() <{level = 10 : i32, message = "bnd,bmd->bnm"}> : () -> ()
    %cst_23 = arith.constant dense<0.000000e+00> : vector<4x16x16xf32>
    %54 = tpu.matmul %47, %50, %cst_23 {dimension_numbers = #tpu.dot_dimension_numbers<[2], [2], [1], [1], [0, 0, 0, 1, 1, 1], [0], [0]>} : vector<4x16x16xbf16>, vector<4x16x16xbf16>, vector<4x16x16xf32> -> vector<4x16x16xf32>
    "tpu.trace_stop"() : () -> ()
    %c1 = arith.constant 1 : index
    %c0_24 = arith.constant 0 : index
    %c0_25 = arith.constant 0 : index
    %55 = vector.load %arg8[%c1, %c0_24, %c0_25] : memref<4x16x16xf32, #tpu.memory_space<vmem>>, vector<1x16x16xf32>
    %56 = vector.shape_cast %55 : vector<1x16x16xf32> to vector<16x16xf32>
    %57 = vector.shape_cast %56 : vector<16x16xf32> to vector<1x16x16xf32>
    %58 = vector.broadcast %57 : vector<1x16x16xf32> to vector<4x16x16xf32>
    %59 = arith.addf %54, %58 : vector<4x16x16xf32>
    %cst_26 = arith.constant dense<0xFF800000> : vector<4x16xf32>
    %60 = vector.multi_reduction <maximumf>, %59, %cst_26 [2] : vector<4x16x16xf32> to vector<4x16xf32>
    %61 = vector.shape_cast %60 : vector<4x16xf32> to vector<4x16x1xf32>
    %62 = vector.broadcast %61 : vector<4x16x1xf32> to vector<4x16x16xf32>
    %63 = arith.subf %59, %62 : vector<4x16x16xf32>
    %64 = math.exp %63 : vector<4x16x16xf32>
    %cst_27 = arith.constant dense<0.000000e+00> : vector<4x16xf32>
    %65 = vector.multi_reduction <add>, %64, %cst_27 [2] : vector<4x16x16xf32> to vector<4x16xf32>
    %66 = vector.shape_cast %65 : vector<4x16xf32> to vector<4x16x1xf32>
    %67 = tpu.reciprocal %66 {approx = true} : vector<4x16x1xf32> -> vector<4x16x1xf32>
    %68 = vector.broadcast %67 : vector<4x16x1xf32> to vector<4x16x16xf32>
    %69 = arith.mulf %64, %68 : vector<4x16x16xf32>
    %70 = arith.truncf %69 : vector<4x16x16xf32> to vector<4x16x16xbf16>
    "tpu.trace_start"() <{level = 10 : i32, message = "bnm,bmd->bnd"}> : () -> ()
    %cst_28 = arith.constant dense<0.000000e+00> : vector<4x16x16xf32>
    %71 = tpu.matmul %70, %53, %cst_28 {dimension_numbers = #tpu.dot_dimension_numbers<[2], [1], [1], [2], [0, 0, 0, 1, 1, 2], [0], [0]>} : vector<4x16x16xbf16>, vector<4x16x16xbf16>, vector<4x16x16xf32> -> vector<4x16x16xf32>
    "tpu.trace_stop"() : () -> ()
    %72 = vector.shape_cast %71 : vector<4x16x16xf32> to vector<64x16xf32>
    %73 = vector.extract_strided_slice %6 {offsets = [0, 32], sizes = [64, 16], strides = [1, 1]} : vector<64x128xf32> to vector<64x16xf32>
    %74 = vector.shape_cast %73 : vector<64x16xf32> to vector<4x16x16xf32>
    %75 = arith.truncf %74 : vector<4x16x16xf32> to vector<4x16x16xbf16>
    %76 = vector.extract_strided_slice %11 {offsets = [0, 32], sizes = [64, 16], strides = [1, 1]} : vector<64x128xf32> to vector<64x16xf32>
    %77 = vector.shape_cast %76 : vector<64x16xf32> to vector<4x16x16xf32>
    %78 = arith.truncf %77 : vector<4x16x16xf32> to vector<4x16x16xbf16>
    %79 = vector.extract_strided_slice %16 {offsets = [0, 32], sizes = [64, 16], strides = [1, 1]} : vector<64x128xf32> to vector<64x16xf32>
    %80 = vector.shape_cast %79 : vector<64x16xf32> to vector<4x16x16xf32>
    %81 = arith.truncf %80 : vector<4x16x16xf32> to vector<4x16x16xbf16>
    "tpu.trace_start"() <{level = 10 : i32, message = "bnd,bmd->bnm"}> : () -> ()
    %cst_29 = arith.constant dense<0.000000e+00> : vector<4x16x16xf32>
    %82 = tpu.matmul %75, %78, %cst_29 {dimension_numbers = #tpu.dot_dimension_numbers<[2], [2], [1], [1], [0, 0, 0, 1, 1, 1], [0], [0]>} : vector<4x16x16xbf16>, vector<4x16x16xbf16>, vector<4x16x16xf32> -> vector<4x16x16xf32>
    "tpu.trace_stop"() : () -> ()
    %c2 = arith.constant 2 : index
    %c0_30 = arith.constant 0 : index
    %c0_31 = arith.constant 0 : index
    %83 = vector.load %arg8[%c2, %c0_30, %c0_31] : memref<4x16x16xf32, #tpu.memory_space<vmem>>, vector<1x16x16xf32>
    %84 = vector.shape_cast %83 : vector<1x16x16xf32> to vector<16x16xf32>
    %85 = vector.shape_cast %84 : vector<16x16xf32> to vector<1x16x16xf32>
    %86 = vector.broadcast %85 : vector<1x16x16xf32> to vector<4x16x16xf32>
    %87 = arith.addf %82, %86 : vector<4x16x16xf32>
    %cst_32 = arith.constant dense<0xFF800000> : vector<4x16xf32>
    %88 = vector.multi_reduction <maximumf>, %87, %cst_32 [2] : vector<4x16x16xf32> to vector<4x16xf32>
    %89 = vector.shape_cast %88 : vector<4x16xf32> to vector<4x16x1xf32>
    %90 = vector.broadcast %89 : vector<4x16x1xf32> to vector<4x16x16xf32>
    %91 = arith.subf %87, %90 : vector<4x16x16xf32>
    %92 = math.exp %91 : vector<4x16x16xf32>
    %cst_33 = arith.constant dense<0.000000e+00> : vector<4x16xf32>
    %93 = vector.multi_reduction <add>, %92, %cst_33 [2] : vector<4x16x16xf32> to vector<4x16xf32>
    %94 = vector.shape_cast %93 : vector<4x16xf32> to vector<4x16x1xf32>
    %95 = tpu.reciprocal %94 {approx = true} : vector<4x16x1xf32> -> vector<4x16x1xf32>
    %96 = vector.broadcast %95 : vector<4x16x1xf32> to vector<4x16x16xf32>
    %97 = arith.mulf %92, %96 : vector<4x16x16xf32>
    %98 = arith.truncf %97 : vector<4x16x16xf32> to vector<4x16x16xbf16>
    "tpu.trace_start"() <{level = 10 : i32, message = "bnm,bmd->bnd"}> : () -> ()
    %cst_34 = arith.constant dense<0.000000e+00> : vector<4x16x16xf32>
    %99 = tpu.matmul %98, %81, %cst_34 {dimension_numbers = #tpu.dot_dimension_numbers<[2], [1], [1], [2], [0, 0, 0, 1, 1, 2], [0], [0]>} : vector<4x16x16xbf16>, vector<4x16x16xbf16>, vector<4x16x16xf32> -> vector<4x16x16xf32>
    "tpu.trace_stop"() : () -> ()
    %100 = vector.shape_cast %99 : vector<4x16x16xf32> to vector<64x16xf32>
    %101 = vector.extract_strided_slice %6 {offsets = [0, 48], sizes = [64, 16], strides = [1, 1]} : vector<64x128xf32> to vector<64x16xf32>
    %102 = vector.shape_cast %101 : vector<64x16xf32> to vector<4x16x16xf32>
    %103 = arith.truncf %102 : vector<4x16x16xf32> to vector<4x16x16xbf16>
    %104 = vector.extract_strided_slice %11 {offsets = [0, 48], sizes = [64, 16], strides = [1, 1]} : vector<64x128xf32> to vector<64x16xf32>
    %105 = vector.shape_cast %104 : vector<64x16xf32> to vector<4x16x16xf32>
    %106 = arith.truncf %105 : vector<4x16x16xf32> to vector<4x16x16xbf16>
    %107 = vector.extract_strided_slice %16 {offsets = [0, 48], sizes = [64, 16], strides = [1, 1]} : vector<64x128xf32> to vector<64x16xf32>
    %108 = vector.shape_cast %107 : vector<64x16xf32> to vector<4x16x16xf32>
    %109 = arith.truncf %108 : vector<4x16x16xf32> to vector<4x16x16xbf16>
    "tpu.trace_start"() <{level = 10 : i32, message = "bnd,bmd->bnm"}> : () -> ()
    %cst_35 = arith.constant dense<0.000000e+00> : vector<4x16x16xf32>
    %110 = tpu.matmul %103, %106, %cst_35 {dimension_numbers = #tpu.dot_dimension_numbers<[2], [2], [1], [1], [0, 0, 0, 1, 1, 1], [0], [0]>} : vector<4x16x16xbf16>, vector<4x16x16xbf16>, vector<4x16x16xf32> -> vector<4x16x16xf32>
    "tpu.trace_stop"() : () -> ()
    %c3 = arith.constant 3 : index
    %c0_36 = arith.constant 0 : index
    %c0_37 = arith.constant 0 : index
    %111 = vector.load %arg8[%c3, %c0_36, %c0_37] : memref<4x16x16xf32, #tpu.memory_space<vmem>>, vector<1x16x16xf32>
    %112 = vector.shape_cast %111 : vector<1x16x16xf32> to vector<16x16xf32>
    %113 = vector.shape_cast %112 : vector<16x16xf32> to vector<1x16x16xf32>
    %114 = vector.broadcast %113 : vector<1x16x16xf32> to vector<4x16x16xf32>
    %115 = arith.addf %110, %114 : vector<4x16x16xf32>
    %cst_38 = arith.constant dense<0xFF800000> : vector<4x16xf32>
    %116 = vector.multi_reduction <maximumf>, %115, %cst_38 [2] : vector<4x16x16xf32> to vector<4x16xf32>
    %117 = vector.shape_cast %116 : vector<4x16xf32> to vector<4x16x1xf32>
    %118 = vector.broadcast %117 : vector<4x16x1xf32> to vector<4x16x16xf32>
    %119 = arith.subf %115, %118 : vector<4x16x16xf32>
    %120 = math.exp %119 : vector<4x16x16xf32>
    %cst_39 = arith.constant dense<0.000000e+00> : vector<4x16xf32>
    %121 = vector.multi_reduction <add>, %120, %cst_39 [2] : vector<4x16x16xf32> to vector<4x16xf32>
    %122 = vector.shape_cast %121 : vector<4x16xf32> to vector<4x16x1xf32>
    %123 = tpu.reciprocal %122 {approx = true} : vector<4x16x1xf32> -> vector<4x16x1xf32>
    %124 = vector.broadcast %123 : vector<4x16x1xf32> to vector<4x16x16xf32>
    %125 = arith.mulf %120, %124 : vector<4x16x16xf32>
    %126 = arith.truncf %125 : vector<4x16x16xf32> to vector<4x16x16xbf16>
    "tpu.trace_start"() <{level = 10 : i32, message = "bnm,bmd->bnd"}> : () -> ()
    %cst_40 = arith.constant dense<0.000000e+00> : vector<4x16x16xf32>
    %127 = tpu.matmul %126, %109, %cst_40 {dimension_numbers = #tpu.dot_dimension_numbers<[2], [1], [1], [2], [0, 0, 0, 1, 1, 2], [0], [0]>} : vector<4x16x16xbf16>, vector<4x16x16xbf16>, vector<4x16x16xf32> -> vector<4x16x16xf32>
    "tpu.trace_stop"() : () -> ()
    %128 = vector.shape_cast %127 : vector<4x16x16xf32> to vector<64x16xf32>
    %cst_41 = arith.constant 0.000000e+00 : f32
    %129 = vector.broadcast %cst_41 : f32 to vector<64x64xf32>
    %130 = tpu.concatenate %44, %72, %100, %128, %129 in 1 : vector<64x16xf32>, vector<64x16xf32>, vector<64x16xf32>, vector<64x16xf32>, vector<64x64xf32> -> vector<64x128xf32>
    %131 = arith.truncf %130 : vector<64x128xf32> to vector<64x128xbf16>
    %c0_42 = arith.constant 0 : index
    %c0_43 = arith.constant 0 : index
    %132 = vector.load %arg9[%c0_42, %c0_43] : memref<128x128xbf16, #tpu.memory_space<vmem>>, vector<128x128xbf16>
    %cst_44 = arith.constant dense<0.000000e+00> : vector<64x128xf32>
    %133 = tpu.matmul %131, %132, %cst_44 {dimension_numbers = #tpu.dot_dimension_numbers<[1], [0], [0], [1], [0, 0, 1, 1], [], []>} : vector<64x128xbf16>, vector<128x128xbf16>, vector<64x128xf32> -> vector<64x128xf32>
    %c0_45 = arith.constant 0 : index
    %c0_46 = arith.constant 0 : index
    %134 = vector.load %arg10[%c0_45, %c0_46] : memref<1x128xf32, #tpu.memory_space<vmem>>, vector<1x128xf32>
    %135 = vector.broadcast %134 : vector<1x128xf32> to vector<64x128xf32>
    %136 = arith.addf %133, %135 : vector<64x128xf32>
    %137 = vector.shape_cast %136 : vector<64x128xf32> to vector<4x16x128xf32>
    %c0_47 = arith.constant 0 : index
    %c0_48 = arith.constant 0 : index
    %c0_49 = arith.constant 0 : index
    %138 = vector.load %arg11[%c0_47, %c0_48, %c0_49] : memref<4x16x128xf32, #tpu.memory_space<vmem>>, vector<4x16x128xf32>
    tpu.vector_store %arg11[%c0_47, %c0_48, %c0_49], %137 {strides = array<i32>} : memref<4x16x128xf32, #tpu.memory_space<vmem>>, vector<4x16x128xf32>,
    return
  }
  func.func @transform_0(%arg0: i32) -> (i32, i32, i32) {
    %c0_i32 = arith.constant 0 : i32
    %c0_i32_0 = arith.constant 0 : i32
    %c0_i32_1 = arith.constant 0 : i32
    return %arg0, %c0_i32, %c0_i32_0 : i32, i32, i32
  }
  func.func @transform_1(%arg0: i32) -> (i32, i32) {
    %c0_i32 = arith.constant 0 : i32
    %c0_i32_0 = arith.constant 0 : i32
    %c0_i32_1 = arith.constant 0 : i32
    return %c0_i32, %c0_i32_0 : i32, i32
  }
  func.func @transform_2(%arg0: i32) -> (i32, i32) {
    %c0_i32 = arith.constant 0 : i32
    %c0_i32_0 = arith.constant 0 : i32
    %c0_i32_1 = arith.constant 0 : i32
    return %c0_i32, %c0_i32_0 : i32, i32
  }
  func.func @transform_3(%arg0: i32) -> (i32, i32) {
    %c0_i32 = arith.constant 0 : i32
    %c0_i32_0 = arith.constant 0 : i32
    %c0_i32_1 = arith.constant 0 : i32
    return %c0_i32, %c0_i32_0 : i32, i32
  }
  func.func @transform_4(%arg0: i32) -> (i32, i32) {
    %c0_i32 = arith.constant 0 : i32
    %c0_i32_0 = arith.constant 0 : i32
    %c0_i32_1 = arith.constant 0 : i32
    return %c0_i32, %c0_i32_0 : i32, i32
  }
  func.func @transform_5(%arg0: i32) -> (i32, i32) {
    %c0_i32 = arith.constant 0 : i32
    %c0_i32_0 = arith.constant 0 : i32
    %c0_i32_1 = arith.constant 0 : i32
    return %c0_i32, %c0_i32_0 : i32, i32
  }
  func.func @transform_6(%arg0: i32) -> (i32, i32) {
    %c0_i32 = arith.constant 0 : i32
    %c0_i32_0 = arith.constant 0 : i32
    %c0_i32_1 = arith.constant 0 : i32
    return %c0_i32, %c0_i32_0 : i32, i32
  }
  func.func @transform_7(%arg0: i32) -> (i32, i32, i32) {
    %c0_i32 = arith.constant 0 : i32
    %c0_i32_0 = arith.constant 0 : i32
    %c0_i32_1 = arith.constant 0 : i32
    %c0_i32_2 = arith.constant 0 : i32
    return %c0_i32, %c0_i32_0, %c0_i32_1 : i32, i32, i32
  }
  func.func @transform_8(%arg0: i32) -> (i32, i32) {
    %c0_i32 = arith.constant 0 : i32
    %c0_i32_0 = arith.constant 0 : i32
    %c0_i32_1 = arith.constant 0 : i32
    return %c0_i32, %c0_i32_0 : i32, i32
  }
  func.func @transform_9(%arg0: i32) -> (i32, i32) {
    %c0_i32 = arith.constant 0 : i32
    %c0_i32_0 = arith.constant 0 : i32
    %c0_i32_1 = arith.constant 0 : i32
    return %c0_i32, %c0_i32_0 : i32, i32
  }
  func.func @transform_10(%arg0: i32) -> (i32, i32, i32) {
    %c0_i32 = arith.constant 0 : i32
    %c0_i32_0 = arith.constant 0 : i32
    %c0_i32_1 = arith.constant 0 : i32
    return %arg0, %c0_i32, %c0_i32_0 : i32, i32, i32
  }
}

</mosaic_0001>

<llo_original>
// kernel: tpu_custom_call.1
$region0: #{tpu_custom_call.1}
  #allocation0 [shape = 'u32[]', space=smem, size = 0x4, offset = 0x4, fixed_abs, tag = 'smem constant byte address 0x4 - core index']
  #allocation1 [shape = 'u32[144,128]{1,0:T(1,128)}', space=vmem, size = 0x12000, scoped, tag = 'internal scratch']
  %s0 = inlined_call_operand.hbm [shape: bf16[8,16,128], index: 0, kind: input, shape index: {}]
  %s1 = inlined_call_operand.hbm [shape: bf16[128,128], index: 1, kind: input, shape index: {}]
  %s2 = inlined_call_operand.vmem [shape: f32[1,128], index: 2, kind: input, shape index: {}]
  %s3 = inlined_call_operand.hbm [shape: bf16[128,128], index: 3, kind: input, shape index: {}]
  %s4 = inlined_call_operand.vmem [shape: f32[1,128], index: 4, kind: input, shape index: {}]
  %s5 = inlined_call_operand.hbm [shape: bf16[128,128], index: 5, kind: input, shape index: {}]
  %s6 = inlined_call_operand.vmem [shape: f32[1,128], index: 6, kind: input, shape index: {}]
  %s7 = inlined_call_operand.hbm [shape: f32[4,16,16], index: 7, kind: input, shape index: {}]
  %s8 = inlined_call_operand.hbm [shape: bf16[128,128], index: 8, kind: input, shape index: {}]
  %s9 = inlined_call_operand.vmem [shape: f32[1,128], index: 9, kind: input, shape index: {}]
  %s10 = inlined_call_operand.hbm [shape: f32[8,16,128], index: 10, kind: output, shape index: {}]
  %s11 = sld [smem:[#allocation0]]
  $region97: #{tpu_custom_call.1} parent=0
    _
  %s13 = ssub.s32 1, %s11
  %s14 = scalar_select 0, %s13, %s11
  $region1: #{tpu_custom_call.1} parent=0
    #allocation2 [shape = 'u8[32768]{0}', space=vmem, size = 0x8000, scoped, tag = 'input window, operand 0']
    #allocation3 [shape = 's32[2]{0}', space=sflag, size = 0x8, scoped, tag = 'scoped memory for tpu_custom_call.1']
    #allocation4 [shape = 's32[2]{0}', space=sflag, size = 0x8, scoped, tag = 'scoped memory for tpu_custom_call.1']
    #allocation5 [shape = 'u8[32768]{0}', space=vmem, size = 0x8000, scoped, tag = 'input window, operand 1, single buffered']
    #allocation6 [shape = 's32[1]{0}', space=sflag, size = 0x4, scoped, tag = 'scoped memory for tpu_custom_call.1']
    #allocation7 [shape = 'u8[32768]{0}', space=vmem, size = 0x8000, scoped, tag = 'input window, operand 3, single buffered']
    #allocation8 [shape = 'u8[32768]{0}', space=vmem, size = 0x8000, scoped, tag = 'input window, operand 5, single buffered']
    #allocation9 [shape = 's32[1]{0}', space=sflag, size = 0x4, scoped, tag = 'scoped memory for tpu_custom_call.1']
    #allocation10 [shape = 'u8[32768]{0}', space=vmem, size = 0x8000, scoped, tag = 'input window, operand 7, single buffered']
    #allocation11 [shape = 'u8[32768]{0}', space=vmem, size = 0x8000, scoped, tag = 'input window, operand 8, single buffered']
    #allocation12 [shape = 's32[1]{0}', space=sflag, size = 0x4, scoped, tag = 'scoped memory for tpu_custom_call.1']
    #allocation13 [shape = 'u8[65536]{0}', space=vmem, size = 0x10000, scoped, tag = 'output window, operand 0']
    %15 = vsyncpa [#allocation3], 0
    %s16 = scalar_lea.sflag [#allocation3], 1
    %17 = vsyncpa %s16, 0
    %18 = vsyncpa [#allocation6], 0
    %19 = vsyncpa [#allocation9], 0
    %20 = vsyncpa [#allocation12], 0
    %21 = vsyncpa [#allocation4], 0
    %s22 = scalar_lea.sflag [#allocation4], 1
    %23 = vsyncpa %s22, 0
    loop: start=0, step=1, limit=4
    $region2: #{tpu_custom_call.1} parent=1 // loop_pre_header
      _
    $region3: #{tpu_custom_call.1} parent=1 // loop_header
      %s25 = sphi 0, %s29
      %p26 = scmp.ge.s32.totalorder %s25, 4
      %s35 = sphi 0, %s37
      %s38 = sphi 0, %s35
      %s39 = sphi 0, %s38
      %s55 = sphi 0, %s39
      %s59 = sphi 0, %s59
      %s61 = sphi 0, %s59
      %s62 = sphi 0, %s61
      %s76 = sphi 0, %s62
      %s80 = sphi 0, %s80
      %s82 = sphi 0, %s80
      %s83 = sphi 0, %s82
      %s97 = sphi 0, %s83
      %s101 = sphi 0, %s101
      %s103 = sphi 0, %s101
      %s104 = sphi 0, %s103
      %s118 = sphi 0, %s104
      %s122 = sphi 0, %s122
      %s124 = sphi 0, %s122
      %s125 = sphi 0, %s124
      %s139 = sphi 0, %s125
      %s143 = sphi 0, %s143
      %s145 = sphi 0, %s143
      %s146 = sphi 0, %s145
      %s160 = sphi 0, %s146
      %s164 = sphi 0, %s164
      %s166 = sphi 0, %s164
      %s167 = sphi 0, %s166
      %s181 = sphi 0, %s167
      %s185 = sphi 0, %s185
      %s187 = sphi 0, %s185
      %s188 = sphi 0, %s187
      %s202 = sphi 0, %s188
      %s206 = sphi 0, %s206
      %s208 = sphi 0, %s206
      %s209 = sphi 0, %s208
      %s223 = sphi 0, %s209
      %s227 = sphi 0, %s227
      %s229 = sphi 0, %s227
      %s230 = sphi 0, %s229
      %s244 = sphi 0, %s230
      %s250 = sphi 0, %s252
      %s253 = sphi 0, %s250
      %s254 = sphi 0, %s253
      %s270 = sphi 0, %s254
    $region4: #{tpu_custom_call.1} parent=1 // loop_header_branch
      %28 = sbr.rel (%p26) target = $region8
    $region5: #{tpu_custom_call.1} parent=1 // loop_body
      %s30 = ssub.s32 %s25, 1
      %s31 = ssub.s32 %s25, 2
      %s32 = sadd.s32 %s25, 1
      %s33 = ssub.s32 %s25, %s32
      %p34 = scmp.eq.s32.totalorder %s33, 0
      %s36 = sadd.s32 %s35, 1
      %s37 = scalar_select %p34, %s35, %s36
      %p40 = pneg %p34
      %p41 = scmp.eq.s32.totalorder %s25, 1
      %p42 = por %p40, %p41
      %p43 = scmp.ne.s32.totalorder %s35, %s38
      %p44 = scmp.eq.s32.totalorder %s25, 0
      %p45 = por %p43, %p44
      %p46 = scmp.ne.s32.totalorder %s35, %s38
      %p47 = scmp.eq.s32.totalorder %s30, 1
      %p48 = por %p46, %p47
      %p49 = scmp.ne.s32.totalorder %s38, %s39
      %p50 = scmp.eq.s32.totalorder %s30, 0
      %p51 = por %p49, %p50
      %p52 = scmp.ne.s32.totalorder %s38, %s39
      %p53 = scmp.eq.s32.totalorder %s31, 1
      %p54 = por %p52, %p53
      %p56 = scmp.ne.s32.totalorder %s39, %s55
      %p57 = scmp.eq.s32.totalorder %s31, 0
      %p58 = por %p56, %p57
      %s60 = sadd.s32 %s59, 1
      %p63 = scmp.eq.s32.totalorder %s25, 1
      %p64 = scmp.ne.s32.totalorder %s59, %s61
      %p65 = scmp.eq.s32.totalorder %s25, 0
      %p66 = por %p64, %p65
      %p67 = scmp.ne.s32.totalorder %s59, %s61
      %p68 = scmp.eq.s32.totalorder %s30, 1
      %p69 = por %p67, %p68
      %p70 = scmp.ne.s32.totalorder %s61, %s62
      %p71 = scmp.eq.s32.totalorder %s30, 0
      %p72 = por %p70, %p71
      %p73 = scmp.ne.s32.totalorder %s61, %s62
      %p74 = scmp.eq.s32.totalorder %s31, 1
      %p75 = por %p73, %p74
      %p77 = scmp.ne.s32.totalorder %s62, %s76
      %p78 = scmp.eq.s32.totalorder %s31, 0
      %p79 = por %p77, %p78
      %s81 = sadd.s32 %s80, 1
      %p84 = scmp.eq.s32.totalorder %s25, 1
      %p85 = scmp.ne.s32.totalorder %s80, %s82
      %p86 = scmp.eq.s32.totalorder %s25, 0
      %p87 = por %p85, %p86
      %p88 = scmp.ne.s32.totalorder %s80, %s82
      %p89 = scmp.eq.s32.totalorder %s30, 1
      %p90 = por %p88, %p89
      %p91 = scmp.ne.s32.totalorder %s82, %s83
      %p92 = scmp.eq.s32.totalorder %s30, 0
      %p93 = por %p91, %p92
      %p94 = scmp.ne.s32.totalorder %s82, %s83
      %p95 = scmp.eq.s32.totalorder %s31, 1
      %p96 = por %p94, %p95
      %p98 = scmp.ne.s32.totalorder %s83, %s97
      %p99 = scmp.eq.s32.totalorder %s31, 0
      %p100 = por %p98, %p99
      %s102 = sadd.s32 %s101, 1
      %p105 = scmp.eq.s32.totalorder %s25, 1
      %p106 = scmp.ne.s32.totalorder %s101, %s103
      %p107 = scmp.eq.s32.totalorder %s25, 0
      %p108 = por %p106, %p107
      %p109 = scmp.ne.s32.totalorder %s101, %s103
      %p110 = scmp.eq.s32.totalorder %s30, 1
      %p111 = por %p109, %p110
      %p112 = scmp.ne.s32.totalorder %s103, %s104
      %p113 = scmp.eq.s32.totalorder %s30, 0
      %p114 = por %p112, %p113
      %p115 = scmp.ne.s32.totalorder %s103, %s104
      %p116 = scmp.eq.s32.totalorder %s31, 1
      %p117 = por %p115, %p116
      %p119 = scmp.ne.s32.totalorder %s104, %s118
      %p120 = scmp.eq.s32.totalorder %s31, 0
      %p121 = por %p119, %p120
      %s123 = sadd.s32 %s122, 1
      %p126 = scmp.eq.s32.totalorder %s25, 1
      %p127 = scmp.ne.s32.totalorder %s122, %s124
      %p128 = scmp.eq.s32.totalorder %s25, 0
      %p129 = por %p127, %p128
      %p130 = scmp.ne.s32.totalorder %s122, %s124
      %p131 = scmp.eq.s32.totalorder %s30, 1
      %p132 = por %p130, %p131
      %p133 = scmp.ne.s32.totalorder %s124, %s125
      %p134 = scmp.eq.s32.totalorder %s30, 0
      %p135 = por %p133, %p134
      %p136 = scmp.ne.s32.totalorder %s124, %s125
      %p137 = scmp.eq.s32.totalorder %s31, 1
      %p138 = por %p136, %p137
      %p140 = scmp.ne.s32.totalorder %s125, %s139
      %p141 = scmp.eq.s32.totalorder %s31, 0
      %p142 = por %p140, %p141
      %s144 = sadd.s32 %s143, 1
      %p147 = scmp.eq.s32.totalorder %s25, 1
      %p148 = scmp.ne.s32.totalorder %s143, %s145
      %p149 = scmp.eq.s32.totalorder %s25, 0
      %p150 = por %p148, %p149
      %p151 = scmp.ne.s32.totalorder %s143, %s145
      %p152 = scmp.eq.s32.totalorder %s30, 1
      %p153 = por %p151, %p152
      %p154 = scmp.ne.s32.totalorder %s145, %s146
      %p155 = scmp.eq.s32.totalorder %s30, 0
      %p156 = por %p154, %p155
      %p157 = scmp.ne.s32.totalorder %s145, %s146
      %p158 = scmp.eq.s32.totalorder %s31, 1
      %p159 = por %p157, %p158
      %p161 = scmp.ne.s32.totalorder %s146, %s160
      %p162 = scmp.eq.s32.totalorder %s31, 0
      %p163 = por %p161, %p162
      %s165 = sadd.s32 %s164, 1
      %p168 = scmp.eq.s32.totalorder %s25, 1
      %p169 = scmp.ne.s32.totalorder %s164, %s166
      %p170 = scmp.eq.s32.totalorder %s25, 0
      %p171 = por %p169, %p170
      %p172 = scmp.ne.s32.totalorder %s164, %s166
      %p173 = scmp.eq.s32.totalorder %s30, 1
      %p174 = por %p172, %p173
      %p175 = scmp.ne.s32.totalorder %s166, %s167
      %p176 = scmp.eq.s32.totalorder %s30, 0
      %p177 = por %p175, %p176
      %p178 = scmp.ne.s32.totalorder %s166, %s167
      %p179 = scmp.eq.s32.totalorder %s31, 1
      %p180 = por %p178, %p179
      %p182 = scmp.ne.s32.totalorder %s167, %s181
      %p183 = scmp.eq.s32.totalorder %s31, 0
      %p184 = por %p182, %p183
      %s186 = sadd.s32 %s185, 1
      %p189 = scmp.eq.s32.totalorder %s25, 1
      %p190 = scmp.ne.s32.totalorder %s185, %s187
      %p191 = scmp.eq.s32.totalorder %s25, 0
      %p192 = por %p190, %p191
      %p193 = scmp.ne.s32.totalorder %s185, %s187
      %p194 = scmp.eq.s32.totalorder %s30, 1
      %p195 = por %p193, %p194
      %p196 = scmp.ne.s32.totalorder %s187, %s188
      %p197 = scmp.eq.s32.totalorder %s30, 0
      %p198 = por %p196, %p197
      %p199 = scmp.ne.s32.totalorder %s187, %s188
      %p200 = scmp.eq.s32.totalorder %s31, 1
      %p201 = por %p199, %p200
      %p203 = scmp.ne.s32.totalorder %s188, %s202
      %p204 = scmp.eq.s32.totalorder %s31, 0
      %p205 = por %p203, %p204
      %s207 = sadd.s32 %s206, 1
      %p210 = scmp.eq.s32.totalorder %s25, 1
      %p211 = scmp.ne.s32.totalorder %s206, %s208
      %p212 = scmp.eq.s32.totalorder %s25, 0
      %p213 = por %p211, %p212
      %p214 = scmp.ne.s32.totalorder %s206, %s208
      %p215 = scmp.eq.s32.totalorder %s30, 1
      %p216 = por %p214, %p215
      %p217 = scmp.ne.s32.totalorder %s208, %s209
      %p218 = scmp.eq.s32.totalorder %s30, 0
      %p219 = por %p217, %p218
      %p220 = scmp.ne.s32.totalorder %s208, %s209
      %p221 = scmp.eq.s32.totalorder %s31, 1
      %p222 = por %p220, %p221
      %p224 = scmp.ne.s32.totalorder %s209, %s223
      %p225 = scmp.eq.s32.totalorder %s31, 0
      %p226 = por %p224, %p225
      %s228 = sadd.s32 %s227, 1
      %p231 = scmp.eq.s32.totalorder %s25, 1
      %p232 = scmp.ne.s32.totalorder %s227, %s229
      %p233 = scmp.eq.s32.totalorder %s25, 0
      %p234 = por %p232, %p233
      %p235 = scmp.ne.s32.totalorder %s227, %s229
      %p236 = scmp.eq.s32.totalorder %s30, 1
      %p237 = por %p235, %p236
      %p238 = scmp.ne.s32.totalorder %s229, %s230
      %p239 = scmp.eq.s32.totalorder %s30, 0
      %p240 = por %p238, %p239
      %p241 = scmp.ne.s32.totalorder %s229, %s230
      %p242 = scmp.eq.s32.totalorder %s31, 1
      %p243 = por %p241, %p242
      %p245 = scmp.ne.s32.totalorder %s230, %s244
      %p246 = scmp.eq.s32.totalorder %s31, 0
      %p247 = por %p245, %p246
      %s248 = ssub.s32 %s25, %s32
      %p249 = scmp.eq.s32.totalorder %s248, 0
      %s251 = sadd.s32 %s250, 1
      %s252 = scalar_select %p249, %s250, %s251
      %p255 = pneg %p249
      %p256 = scmp.eq.s32.totalorder %s25, 1
      %p257 = por %p255, %p256
      %p258 = scmp.ne.s32.totalorder %s250, %s253
      %p259 = scmp.eq.s32.totalorder %s25, 0
      %p260 = por %p258, %p259
      %p261 = scmp.ne.s32.totalorder %s250, %s253
      %p262 = scmp.eq.s32.totalorder %s30, 1
      %p263 = por %p261, %p262
      %p264 = scmp.ne.s32.totalorder %s253, %s254
      %p265 = scmp.eq.s32.totalorder %s30, 0
      %p266 = por %p264, %p265
      %p267 = scmp.ne.s32.totalorder %s253, %s254
      %p268 = scmp.eq.s32.totalorder %s31, 1
      %p269 = por %p267, %p268
      %p271 = scmp.ne.s32.totalorder %s254, %s270
      %p272 = scmp.eq.s32.totalorder %s31, 0
      %p273 = por %p271, %p272
      %p274 = scmp.le.s32.totalorder 1, %s25
      %p275 = scmp.lt.s32.totalorder %s25, 3
      %p276 = pnand %p274, %p275
      %p277 = pneg %p276
      // Predicated region
      $region9: #{tpu_custom_call.1} parent=5 // pred_check
        _
      $region10: #{tpu_custom_call.1} parent=5 // pred_check_branch
        %279 = sbr.rel (%p276) target = $region12
      $region11: #{tpu_custom_call.1} parent=5 // pred_region
        %s280 = ssub.s32 %s25, 1
        // Predicated region
        $region13: #{tpu_custom_call.1} parent=11 // pred_check
          %p281 = pneg %p72
        $region14: #{tpu_custom_call.1} parent=11 // pred_check_branch
          %283 = sbr.rel (%p281) target = $region16
        $region15: #{tpu_custom_call.1} parent=11 // pred_region
          %s285 = ssub.s32 1024, 1024
          %286 = vsyncadd [#allocation6], %s285
          %s287 = sshll.u32 [#allocation5], 4
          %s288 = int_to_ptr.vmem [resolvable:$true] %s287
          %293 = dma.hbm_to_vmem [thread:$0]  %s1, 1024, %s288, [#allocation6], 64, 64, 4
        $region16: #{tpu_custom_call.1} parent=11 // pred_fallthru
          _
        // Predicated region
        $region17: #{tpu_custom_call.1} parent=11 // pred_check
          %p294 = pneg %p93
        $region18: #{tpu_custom_call.1} parent=11 // pred_check_branch
          %296 = sbr.rel (%p294) target = $region20
        $region19: #{tpu_custom_call.1} parent=11 // pred_region
          _
        $region20: #{tpu_custom_call.1} parent=11 // pred_fallthru
          _
        // Predicated region
        $region21: #{tpu_custom_call.1} parent=11 // pred_check
          %p297 = pneg %p114
        $region22: #{tpu_custom_call.1} parent=11 // pred_check_branch
          %299 = sbr.rel (%p297) target = $region24
        $region23: #{tpu_custom_call.1} parent=11 // pred_region
          %s301 = ssub.s32 1024, 1024
          %302 = vsyncadd [#allocation6], %s301
          %s303 = sshll.u32 [#allocation7], 4
          %s304 = int_to_ptr.vmem [resolvable:$true] %s303
          %309 = dma.hbm_to_vmem [thread:$0]  %s3, 1024, %s304, [#allocation6], 64, 64, 4
        $region24: #{tpu_custom_call.1} parent=11 // pred_fallthru
          _
        // Predicated region
        $region25: #{tpu_custom_call.1} parent=11 // pred_check
          %p310 = pneg %p135
        $region26: #{tpu_custom_call.1} parent=11 // pred_check_branch
          %312 = sbr.rel (%p310) target = $region28
        $region27: #{tpu_custom_call.1} parent=11 // pred_region
          _
        $region28: #{tpu_custom_call.1} parent=11 // pred_fallthru
          _
        // Predicated region
        $region29: #{tpu_custom_call.1} parent=11 // pred_check
          %p313 = pneg %p156
        $region30: #{tpu_custom_call.1} parent=11 // pred_check_branch
          %315 = sbr.rel (%p313) target = $region32
        $region31: #{tpu_custom_call.1} parent=11 // pred_region
          %s317 = ssub.s32 1024, 1024
          %318 = vsyncadd [#allocation9], %s317
          %s319 = sshll.u32 [#allocation8], 4
          %s320 = int_to_ptr.vmem [resolvable:$true] %s319
          %325 = dma.hbm_to_vmem [thread:$0]  %s5, 1024, %s320, [#allocation9], 64, 64, 4
        $region32: #{tpu_custom_call.1} parent=11 // pred_fallthru
          _
        // Predicated region
        $region33: #{tpu_custom_call.1} parent=11 // pred_check
          %p326 = pneg %p177
        $region34: #{tpu_custom_call.1} parent=11 // pred_check_branch
          %328 = sbr.rel (%p326) target = $region36
        $region35: #{tpu_custom_call.1} parent=11 // pred_region
          _
        $region36: #{tpu_custom_call.1} parent=11 // pred_fallthru
          _
        // Predicated region
        $region37: #{tpu_custom_call.1} parent=11 // pred_check
          %p329 = pneg %p198
        $region38: #{tpu_custom_call.1} parent=11 // pred_check_branch
          %331 = sbr.rel (%p329) target = $region40
        $region39: #{tpu_custom_call.1} parent=11 // pred_region
          %s333 = ssub.s32 1024, 1024
          %334 = vsyncadd [#allocation9], %s333
          %s335 = sshll.u32 [#allocation10], 4
          %s336 = int_to_ptr.vmem [resolvable:$true] %s335
          %341 = dma.hbm_to_vmem [thread:$0]  %s7, 1024, %s336, [#allocation9], 128, 128, 8
        $region40: #{tpu_custom_call.1} parent=11 // pred_fallthru
          _
        // Predicated region
        $region41: #{tpu_custom_call.1} parent=11 // pred_check
          %p342 = pneg %p219
        $region42: #{tpu_custom_call.1} parent=11 // pred_check_branch
          %344 = sbr.rel (%p342) target = $region44
        $region43: #{tpu_custom_call.1} parent=11 // pred_region
          %s346 = ssub.s32 1024, 1024
          %347 = vsyncadd [#allocation12], %s346
          %s348 = sshll.u32 [#allocation11], 4
          %s349 = int_to_ptr.vmem [resolvable:$true] %s348
          %354 = dma.hbm_to_vmem [thread:$0]  %s8, 1024, %s349, [#allocation12], 64, 64, 4
        $region44: #{tpu_custom_call.1} parent=11 // pred_fallthru
          _
        // Predicated region
        $region45: #{tpu_custom_call.1} parent=11 // pred_check
          %p355 = pneg %p240
        $region46: #{tpu_custom_call.1} parent=11 // pred_check_branch
          %357 = sbr.rel (%p355) target = $region48
        $region47: #{tpu_custom_call.1} parent=11 // pred_region
          _
        $region48: #{tpu_custom_call.1} parent=11 // pred_fallthru
          _
      $region12: #{tpu_custom_call.1} parent=5 // pred_fallthru
        _
      %p358 = scmp.lt.s32.totalorder %s25, 2
      // Predicated region
      $region49: #{tpu_custom_call.1} parent=5 // pred_check
        %p359 = pneg %p358
      $region50: #{tpu_custom_call.1} parent=5 // pred_check_branch
        %361 = sbr.rel (%p359) target = $region52
      $region51: #{tpu_custom_call.1} parent=5 // pred_region
        // Predicated region
        $region53: #{tpu_custom_call.1} parent=51 // pred_check
          %p362 = pneg %p45
        $region54: #{tpu_custom_call.1} parent=51 // pred_check_branch
          %364 = sbr.rel (%p362) target = $region56
        $region55: #{tpu_custom_call.1} parent=51 // pred_region
          %s365 = sand.u32 %s35, 1
          %s366 = scalar_lea.sflag [#allocation3], %s365
          %s367 = sand.u32 %s35, 1
          %s368 = smul.addr %s367, 32
          %s369 = scalar_lea.vmem [#allocation2], %s368
          %s370 = smul.u32 4, %s25
          %s372 = ssub.s32 512, 512
          %373 = vsyncadd %s366, %s372
          %s374 = smul.addr %s370, 2
          %s375 = smul.addr %s374, 64
          %s376 = scalar_lea.hbm %s0, %s375
          %s377 = sshll.u32 %s369, 4
          %s378 = int_to_ptr.vmem [resolvable:$true] %s377
          %383 = dma.hbm_to_vmem [thread:$0]  %s376, 512, %s378, %s366, 64, 64, 4
        $region56: #{tpu_custom_call.1} parent=51 // pred_fallthru
          _
      $region52: #{tpu_custom_call.1} parent=5 // pred_fallthru
        _
      %p384 = scmp.le.s32.totalorder 1, %s25
      %p385 = scmp.lt.s32.totalorder %s25, 3
      %p386 = pnand %p384, %p385
      %p387 = pneg %p386
      // Predicated region
      $region57: #{tpu_custom_call.1} parent=5 // pred_check
        _
      $region58: #{tpu_custom_call.1} parent=5 // pred_check_branch
        %389 = sbr.rel (%p386) target = $region60
      $region59: #{tpu_custom_call.1} parent=5 // pred_region
        %s390 = ssub.s32 %s25, 1
        %s391 = sand.u32 %s38, 1
        %s392 = scalar_lea.sflag [#allocation3], %s391
        %s393 = sand.u32 %s38, 1
        %s394 = smul.addr %s393, 32
        %s395 = scalar_lea.vmem [#allocation2], %s394
        // Predicated region
        $region61: #{tpu_custom_call.1} parent=59 // pred_check
          %p396 = pneg %p51
        $region62: #{tpu_custom_call.1} parent=59 // pred_check_branch
          %398 = sbr.rel (%p396) target = $region64
        $region63: #{tpu_custom_call.1} parent=59 // pred_region
          %399 = dma.done %s392, 512
        $region64: #{tpu_custom_call.1} parent=59 // pred_fallthru
          _
        // Predicated region
        $region65: #{tpu_custom_call.1} parent=59 // pred_check
          %p400 = pneg %p72
        $region66: #{tpu_custom_call.1} parent=59 // pred_check_branch
          %402 = sbr.rel (%p400) target = $region68
        $region67: #{tpu_custom_call.1} parent=59 // pred_region
          %403 = dma.done [#allocation6], 1024
        $region68: #{tpu_custom_call.1} parent=59 // pred_fallthru
          _
        // Predicated region
        $region69: #{tpu_custom_call.1} parent=59 // pred_check
          %p404 = pneg %p114
        $region70: #{tpu_custom_call.1} parent=59 // pred_check_branch
          %406 = sbr.rel (%p404) target = $region72
        $region71: #{tpu_custom_call.1} parent=59 // pred_region
          %407 = dma.done [#allocation6], 1024
        $region72: #{tpu_custom_call.1} parent=59 // pred_fallthru
          _
        // Predicated region
        $region73: #{tpu_custom_call.1} parent=59 // pred_check
          %p408 = pneg %p156
        $region74: #{tpu_custom_call.1} parent=59 // pred_check_branch
          %410 = sbr.rel (%p408) target = $region76
        $region75: #{tpu_custom_call.1} parent=59 // pred_region
          %411 = dma.done [#allocation9], 1024
        $region76: #{tpu_custom_call.1} parent=59 // pred_fallthru
          _
        // Predicated region
        $region77: #{tpu_custom_call.1} parent=59 // pred_check
          %p412 = pneg %p198
        $region78: #{tpu_custom_call.1} parent=59 // pred_check_branch
          %414 = sbr.rel (%p412) target = $region80
        $region79: #{tpu_custom_call.1} parent=59 // pred_region
          %415 = dma.done [#allocation9], 1024
        $region80: #{tpu_custom_call.1} parent=59 // pred_fallthru
          _
        // Predicated region
        $region81: #{tpu_custom_call.1} parent=59 // pred_check
          %p416 = pneg %p219
        $region82: #{tpu_custom_call.1} parent=59 // pred_check_branch
          %418 = sbr.rel (%p416) target = $region84
        $region83: #{tpu_custom_call.1} parent=59 // pred_region
          %419 = dma.done [#allocation12], 1024
        $region84: #{tpu_custom_call.1} parent=59 // pred_fallthru
          _
        %s420 = sand.u32 %s38, 1
        %s421 = scalar_lea.sflag [#allocation3], %s420
        %s422 = sand.u32 %s38, 1
        %s423 = smul.addr %s422, 32
        %s424 = scalar_lea.vmem [#allocation2], %s423
        %p425 = pneg %p51
        %p426 = pneg %p48
        %p427 = pneg %p72
        %p428 = pneg %p69
        %p429 = pneg %p93
        %p430 = pneg %p90
        %p431 = pneg %p114
        %p432 = pneg %p111
        %p433 = pneg %p135
        %p434 = pneg %p132
        %p435 = pneg %p156
        %p436 = pneg %p153
        %p437 = pneg %p177
        %p438 = pneg %p174
        %p439 = pneg %p198
        %p440 = pneg %p195
        %p441 = pneg %p219
        %p442 = pneg %p216
        %p443 = pneg %p240
        %p444 = pneg %p237
        %p445 = pneg %p266
        %p446 = pneg %p263
        %s447 = sand.u32 %s253, 1
        %s448 = scalar_lea.sflag [#allocation4], %s447
        %s449 = sand.u32 %s253, 1
        %s450 = smul.addr %s449, 64
        %s451 = scalar_lea.vmem [#allocation13], %s450
        %s452 = smul.u32 4, %s30
        %s453 = smul.u32 4, %s30
        %v455 = vld [vmem:[%s395] sm:$0xf]
        %v456 = vld [vmem:[%s395 + $0x4] sm:$0xf]
        %v457 = vld [vmem:[%s395 + $0x8] sm:$0xf]
        %v458 = vld [vmem:[%s395 + $0xc] sm:$0xf]
        %v459 = vld [vmem:[%s395 + $0x10] sm:$0xf]
        %v460 = vld [vmem:[%s395 + $0x14] sm:$0xf]
        %v461 = vld [vmem:[%s395 + $0x18] sm:$0xf]
        %v462 = vld [vmem:[%s395 + $0x1c] sm:$0xf]
        %v463 = vld [vmem:[#allocation5] sm:$0xf]
        %v464 = vld [vmem:[#allocation5 + $0x4] sm:$0xf]
        %v465 = vld [vmem:[#allocation5 + $0x8] sm:$0xf]
        %v466 = vld [vmem:[#allocation5 + $0xc] sm:$0xf]
        %v467 = vld [vmem:[#allocation5 + $0x10] sm:$0xf]
        %v468 = vld [vmem:[#allocation5 + $0x14] sm:$0xf]
        %v469 = vld [vmem:[#allocation5 + $0x18] sm:$0xf]
        %v470 = vld [vmem:[#allocation5 + $0x1c] sm:$0xf]
        %v471 = vld [vmem:[#allocation5 + $0x20] sm:$0xf]
        %v472 = vld [vmem:[#allocation5 + $0x24] sm:$0xf]
        %v473 = vld [vmem:[#allocation5 + $0x28] sm:$0xf]
        %v474 = vld [vmem:[#allocation5 + $0x2c] sm:$0xf]
        %v475 = vld [vmem:[#allocation5 + $0x30] sm:$0xf]
        %v476 = vld [vmem:[#allocation5 + $0x34] sm:$0xf]
        %v477 = vld [vmem:[#allocation5 + $0x38] sm:$0xf]
        %v478 = vld [vmem:[#allocation5 + $0x3c] sm:$0xf]
        %v479 = vld [vmem:[%s2] sm:$0x1]
        %v481 = vlaneseq
        %v482 = vshrl.u32 %v481, 7
        %v483 = vsub.s32 0, %v482
        %v484 = vrot.slane %v479, %v483
        %v494 = vunpack.c.l.b16 %v455
        %v495 = vunpack.c.l.b16 %v456
        %v496 = vunpack.c.l.b16 %v457
        %v497 = vunpack.c.l.b16 %v458
        %v498 = vunpack.c.l.b16 %v459
        %v499 = vunpack.c.l.b16 %v460
        %v500 = vunpack.c.l.b16 %v461
        %v501 = vunpack.c.l.b16 %v462
        %v502 = vpack.c.b16 %v495, %v494
        %v503 = vpack.c.b16 %v497, %v496
        %v504 = vpack.c.b16 %v499, %v498
        %v505 = vpack.c.b16 %v501, %v500
        %v526 = vunpack.c.l.b16 %v463
        %v527 = vunpack.c.l.b16 %v464
        %v528 = vunpack.c.l.b16 %v465
        %v529 = vunpack.c.l.b16 %v466
        %v530 = vunpack.c.l.b16 %v467
        %v531 = vunpack.c.l.b16 %v468
        %v532 = vunpack.c.l.b16 %v469
        %v533 = vunpack.c.l.b16 %v470
        %v534 = vunpack.c.l.b16 %v471
        %v535 = vunpack.c.l.b16 %v472
        %v536 = vunpack.c.l.b16 %v473
        %v537 = vunpack.c.l.b16 %v474
        %v538 = vunpack.c.l.b16 %v475
        %v539 = vunpack.c.l.b16 %v476
        %v540 = vunpack.c.l.b16 %v477
        %v541 = vunpack.c.l.b16 %v478
        %v542 = vpack.c.b16 %v527, %v526
        %v543 = vpack.c.b16 %v529, %v528
        %v544 = vpack.c.b16 %v531, %v530
        %v545 = vpack.c.b16 %v533, %v532
        %v546 = vpack.c.b16 %v535, %v534
        %v547 = vpack.c.b16 %v537, %v536
        %v548 = vpack.c.b16 %v539, %v538
        %v549 = vpack.c.b16 %v541, %v540
        %558 = vmatprep.subr.bf16.mxu0 0
        %559 = vmatpush1.bf16.msra.mxu0 %v542
        %560 = vmatprep.subr.bf16.mxu0 0
        %561 = vmatpush1.bf16.msra.mxu0 %v543
        %562 = vmatprep.subr.bf16.mxu0 0
        %563 = vmatpush1.bf16.msra.mxu0 %v544
        %564 = vmatprep.subr.bf16.mxu0 0
        %565 = vmatpush1.bf16.msra.mxu0 %v545
        %566 = vmatprep.subr.bf16.mxu0 0
        %567 = vmatpush1.bf16.msra.mxu0 %v546
        %568 = vmatprep.subr.bf16.mxu0 0
        %569 = vmatpush1.bf16.msra.mxu0 %v547
        %570 = vmatprep.subr.bf16.mxu0 0
        %571 = vmatpush1.bf16.msra.mxu0 %v548
        %572 = vmatprep.subr.bf16.mxu0 0
        %573 = vmatpush1.bf16.msra.mxu0 %v549
        %574 = vmatprep.subr.bf16.mxu0 0
        %575 = vmatpush1.bf16.msra.mxu0 0
        %576 = vmatprep.subr.bf16.mxu0 0
        %577 = vmatpush1.bf16.msra.mxu0 0
        %578 = vmatprep.subr.bf16.mxu0 0
        %579 = vmatpush1.bf16.msra.mxu0 0
        %580 = vmatprep.subr.bf16.mxu0 0
        %581 = vmatpush1.bf16.msra.mxu0 0
        %582 = vmatprep.subr.bf16.mxu0 0
        %583 = vmatpush1.bf16.msra.mxu0 0
        %584 = vmatprep.subr.bf16.mxu0 0
        %585 = vmatpush1.bf16.msra.mxu0 0
        %586 = vmatprep.subr.bf16.mxu0 0
        %587 = vmatpush1.bf16.msra.mxu0 0
        %588 = vmatprep.subr.bf16.mxu0 0
        %589 = vmatpush1.bf16.msra.mxu0 0
        %590 = vmatprep.mubr.bf16.mxu0 0
        %591 = vmatmul.mubr.bf16.gmra.mrb[0].mxu0 %v502
        %v592 = vpop.f32.mrb[0].mxu0
        %v593 = vadd.f32 %v484, %v592
        %v594 = vpop.f32.mrb[0].mxu0
        %v595 = vpop.f32.mrb[0].mxu0
        %v596 = vadd.f32 %v484, %v595
        %v597 = vpop.f32.mrb[0].mxu0
        %598 = vmatprep.mubr.bf16.mxu0 0
        %599 = vmatmul.mubr.bf16.gmra.mrb[0].mxu0 %v503
        %v600 = vpop.f32.mrb[0].mxu0
        %v601 = vadd.f32 %v484, %v600
        %v602 = vpop.f32.mrb[0].mxu0
        %v603 = vpop.f32.mrb[0].mxu0
        %v604 = vadd.f32 %v484, %v603
        %v605 = vpop.f32.mrb[0].mxu0
        %606 = vmatprep.mubr.bf16.mxu0 0
        %607 = vmatmul.mubr.bf16.gmra.mrb[0].mxu0 %v504
        %v608 = vpop.f32.mrb[0].mxu0
        %v609 = vadd.f32 %v484, %v608
        %v610 = vpop.f32.mrb[0].mxu0
        %v611 = vpop.f32.mrb[0].mxu0
        %v612 = vadd.f32 %v484, %v611
        %v613 = vpop.f32.mrb[0].mxu0
        %614 = vmatprep.mubr.bf16.mxu0 0
        %615 = vmatmul.mubr.bf16.gmra.mrb[0].mxu0 %v505
        %v616 = vpop.f32.mrb[0].mxu0
        %v617 = vadd.f32 %v484, %v616
        %v618 = vpop.f32.mrb[0].mxu0
        %v619 = vpop.f32.mrb[0].mxu0
        %v620 = vadd.f32 %v484, %v619
        %v621 = vpop.f32.mrb[0].mxu0
        %622 = vdwg.mxu0
        %v623 = vld [vmem:[#allocation7] sm:$0xf]
        %v624 = vld [vmem:[#allocation7 + $0x4] sm:$0xf]
        %v625 = vld [vmem:[#allocation7 + $0x8] sm:$0xf]
        %v626 = vld [vmem:[#allocation7 + $0xc] sm:$0xf]
        %v627 = vld [vmem:[#allocation7 + $0x10] sm:$0xf]
        %v628 = vld [vmem:[#allocation7 + $0x14] sm:$0xf]
        %v629 = vld [vmem:[#allocation7 + $0x18] sm:$0xf]
        %v630 = vld [vmem:[#allocation7 + $0x1c] sm:$0xf]
        %v631 = vld [vmem:[#allocation7 + $0x20] sm:$0xf]
        %v632 = vld [vmem:[#allocation7 + $0x24] sm:$0xf]
        %v633 = vld [vmem:[#allocation7 + $0x28] sm:$0xf]
        %v634 = vld [vmem:[#allocation7 + $0x2c] sm:$0xf]
        %v635 = vld [vmem:[#allocation7 + $0x30] sm:$0xf]
        %v636 = vld [vmem:[#allocation7 + $0x34] sm:$0xf]
        %v637 = vld [vmem:[#allocation7 + $0x38] sm:$0xf]
        %v638 = vld [vmem:[#allocation7 + $0x3c] sm:$0xf]
        %v639 = vld [vmem:[%s4] sm:$0x1]
        %v641 = vlaneseq
        %v642 = vshrl.u32 %v641, 7
        %v643 = vsub.s32 0, %v642
        %v644 = vrot.slane %v639, %v643
        %v662 = vunpack.c.l.b16 %v623
        %v663 = vunpack.c.l.b16 %v624
        %v664 = vunpack.c.l.b16 %v625
        %v665 = vunpack.c.l.b16 %v626
        %v666 = vunpack.c.l.b16 %v627
        %v667 = vunpack.c.l.b16 %v628
        %v668 = vunpack.c.l.b16 %v629
        %v669 = vunpack.c.l.b16 %v630
        %v670 = vunpack.c.l.b16 %v631
        %v671 = vunpack.c.l.b16 %v632
        %v672 = vunpack.c.l.b16 %v633
        %v673 = vunpack.c.l.b16 %v634
        %v674 = vunpack.c.l.b16 %v635
        %v675 = vunpack.c.l.b16 %v636
        %v676 = vunpack.c.l.b16 %v637
        %v677 = vunpack.c.l.b16 %v638
        %v678 = vpack.c.b16 %v663, %v662
        %v679 = vpack.c.b16 %v665, %v664
        %v680 = vpack.c.b16 %v667, %v666
        %v681 = vpack.c.b16 %v669, %v668
        %v682 = vpack.c.b16 %v671, %v670
        %v683 = vpack.c.b16 %v673, %v672
        %v684 = vpack.c.b16 %v675, %v674
        %v685 = vpack.c.b16 %v677, %v676
        %694 = vmatprep.subr.bf16.mxu0 0
        %695 = vmatpush1.bf16.msra.mxu0 %v678
        %696 = vmatprep.subr.bf16.mxu0 0
        %697 = vmatpush1.bf16.msra.mxu0 %v679
        %698 = vmatprep.subr.bf16.mxu0 0
        %699 = vmatpush1.bf16.msra.mxu0 %v680
        %700 = vmatprep.subr.bf16.mxu0 0
        %701 = vmatpush1.bf16.msra.mxu0 %v681
        %702 = vmatprep.subr.bf16.mxu0 0
        %703 = vmatpush1.bf16.msra.mxu0 %v682
        %704 = vmatprep.subr.bf16.mxu0 0
        %705 = vmatpush1.bf16.msra.mxu0 %v683
        %706 = vmatprep.subr.bf16.mxu0 0
        %707 = vmatpush1.bf16.msra.mxu0 %v684
        %708 = vmatprep.subr.bf16.mxu0 0
        %709 = vmatpush1.bf16.msra.mxu0 %v685
        %710 = vmatprep.subr.bf16.mxu0 0
        %711 = vmatpush1.bf16.msra.mxu0 0
        %712 = vmatprep.subr.bf16.mxu0 0
        %713 = vmatpush1.bf16.msra.mxu0 0
        %714 = vmatprep.subr.bf16.mxu0 0
        %715 = vmatpush1.bf16.msra.mxu0 0
        %716 = vmatprep.subr.bf16.mxu0 0
        %717 = vmatpush1.bf16.msra.mxu0 0
        %718 = vmatprep.subr.bf16.mxu0 0
        %719 = vmatpush1.bf16.msra.mxu0 0
        %720 = vmatprep.subr.bf16.mxu0 0
        %721 = vmatpush1.bf16.msra.mxu0 0
        %722 = vmatprep.subr.bf16.mxu0 0
        %723 = vmatpush1.bf16.msra.mxu0 0
        %724 = vmatprep.subr.bf16.mxu0 0
        %725 = vmatpush1.bf16.msra.mxu0 0
        %726 = vmatprep.mubr.bf16.mxu0 0
        %727 = vmatmul.mubr.bf16.gmra.mrb[0].mxu0 %v502
        %v728 = vpop.f32.mrb[0].mxu0
        %v729 = vadd.f32 %v644, %v728
        %v730 = vpop.f32.mrb[0].mxu0
        %v731 = vpop.f32.mrb[0].mxu0
        %v732 = vadd.f32 %v644, %v731
        %v733 = vpop.f32.mrb[0].mxu0
        %734 = vmatprep.mubr.bf16.mxu0 0
        %735 = vmatmul.mubr.bf16.gmra.mrb[0].mxu0 %v503
        %v736 = vpop.f32.mrb[0].mxu0
        %v737 = vadd.f32 %v644, %v736
        %v738 = vpop.f32.mrb[0].mxu0
        %v739 = vpop.f32.mrb[0].mxu0
        %v740 = vadd.f32 %v644, %v739
        %v741 = vpop.f32.mrb[0].mxu0
        %742 = vmatprep.mubr.bf16.mxu0 0
        %743 = vmatmul.mubr.bf16.gmra.mrb[0].mxu0 %v504
        %v744 = vpop.f32.mrb[0].mxu0
        %v745 = vadd.f32 %v644, %v744
        %v746 = vpop.f32.mrb[0].mxu0
        %v747 = vpop.f32.mrb[0].mxu0
        %v748 = vadd.f32 %v644, %v747
        %v749 = vpop.f32.mrb[0].mxu0
        %750 = vmatprep.mubr.bf16.mxu0 0
        %751 = vmatmul.mubr.bf16.gmra.mrb[0].mxu0 %v505
        %v752 = vpop.f32.mrb[0].mxu0
        %v753 = vadd.f32 %v644, %v752
        %v754 = vpop.f32.mrb[0].mxu0
        %v755 = vpop.f32.mrb[0].mxu0
        %v756 = vadd.f32 %v644, %v755
        %v757 = vpop.f32.mrb[0].mxu0
        %758 = vdwg.mxu0
        %v759 = vld [vmem:[#allocation8] sm:$0xf]
        %v760 = vld [vmem:[#allocation8 + $0x4] sm:$0xf]
        %v761 = vld [vmem:[#allocation8 + $0x8] sm:$0xf]
        %v762 = vld [vmem:[#allocation8 + $0xc] sm:$0xf]
        %v763 = vld [vmem:[#allocation8 + $0x10] sm:$0xf]
        %v764 = vld [vmem:[#allocation8 + $0x14] sm:$0xf]
        %v765 = vld [vmem:[#allocation8 + $0x18] sm:$0xf]
        %v766 = vld [vmem:[#allocation8 + $0x1c] sm:$0xf]
        %v767 = vld [vmem:[#allocation8 + $0x20] sm:$0xf]
        %v768 = vld [vmem:[#allocation8 + $0x24] sm:$0xf]
        %v769 = vld [vmem:[#allocation8 + $0x28] sm:$0xf]
        %v770 = vld [vmem:[#allocation8 + $0x2c] sm:$0xf]
        %v771 = vld [vmem:[#allocation8 + $0x30] sm:$0xf]
        %v772 = vld [vmem:[#allocation8 + $0x34] sm:$0xf]
        %v773 = vld [vmem:[#allocation8 + $0x38] sm:$0xf]
        %v774 = vld [vmem:[#allocation8 + $0x3c] sm:$0xf]
        %v775 = vld [vmem:[%s6] sm:$0x1]
        %v777 = vlaneseq
        %v778 = vshrl.u32 %v777, 7
        %v779 = vsub.s32 0, %v778
        %v780 = vrot.slane %v775, %v779
        %v798 = vunpack.c.l.b16 %v759
        %v799 = vunpack.c.l.b16 %v760
        %v800 = vunpack.c.l.b16 %v761
        %v801 = vunpack.c.l.b16 %v762
        %v802 = vunpack.c.l.b16 %v763
        %v803 = vunpack.c.l.b16 %v764
        %v804 = vunpack.c.l.b16 %v765
        %v805 = vunpack.c.l.b16 %v766
        %v806 = vunpack.c.l.b16 %v767
        %v807 = vunpack.c.l.b16 %v768
        %v808 = vunpack.c.l.b16 %v769
        %v809 = vunpack.c.l.b16 %v770
        %v810 = vunpack.c.l.b16 %v771
        %v811 = vunpack.c.l.b16 %v772
        %v812 = vunpack.c.l.b16 %v773
        %v813 = vunpack.c.l.b16 %v774
        %v814 = vpack.c.b16 %v799, %v798
        %v815 = vpack.c.b16 %v801, %v800
        %v816 = vpack.c.b16 %v803, %v802
        %v817 = vpack.c.b16 %v805, %v804
        %v818 = vpack.c.b16 %v807, %v806
        %v819 = vpack.c.b16 %v809, %v808
        %v820 = vpack.c.b16 %v811, %v810
        %v821 = vpack.c.b16 %v813, %v812
        %830 = vmatprep.subr.bf16.mxu0 0
        %831 = vmatpush1.bf16.msra.mxu0 %v814
        %832 = vmatprep.subr.bf16.mxu0 0
        %833 = vmatpush1.bf16.msra.mxu0 %v815
        %834 = vmatprep.subr.bf16.mxu0 0
        %835 = vmatpush1.bf16.msra.mxu0 %v816
        %836 = vmatprep.subr.bf16.mxu0 0
        %837 = vmatpush1.bf16.msra.mxu0 %v817
        %838 = vmatprep.subr.bf16.mxu0 0
        %839 = vmatpush1.bf16.msra.mxu0 %v818
        %840 = vmatprep.subr.bf16.mxu0 0
        %841 = vmatpush1.bf16.msra.mxu0 %v819
        %842 = vmatprep.subr.bf16.mxu0 0
        %843 = vmatpush1.bf16.msra.mxu0 %v820
        %844 = vmatprep.subr.bf16.mxu0 0
        %845 = vmatpush1.bf16.msra.mxu0 %v821
        %846 = vmatprep.subr.bf16.mxu0 0
        %847 = vmatpush1.bf16.msra.mxu0 0
        %848 = vmatprep.subr.bf16.mxu0 0
        %849 = vmatpush1.bf16.msra.mxu0 0
        %850 = vmatprep.subr.bf16.mxu0 0
        %851 = vmatpush1.bf16.msra.mxu0 0
        %852 = vmatprep.subr.bf16.mxu0 0
        %853 = vmatpush1.bf16.msra.mxu0 0
        %854 = vmatprep.subr.bf16.mxu0 0
        %855 = vmatpush1.bf16.msra.mxu0 0
        %856 = vmatprep.subr.bf16.mxu0 0
        %857 = vmatpush1.bf16.msra.mxu0 0
        %858 = vmatprep.subr.bf16.mxu0 0
        %859 = vmatpush1.bf16.msra.mxu0 0
        %860 = vmatprep.subr.bf16.mxu0 0
        %861 = vmatpush1.bf16.msra.mxu0 0
        %862 = vmatprep.mubr.bf16.mxu0 0
        %863 = vmatmul.mubr.bf16.gmra.mrb[0].mxu0 %v502
        %v864 = vpop.f32.mrb[0].mxu0
        %v865 = vadd.f32 %v780, %v864
        %v866 = vpop.f32.mrb[0].mxu0
        %v867 = vpop.f32.mrb[0].mxu0
        %v868 = vadd.f32 %v780, %v867
        %v869 = vpop.f32.mrb[0].mxu0
        %870 = vmatprep.mubr.bf16.mxu0 0
        %871 = vmatmul.mubr.bf16.gmra.mrb[0].mxu0 %v503
        %v872 = vpop.f32.mrb[0].mxu0
        %v873 = vadd.f32 %v780, %v872
        %v874 = vpop.f32.mrb[0].mxu0
        %v875 = vpop.f32.mrb[0].mxu0
        %v876 = vadd.f32 %v780, %v875
        %v877 = vpop.f32.mrb[0].mxu0
        %878 = vmatprep.mubr.bf16.mxu0 0
        %879 = vmatmul.mubr.bf16.gmra.mrb[0].mxu0 %v504
        %v880 = vpop.f32.mrb[0].mxu0
        %v881 = vadd.f32 %v780, %v880
        %v882 = vpop.f32.mrb[0].mxu0
        %v883 = vpop.f32.mrb[0].mxu0
        %v884 = vadd.f32 %v780, %v883
        %v885 = vpop.f32.mrb[0].mxu0
        %886 = vmatprep.mubr.bf16.mxu0 0
        %887 = vmatmul.mubr.bf16.gmra.mrb[0].mxu0 %v505
        %v888 = vpop.f32.mrb[0].mxu0
        %v889 = vadd.f32 %v780, %v888
        %v890 = vpop.f32.mrb[0].mxu0
        %v891 = vpop.f32.mrb[0].mxu0
        %v892 = vadd.f32 %v780, %v891
        %v893 = vpop.f32.mrb[0].mxu0
        %894 = vdwg.mxu0
        %v895 = vpack.c.bf16 %v596, %v593
        %v896 = vpack.c.bf16 %v604, %v601
        %v897 = vpack.c.bf16 %v612, %v609
        %v898 = vpack.c.bf16 %v620, %v617
        %v899 = vpack.c.bf16 %v732, %v729
        %v900 = vpack.c.bf16 %v740, %v737
        %v901 = vpack.c.bf16 %v748, %v745
        %v902 = vpack.c.bf16 %v756, %v753
        %v903 = vpack.c.bf16 %v868, %v865
        %v904 = vpack.c.bf16 %v876, %v873
        %v905 = vpack.c.bf16 %v884, %v881
        %v906 = vpack.c.bf16 %v892, %v889
        %v907 = vld [vmem:[#allocation10] sm:$0xff]
        %v908 = vld [vmem:[#allocation10 + $0x8] sm:$0xff]
        %vm909 = vcmask 130048
        %v911 = vsel %vm909, %v895, 0
        %v914 = vsel %vm909, %v899, 0
        %916 = vmatprep.subr.bf16.mxu0 0
        %917 = vmatpush1.bf16.xpose.msra.mxu0 %v914
        %918 = vmatprep.subr.bf16.mxu0 0
        %919 = vmatpush1.bf16.xpose.msra.mxu0 0
        %920 = vmatprep.subr.bf16.mxu0 0
        %921 = vmatpush1.bf16.xpose.msra.mxu0 0
        %922 = vmatprep.subr.bf16.mxu0 0
        %923 = vmatpush1.bf16.xpose.msra.mxu0 0
        %924 = vmatprep.subr.bf16.mxu0 0
        %925 = vmatpush1.bf16.xpose.msra.mxu0 0
        %926 = vmatprep.subr.bf16.mxu0 0
        %927 = vmatpush1.bf16.xpose.msra.mxu0 0
        %928 = vmatprep.subr.bf16.mxu0 0
        %929 = vmatpush1.bf16.xpose.msra.mxu0 0
        %930 = vmatprep.subr.bf16.mxu0 0
        %931 = vmatpush1.bf16.xpose.msra.mxu0 0
        %932 = vmatprep.subr.bf16.mxu0 0
        %933 = vmatpush1.bf16.xpose.msra.mxu0 0
        %934 = vmatprep.subr.bf16.mxu0 0
        %935 = vmatpush1.bf16.xpose.msra.mxu0 0
        %936 = vmatprep.subr.bf16.mxu0 0
        %937 = vmatpush1.bf16.xpose.msra.mxu0 0
        %938 = vmatprep.subr.bf16.mxu0 0
        %939 = vmatpush1.bf16.xpose.msra.mxu0 0
        %940 = vmatprep.subr.bf16.mxu0 0
        %941 = vmatpush1.bf16.xpose.msra.mxu0 0
        %942 = vmatprep.subr.bf16.mxu0 0
        %943 = vmatpush1.bf16.xpose.msra.mxu0 0
        %944 = vmatprep.subr.bf16.mxu0 0
        %945 = vmatpush1.bf16.xpose.msra.mxu0 0
        %946 = vmatprep.subr.bf16.mxu0 0
        %947 = vmatpush1.bf16.xpose.msra.mxu0 0
        %948 = vmatprep.mubr.bf16.mxu0 0
        %949 = vmatmul.mubr.bf16.gmra.mrb[0].mxu0 %v911
        %v950 = vpop.f32.mrb[0].mxu0
        %v951 = vadd.f32 %v907, %v950
        %v952 = vpop.f32.mrb[0].mxu0
        %v953 = vpop.f32.mrb[0].mxu0
        %v954 = vadd.f32 %v908, %v953
        %v955 = vpop.f32.mrb[0].mxu0
        %956 = vdwg.mxu0
        %v958 = vsel %vm909, %v896, 0
        %v961 = vsel %vm909, %v900, 0
        %963 = vmatprep.subr.bf16.mxu0 0
        %964 = vmatpush1.bf16.xpose.msra.mxu0 %v961
        %965 = vmatprep.subr.bf16.mxu0 0
        %966 = vmatpush1.bf16.xpose.msra.mxu0 0
        %967 = vmatprep.subr.bf16.mxu0 0
        %968 = vmatpush1.bf16.xpose.msra.mxu0 0
        %969 = vmatprep.subr.bf16.mxu0 0
        %970 = vmatpush1.bf16.xpose.msra.mxu0 0
        %971 = vmatprep.subr.bf16.mxu0 0
        %972 = vmatpush1.bf16.xpose.msra.mxu0 0
        %973 = vmatprep.subr.bf16.mxu0 0
        %974 = vmatpush1.bf16.xpose.msra.mxu0 0
        %975 = vmatprep.subr.bf16.mxu0 0
        %976 = vmatpush1.bf16.xpose.msra.mxu0 0
        %977 = vmatprep.subr.bf16.mxu0 0
        %978 = vmatpush1.bf16.xpose.msra.mxu0 0
        %979 = vmatprep.subr.bf16.mxu0 0
        %980 = vmatpush1.bf16.xpose.msra.mxu0 0
        %981 = vmatprep.subr.bf16.mxu0 0
        %982 = vmatpush1.bf16.xpose.msra.mxu0 0
        %983 = vmatprep.subr.bf16.mxu0 0
        %984 = vmatpush1.bf16.xpose.msra.mxu0 0
        %985 = vmatprep.subr.bf16.mxu0 0
        %986 = vmatpush1.bf16.xpose.msra.mxu0 0
        %987 = vmatprep.subr.bf16.mxu0 0
        %988 = vmatpush1.bf16.xpose.msra.mxu0 0
        %989 = vmatprep.subr.bf16.mxu0 0
        %990 = vmatpush1.bf16.xpose.msra.mxu0 0
        %991 = vmatprep.subr.bf16.mxu0 0
        %992 = vmatpush1.bf16.xpose.msra.mxu0 0
        %993 = vmatprep.subr.bf16.mxu0 0
        %994 = vmatpush1.bf16.xpose.msra.mxu0 0
        %995 = vmatprep.mubr.bf16.mxu0 0
        %996 = vmatmul.mubr.bf16.gmra.mrb[0].mxu0 %v958
        %v997 = vpop.f32.mrb[0].mxu0
        %v998 = vadd.f32 %v907, %v997
        %v999 = vpop.f32.mrb[0].mxu0
        %v1000 = vpop.f32.mrb[0].mxu0
        %v1001 = vadd.f32 %v908, %v1000
        %v1002 = vpop.f32.mrb[0].mxu0
        %1003 = vdwg.mxu0
        %v1005 = vsel %vm909, %v897, 0
        %v1008 = vsel %vm909, %v901, 0
        %1010 = vmatprep.subr.bf16.mxu0 0
        %1011 = vmatpush1.bf16.xpose.msra.mxu0 %v1008
        %1012 = vmatprep.subr.bf16.mxu0 0
        %1013 = vmatpush1.bf16.xpose.msra.mxu0 0
        %1014 = vmatprep.subr.bf16.mxu0 0
        %1015 = vmatpush1.bf16.xpose.msra.mxu0 0
        %1016 = vmatprep.subr.bf16.mxu0 0
        %1017 = vmatpush1.bf16.xpose.msra.mxu0 0
        %1018 = vmatprep.subr.bf16.mxu0 0
        %1019 = vmatpush1.bf16.xpose.msra.mxu0 0
        %1020 = vmatprep.subr.bf16.mxu0 0
        %1021 = vmatpush1.bf16.xpose.msra.mxu0 0
        %1022 = vmatprep.subr.bf16.mxu0 0
        %1023 = vmatpush1.bf16.xpose.msra.mxu0 0
        %1024 = vmatprep.subr.bf16.mxu0 0
        %1025 = vmatpush1.bf16.xpose.msra.mxu0 0
        %1026 = vmatprep.subr.bf16.mxu0 0
        %1027 = vmatpush1.bf16.xpose.msra.mxu0 0
        %1028 = vmatprep.subr.bf16.mxu0 0
        %1029 = vmatpush1.bf16.xpose.msra.mxu0 0
        %1030 = vmatprep.subr.bf16.mxu0 0
        %1031 = vmatpush1.bf16.xpose.msra.mxu0 0
        %1032 = vmatprep.subr.bf16.mxu0 0
        %1033 = vmatpush1.bf16.xpose.msra.mxu0 0
        %1034 = vmatprep.subr.bf16.mxu0 0
        %1035 = vmatpush1.bf16.xpose.msra.mxu0 0
        %1036 = vmatprep.subr.bf16.mxu0 0
        %1037 = vmatpush1.bf16.xpose.msra.mxu0 0
        %1038 = vmatprep.subr.bf16.mxu0 0
        %1039 = vmatpush1.bf16.xpose.msra.mxu0 0
        %1040 = vmatprep.subr.bf16.mxu0 0
        %1041 = vmatpush1.bf16.xpose.msra.mxu0 0
        %1042 = vmatprep.mubr.bf16.mxu0 0
        %1043 = vmatmul.mubr.bf16.gmra.mrb[0].mxu0 %v1005
        %v1044 = vpop.f32.mrb[0].mxu0
        %v1045 = vadd.f32 %v907, %v1044
        %v1046 = vpop.f32.mrb[0].mxu0
        %v1047 = vpop.f32.mrb[0].mxu0
        %v1048 = vadd.f32 %v908, %v1047
        %v1049 = vpop.f32.mrb[0].mxu0
        %1050 = vdwg.mxu0
        %v1052 = vsel %vm909, %v898, 0
        %v1055 = vsel %vm909, %v902, 0
        %1057 = vmatprep.subr.bf16.mxu0 0
        %1058 = vmatpush1.bf16.xpose.msra.mxu0 %v1055
        %1059 = vmatprep.subr.bf16.mxu0 0
        %1060 = vmatpush1.bf16.xpose.msra.mxu0 0
        %1061 = vmatprep.subr.bf16.mxu0 0
        %1062 = vmatpush1.bf16.xpose.msra.mxu0 0
        %1063 = vmatprep.subr.bf16.mxu0 0
        %1064 = vmatpush1.bf16.xpose.msra.mxu0 0
        %1065 = vmatprep.subr.bf16.mxu0 0
        %1066 = vmatpush1.bf16.xpose.msra.mxu0 0
        %1067 = vmatprep.subr.bf16.mxu0 0
        %1068 = vmatpush1.bf16.xpose.msra.mxu0 0
        %1069 = vmatprep.subr.bf16.mxu0 0
        %1070 = vmatpush1.bf16.xpose.msra.mxu0 0
        %1071 = vmatprep.subr.bf16.mxu0 0
        %1072 = vmatpush1.bf16.xpose.msra.mxu0 0
        %1073 = vmatprep.subr.bf16.mxu0 0
        %1074 = vmatpush1.bf16.xpose.msra.mxu0 0
        %1075 = vmatprep.subr.bf16.mxu0 0
        %1076 = vmatpush1.bf16.xpose.msra.mxu0 0
        %1077 = vmatprep.subr.bf16.mxu0 0
        %1078 = vmatpush1.bf16.xpose.msra.mxu0 0
        %1079 = vmatprep.subr.bf16.mxu0 0
        %1080 = vmatpush1.bf16.xpose.msra.mxu0 0
        %1081 = vmatprep.subr.bf16.mxu0 0
        %1082 = vmatpush1.bf16.xpose.msra.mxu0 0
        %1083 = vmatprep.subr.bf16.mxu0 0
        %1084 = vmatpush1.bf16.xpose.msra.mxu0 0
        %1085 = vmatprep.subr.bf16.mxu0 0
        %1086 = vmatpush1.bf16.xpose.msra.mxu0 0
        %1087 = vmatprep.subr.bf16.mxu0 0
        %1088 = vmatpush1.bf16.xpose.msra.mxu0 0
        %1089 = vmatprep.mubr.bf16.mxu0 0
        %1090 = vmatmul.mubr.bf16.gmra.mrb[0].mxu0 %v1052
        %v1091 = vpop.f32.mrb[0].mxu0
        %v1092 = vadd.f32 %v907, %v1091
        %v1093 = vpop.f32.mrb[0].mxu0
        %v1094 = vpop.f32.mrb[0].mxu0
        %v1095 = vadd.f32 %v908, %v1094
        %v1096 = vpop.f32.mrb[0].mxu0
        %1097 = vdwg.mxu0
        %v1098 = vsel %vm909, %v951, -inf
        %1099 = vmax.xlane.f32.xlu0 %v1098
        %v1100 = vpop.xlane.xlu0 %1099
        %v1101 = vsel %vm909, %v954, -inf
        %1102 = vmax.xlane.f32.xlu0 %v1101
        %v1103 = vpop.xlane.xlu0 %1102
        %v1104 = vsel %vm909, %v998, -inf
        %1105 = vmax.xlane.f32.xlu0 %v1104
        %v1106 = vpop.xlane.xlu0 %1105
        %v1107 = vsel %vm909, %v1001, -inf
        %1108 = vmax.xlane.f32.xlu0 %v1107
        %v1109 = vpop.xlane.xlu0 %1108
        %v1110 = vsel %vm909, %v1045, -inf
        %1111 = vmax.xlane.f32.xlu0 %v1110
        %v1112 = vpop.xlane.xlu0 %1111
        %v1113 = vsel %vm909, %v1048, -inf
        %1114 = vmax.xlane.f32.xlu0 %v1113
        %v1115 = vpop.xlane.xlu0 %1114
        %v1116 = vsel %vm909, %v1092, -inf
        %1117 = vmax.xlane.f32.xlu0 %v1116
        %v1118 = vpop.xlane.xlu0 %1117
        %v1119 = vsel %vm909, %v1095, -inf
        %1120 = vmax.xlane.f32.xlu0 %v1119
        %v1121 = vpop.xlane.xlu0 %1120
        %v1122 = vsub.f32 %v951, %v1100
        %v1123 = vsub.f32 %v954, %v1103
        %v1124 = vsub.f32 %v998, %v1106
        %v1125 = vsub.f32 %v1001, %v1109
        %v1126 = vsub.f32 %v1045, %v1112
        %v1127 = vsub.f32 %v1048, %v1115
        %v1128 = vsub.f32 %v1092, %v1118
        %v1129 = vsub.f32 %v1095, %v1121
        %v1130 = vmul.f32 %v1122, 1.442695
        %v1131 = vpow.pop %v1130
        %v1132 = vmul.f32 %v1123, 1.442695
        %v1133 = vpow.pop %v1132
        %v1134 = vmul.f32 %v1124, 1.442695
        %v1135 = vpow.pop %v1134
        %v1136 = vmul.f32 %v1125, 1.442695
        %v1137 = vpow.pop %v1136
        %v1138 = vmul.f32 %v1126, 1.442695
        %v1139 = vpow.pop %v1138
        %v1140 = vmul.f32 %v1127, 1.442695
        %v1141 = vpow.pop %v1140
        %v1142 = vmul.f32 %v1128, 1.442695
        %v1143 = vpow.pop %v1142
        %v1144 = vmul.f32 %v1129, 1.442695
        %v1145 = vpow.pop %v1144
        %v1146 = vsel %vm909, %v1131, 0.0
        %1147 = vadd.xlane.f32.xlu0 %v1146
        %v1148 = vpop.xlane.xlu0 %1147
        %v1149 = vsel %vm909, %v1133, 0.0
        %1150 = vadd.xlane.f32.xlu0 %v1149
        %v1151 = vpop.xlane.xlu0 %1150
        %v1152 = vsel %vm909, %v1135, 0.0
        %1153 = vadd.xlane.f32.xlu0 %v1152
        %v1154 = vpop.xlane.xlu0 %1153
        %v1155 = vsel %vm909, %v1137, 0.0
        %1156 = vadd.xlane.f32.xlu0 %v1155
        %v1157 = vpop.xlane.xlu0 %1156
        %v1158 = vsel %vm909, %v1139, 0.0
        %1159 = vadd.xlane.f32.xlu0 %v1158
        %v1160 = vpop.xlane.xlu0 %1159
        %v1161 = vsel %vm909, %v1141, 0.0
        %1162 = vadd.xlane.f32.xlu0 %v1161
        %v1163 = vpop.xlane.xlu0 %1162
        %v1164 = vsel %vm909, %v1143, 0.0
        %1165 = vadd.xlane.f32.xlu0 %v1164
        %v1166 = vpop.xlane.xlu0 %1165
        %v1167 = vsel %vm909, %v1145, 0.0
        %1168 = vadd.xlane.f32.xlu0 %v1167
        %v1169 = vpop.xlane.xlu0 %1168
        %v1170 = vrcp.pop %v1148
        %v1171 = vrcp.pop %v1151
        %v1172 = vrcp.pop %v1154
        %v1173 = vrcp.pop %v1157
        %v1174 = vrcp.pop %v1160
        %v1175 = vrcp.pop %v1163
        %v1176 = vrcp.pop %v1166
        %v1177 = vrcp.pop %v1169
        %v1178 = vmul.f32 %v1131, %v1170
        %v1179 = vmul.f32 %v1133, %v1171
        %v1180 = vmul.f32 %v1135, %v1172
        %v1181 = vmul.f32 %v1137, %v1173
        %v1182 = vmul.f32 %v1139, %v1174
        %v1183 = vmul.f32 %v1141, %v1175
        %v1184 = vmul.f32 %v1143, %v1176
        %v1185 = vmul.f32 %v1145, %v1177
        %v1186 = vpack.c.bf16 %v1179, %v1178
        %v1187 = vpack.c.bf16 %v1181, %v1180
        %v1188 = vpack.c.bf16 %v1183, %v1182
        %v1189 = vpack.c.bf16 %v1185, %v1184
        %v1191 = vsel %vm909, %v1186, 0
        %1193 = vmatprep.subr.bf16.mxu0 0
        %1194 = vmatpush1.bf16.msra.mxu0 %v903
        %1195 = vmatprep.subr.bf16.mxu0 0
        %1196 = vmatpush1.bf16.msra.mxu0 0
        %1197 = vmatprep.subr.bf16.mxu0 0
        %1198 = vmatpush1.bf16.msra.mxu0 0
        %1199 = vmatprep.subr.bf16.mxu0 0
        %1200 = vmatpush1.bf16.msra.mxu0 0
        %1201 = vmatprep.subr.bf16.mxu0 0
        %1202 = vmatpush1.bf16.msra.mxu0 0
        %1203 = vmatprep.subr.bf16.mxu0 0
        %1204 = vmatpush1.bf16.msra.mxu0 0
        %1205 = vmatprep.subr.bf16.mxu0 0
        %1206 = vmatpush1.bf16.msra.mxu0 0
        %1207 = vmatprep.subr.bf16.mxu0 0
        %1208 = vmatpush1.bf16.msra.mxu0 0
        %1209 = vmatprep.subr.bf16.mxu0 0
        %1210 = vmatpush1.bf16.msra.mxu0 0
        %1211 = vmatprep.subr.bf16.mxu0 0
        %1212 = vmatpush1.bf16.msra.mxu0 0
        %1213 = vmatprep.subr.bf16.mxu0 0
        %1214 = vmatpush1.bf16.msra.mxu0 0
        %1215 = vmatprep.subr.bf16.mxu0 0
        %1216 = vmatpush1.bf16.msra.mxu0 0
        %1217 = vmatprep.subr.bf16.mxu0 0
        %1218 = vmatpush1.bf16.msra.mxu0 0
        %1219 = vmatprep.subr.bf16.mxu0 0
        %1220 = vmatpush1.bf16.msra.mxu0 0
        %1221 = vmatprep.subr.bf16.mxu0 0
        %1222 = vmatpush1.bf16.msra.mxu0 0
        %1223 = vmatprep.subr.bf16.mxu0 0
        %1224 = vmatpush1.bf16.msra.mxu0 0
        %1225 = vmatprep.mubr.bf16.mxu0 0
        %1226 = vmatmul.mubr.bf16.gmra.mrb[0].mxu0 %v1191
        %v1227 = vpop.f32.mrb[0].mxu0
        %v1228 = vadd.f32 0.0, %v1227
        %v1229 = vpop.f32.mrb[0].mxu0
        %v1230 = vpop.f32.mrb[0].mxu0
        %v1231 = vadd.f32 0.0, %v1230
        %v1232 = vpop.f32.mrb[0].mxu0
        %1233 = vdwg.mxu0
        %v1235 = vsel %vm909, %v1187, 0
        %1237 = vmatprep.subr.bf16.mxu0 0
        %1238 = vmatpush1.bf16.msra.mxu0 %v904
        %1239 = vmatprep.subr.bf16.mxu0 0
        %1240 = vmatpush1.bf16.msra.mxu0 0
        %1241 = vmatprep.subr.bf16.mxu0 0
        %1242 = vmatpush1.bf16.msra.mxu0 0
        %1243 = vmatprep.subr.bf16.mxu0 0
        %1244 = vmatpush1.bf16.msra.mxu0 0
        %1245 = vmatprep.subr.bf16.mxu0 0
        %1246 = vmatpush1.bf16.msra.mxu0 0
        %1247 = vmatprep.subr.bf16.mxu0 0
        %1248 = vmatpush1.bf16.msra.mxu0 0
        %1249 = vmatprep.subr.bf16.mxu0 0
        %1250 = vmatpush1.bf16.msra.mxu0 0
        %1251 = vmatprep.subr.bf16.mxu0 0
        %1252 = vmatpush1.bf16.msra.mxu0 0
        %1253 = vmatprep.subr.bf16.mxu0 0
        %1254 = vmatpush1.bf16.msra.mxu0 0
        %1255 = vmatprep.subr.bf16.mxu0 0
        %1256 = vmatpush1.bf16.msra.mxu0 0
        %1257 = vmatprep.subr.bf16.mxu0 0
        %1258 = vmatpush1.bf16.msra.mxu0 0
        %1259 = vmatprep.subr.bf16.mxu0 0
        %1260 = vmatpush1.bf16.msra.mxu0 0
        %1261 = vmatprep.subr.bf16.mxu0 0
        %1262 = vmatpush1.bf16.msra.mxu0 0
        %1263 = vmatprep.subr.bf16.mxu0 0
        %1264 = vmatpush1.bf16.msra.mxu0 0
        %1265 = vmatprep.subr.bf16.mxu0 0
        %1266 = vmatpush1.bf16.msra.mxu0 0
        %1267 = vmatprep.subr.bf16.mxu0 0
        %1268 = vmatpush1.bf16.msra.mxu0 0
        %1269 = vmatprep.mubr.bf16.mxu0 0
        %1270 = vmatmul.mubr.bf16.gmra.mrb[0].mxu0 %v1235
        %v1271 = vpop.f32.mrb[0].mxu0
        %v1272 = vadd.f32 0.0, %v1271
        %v1273 = vpop.f32.mrb[0].mxu0
        %v1274 = vpop.f32.mrb[0].mxu0
        %v1275 = vadd.f32 0.0, %v1274
        %v1276 = vpop.f32.mrb[0].mxu0
        %1277 = vdwg.mxu0
        %v1279 = vsel %vm909, %v1188, 0
        %1281 = vmatprep.subr.bf16.mxu0 0
        %1282 = vmatpush1.bf16.msra.mxu0 %v905
        %1283 = vmatprep.subr.bf16.mxu0 0
        %1284 = vmatpush1.bf16.msra.mxu0 0
        %1285 = vmatprep.subr.bf16.mxu0 0
        %1286 = vmatpush1.bf16.msra.mxu0 0
        %1287 = vmatprep.subr.bf16.mxu0 0
        %1288 = vmatpush1.bf16.msra.mxu0 0
        %1289 = vmatprep.subr.bf16.mxu0 0
        %1290 = vmatpush1.bf16.msra.mxu0 0
        %1291 = vmatprep.subr.bf16.mxu0 0
        %1292 = vmatpush1.bf16.msra.mxu0 0
        %1293 = vmatprep.subr.bf16.mxu0 0
        %1294 = vmatpush1.bf16.msra.mxu0 0
        %1295 = vmatprep.subr.bf16.mxu0 0
        %1296 = vmatpush1.bf16.msra.mxu0 0
        %1297 = vmatprep.subr.bf16.mxu0 0
        %1298 = vmatpush1.bf16.msra.mxu0 0
        %1299 = vmatprep.subr.bf16.mxu0 0
        %1300 = vmatpush1.bf16.msra.mxu0 0
        %1301 = vmatprep.subr.bf16.mxu0 0
        %1302 = vmatpush1.bf16.msra.mxu0 0
        %1303 = vmatprep.subr.bf16.mxu0 0
        %1304 = vmatpush1.bf16.msra.mxu0 0
        %1305 = vmatprep.subr.bf16.mxu0 0
        %1306 = vmatpush1.bf16.msra.mxu0 0
        %1307 = vmatprep.subr.bf16.mxu0 0
        %1308 = vmatpush1.bf16.msra.mxu0 0
        %1309 = vmatprep.subr.bf16.mxu0 0
        %1310 = vmatpush1.bf16.msra.mxu0 0
        %1311 = vmatprep.subr.bf16.mxu0 0
        %1312 = vmatpush1.bf16.msra.mxu0 0
        %1313 = vmatprep.mubr.bf16.mxu0 0
        %1314 = vmatmul.mubr.bf16.gmra.mrb[0].mxu0 %v1279
        %v1315 = vpop.f32.mrb[0].mxu0
        %v1316 = vadd.f32 0.0, %v1315
        %v1317 = vpop.f32.mrb[0].mxu0
        %v1318 = vpop.f32.mrb[0].mxu0
        %v1319 = vadd.f32 0.0, %v1318
        %v1320 = vpop.f32.mrb[0].mxu0
        %1321 = vdwg.mxu0
        %v1323 = vsel %vm909, %v1189, 0
        %1325 = vmatprep.subr.bf16.mxu0 0
        %1326 = vmatpush1.bf16.msra.mxu0 %v906
        %1327 = vmatprep.subr.bf16.mxu0 0
        %1328 = vmatpush1.bf16.msra.mxu0 0
        %1329 = vmatprep.subr.bf16.mxu0 0
        %1330 = vmatpush1.bf16.msra.mxu0 0
        %1331 = vmatprep.subr.bf16.mxu0 0
        %1332 = vmatpush1.bf16.msra.mxu0 0
        %1333 = vmatprep.subr.bf16.mxu0 0
        %1334 = vmatpush1.bf16.msra.mxu0 0
        %1335 = vmatprep.subr.bf16.mxu0 0
        %1336 = vmatpush1.bf16.msra.mxu0 0
        %1337 = vmatprep.subr.bf16.mxu0 0
        %1338 = vmatpush1.bf16.msra.mxu0 0
        %1339 = vmatprep.subr.bf16.mxu0 0
        %1340 = vmatpush1.bf16.msra.mxu0 0
        %1341 = vmatprep.subr.bf16.mxu0 0
        %1342 = vmatpush1.bf16.msra.mxu0 0
        %1343 = vmatprep.subr.bf16.mxu0 0
        %1344 = vmatpush1.bf16.msra.mxu0 0
        %1345 = vmatprep.subr.bf16.mxu0 0
        %1346 = vmatpush1.bf16.msra.mxu0 0
        %1347 = vmatprep.subr.bf16.mxu0 0
        %1348 = vmatpush1.bf16.msra.mxu0 0
        %1349 = vmatprep.subr.bf16.mxu0 0
        %1350 = vmatpush1.bf16.msra.mxu0 0
        %1351 = vmatprep.subr.bf16.mxu0 0
        %1352 = vmatpush1.bf16.msra.mxu0 0
        %1353 = vmatprep.subr.bf16.mxu0 0
        %1354 = vmatpush1.bf16.msra.mxu0 0
        %1355 = vmatprep.subr.bf16.mxu0 0
        %1356 = vmatpush1.bf16.msra.mxu0 0
        %1357 = vmatprep.mubr.bf16.mxu0 0
        %1358 = vmatmul.mubr.bf16.gmra.mrb[0].mxu0 %v1323
        %v1359 = vpop.f32.mrb[0].mxu0
        %v1360 = vadd.f32 0.0, %v1359
        %v1361 = vpop.f32.mrb[0].mxu0
        %v1362 = vpop.f32.mrb[0].mxu0
        %v1363 = vadd.f32 0.0, %v1362
        %v1364 = vpop.f32.mrb[0].mxu0
        %1365 = vdwg.mxu0
        %s1366 = scalar_lea.vmem [#allocation10], 16
        %v1367 = vld [vmem:[%s1366] sm:$0xff]
        %v1368 = vld [vmem:[%s1366 + $0x8] sm:$0xff]
        %1370 = vrot.lane.b32.xlu0 %v895, 112
        %v1371 = vpop.permute.xlu0 %1370
        %1373 = vrot.lane.b32.xlu0 %v899, 112
        %v1374 = vpop.permute.xlu0 %1373
        %v1376 = vsel %vm909, %v1371, 0
        %v1379 = vsel %vm909, %v1374, 0
        %1381 = vmatprep.subr.bf16.mxu0 0
        %1382 = vmatpush1.bf16.xpose.msra.mxu0 %v1379
        %1383 = vmatprep.subr.bf16.mxu0 0
        %1384 = vmatpush1.bf16.xpose.msra.mxu0 0
        %1385 = vmatprep.subr.bf16.mxu0 0
        %1386 = vmatpush1.bf16.xpose.msra.mxu0 0
        %1387 = vmatprep.subr.bf16.mxu0 0
        %1388 = vmatpush1.bf16.xpose.msra.mxu0 0
        %1389 = vmatprep.subr.bf16.mxu0 0
        %1390 = vmatpush1.bf16.xpose.msra.mxu0 0
        %1391 = vmatprep.subr.bf16.mxu0 0
        %1392 = vmatpush1.bf16.xpose.msra.mxu0 0
        %1393 = vmatprep.subr.bf16.mxu0 0
        %1394 = vmatpush1.bf16.xpose.msra.mxu0 0
        %1395 = vmatprep.subr.bf16.mxu0 0
        %1396 = vmatpush1.bf16.xpose.msra.mxu0 0
        %1397 = vmatprep.subr.bf16.mxu0 0
        %1398 = vmatpush1.bf16.xpose.msra.mxu0 0
        %1399 = vmatprep.subr.bf16.mxu0 0
        %1400 = vmatpush1.bf16.xpose.msra.mxu0 0
        %1401 = vmatprep.subr.bf16.mxu0 0
        %1402 = vmatpush1.bf16.xpose.msra.mxu0 0
        %1403 = vmatprep.subr.bf16.mxu0 0
        %1404 = vmatpush1.bf16.xpose.msra.mxu0 0
        %1405 = vmatprep.subr.bf16.mxu0 0
        %1406 = vmatpush1.bf16.xpose.msra.mxu0 0
        %1407 = vmatprep.subr.bf16.mxu0 0
        %1408 = vmatpush1.bf16.xpose.msra.mxu0 0
        %1409 = vmatprep.subr.bf16.mxu0 0
        %1410 = vmatpush1.bf16.xpose.msra.mxu0 0
        %1411 = vmatprep.subr.bf16.mxu0 0
        %1412 = vmatpush1.bf16.xpose.msra.mxu0 0
        %1413 = vmatprep.mubr.bf16.mxu0 0
        %1414 = vmatmul.mubr.bf16.gmra.mrb[0].mxu0 %v1376
        %v1415 = vpop.f32.mrb[0].mxu0
        %v1416 = vadd.f32 %v1367, %v1415
        %v1417 = vpop.f32.mrb[0].mxu0
        %v1418 = vpop.f32.mrb[0].mxu0
        %v1419 = vadd.f32 %v1368, %v1418
        %v1420 = vpop.f32.mrb[0].mxu0
        %1421 = vdwg.mxu0
        %1423 = vrot.lane.b32.xlu0 %v896, 112
        %v1424 = vpop.permute.xlu0 %1423
        %1426 = vrot.lane.b32.xlu0 %v900, 112
        %v1427 = vpop.permute.xlu0 %1426
        %v1429 = vsel %vm909, %v1424, 0
        %v1432 = vsel %vm909, %v1427, 0
        %1434 = vmatprep.subr.bf16.mxu0 0
        %1435 = vmatpush1.bf16.xpose.msra.mxu0 %v1432
        %1436 = vmatprep.subr.bf16.mxu0 0
        %1437 = vmatpush1.bf16.xpose.msra.mxu0 0
        %1438 = vmatprep.subr.bf16.mxu0 0
        %1439 = vmatpush1.bf16.xpose.msra.mxu0 0
        %1440 = vmatprep.subr.bf16.mxu0 0
        %1441 = vmatpush1.bf16.xpose.msra.mxu0 0
        %1442 = vmatprep.subr.bf16.mxu0 0
        %1443 = vmatpush1.bf16.xpose.msra.mxu0 0
        %1444 = vmatprep.subr.bf16.mxu0 0
        %1445 = vmatpush1.bf16.xpose.msra.mxu0 0
        %1446 = vmatprep.subr.bf16.mxu0 0
        %1447 = vmatpush1.bf16.xpose.msra.mxu0 0
        %1448 = vmatprep.subr.bf16.mxu0 0
        %1449 = vmatpush1.bf16.xpose.msra.mxu0 0
        %1450 = vmatprep.subr.bf16.mxu0 0
        %1451 = vmatpush1.bf16.xpose.msra.mxu0 0
        %1452 = vmatprep.subr.bf16.mxu0 0
        %1453 = vmatpush1.bf16.xpose.msra.mxu0 0
        %1454 = vmatprep.subr.bf16.mxu0 0
        %1455 = vmatpush1.bf16.xpose.msra.mxu0 0
        %1456 = vmatprep.subr.bf16.mxu0 0
        %1457 = vmatpush1.bf16.xpose.msra.mxu0 0
        %1458 = vmatprep.subr.bf16.mxu0 0
        %1459 = vmatpush1.bf16.xpose.msra.mxu0 0
        %1460 = vmatprep.subr.bf16.mxu0 0
        %1461 = vmatpush1.bf16.xpose.msra.mxu0 0
        %1462 = vmatprep.subr.bf16.mxu0 0
        %1463 = vmatpush1.bf16.xpose.msra.mxu0 0
        %1464 = vmatprep.subr.bf16.mxu0 0
        %1465 = vmatpush1.bf16.xpose.msra.mxu0 0
        %1466 = vmatprep.mubr.bf16.mxu0 0
        %1467 = vmatmul.mubr.bf16.gmra.mrb[0].mxu0 %v1429
        %v1468 = vpop.f32.mrb[0].mxu0
        %v1469 = vadd.f32 %v1367, %v1468
        %v1470 = vpop.f32.mrb[0].mxu0
        %v1471 = vpop.f32.mrb[0].mxu0
        %v1472 = vadd.f32 %v1368, %v1471
        %v1473 = vpop.f32.mrb[0].mxu0
        %1474 = vdwg.mxu0
        %1476 = vrot.lane.b32.xlu0 %v897, 112
        %v1477 = vpop.permute.xlu0 %1476
        %1479 = vrot.lane.b32.xlu0 %v901, 112
        %v1480 = vpop.permute.xlu0 %1479
        %v1482 = vsel %vm909, %v1477, 0
        %v1485 = vsel %vm909, %v1480, 0
        %1487 = vmatprep.subr.bf16.mxu0 0
        %1488 = vmatpush1.bf16.xpose.msra.mxu0 %v1485
        %1489 = vmatprep.subr.bf16.mxu0 0
        %1490 = vmatpush1.bf16.xpose.msra.mxu0 0
        %1491 = vmatprep.subr.bf16.mxu0 0
        %1492 = vmatpush1.bf16.xpose.msra.mxu0 0
        %1493 = vmatprep.subr.bf16.mxu0 0
        %1494 = vmatpush1.bf16.xpose.msra.mxu0 0
        %1495 = vmatprep.subr.bf16.mxu0 0
        %1496 = vmatpush1.bf16.xpose.msra.mxu0 0
        %1497 = vmatprep.subr.bf16.mxu0 0
        %1498 = vmatpush1.bf16.xpose.msra.mxu0 0
        %1499 = vmatprep.subr.bf16.mxu0 0
        %1500 = vmatpush1.bf16.xpose.msra.mxu0 0
        %1501 = vmatprep.subr.bf16.mxu0 0
        %1502 = vmatpush1.bf16.xpose.msra.mxu0 0
        %1503 = vmatprep.subr.bf16.mxu0 0
        %1504 = vmatpush1.bf16.xpose.msra.mxu0 0
        %1505 = vmatprep.subr.bf16.mxu0 0
        %1506 = vmatpush1.bf16.xpose.msra.mxu0 0
        %1507 = vmatprep.subr.bf16.mxu0 0
        %1508 = vmatpush1.bf16.xpose.msra.mxu0 0
        %1509 = vmatprep.subr.bf16.mxu0 0
        %1510 = vmatpush1.bf16.xpose.msra.mxu0 0
        %1511 = vmatprep.subr.bf16.mxu0 0
        %1512 = vmatpush1.bf16.xpose.msra.mxu0 0
        %1513 = vmatprep.subr.bf16.mxu0 0
        %1514 = vmatpush1.bf16.xpose.msra.mxu0 0
        %1515 = vmatprep.subr.bf16.mxu0 0
        %1516 = vmatpush1.bf16.xpose.msra.mxu0 0
        %1517 = vmatprep.subr.bf16.mxu0 0
        %1518 = vmatpush1.bf16.xpose.msra.mxu0 0
        %1519 = vmatprep.mubr.bf16.mxu0 0
        %1520 = vmatmul.mubr.bf16.gmra.mrb[0].mxu0 %v1482
        %v1521 = vpop.f32.mrb[0].mxu0
        %v1522 = vadd.f32 %v1367, %v1521
        %v1523 = vpop.f32.mrb[0].mxu0
        %v1524 = vpop.f32.mrb[0].mxu0
        %v1525 = vadd.f32 %v1368, %v1524
        %v1526 = vpop.f32.mrb[0].mxu0
        %1527 = vdwg.mxu0
        %1529 = vrot.lane.b32.xlu0 %v898, 112
        %v1530 = vpop.permute.xlu0 %1529
        %1532 = vrot.lane.b32.xlu0 %v902, 112
        %v1533 = vpop.permute.xlu0 %1532
        %v1535 = vsel %vm909, %v1530, 0
        %v1538 = vsel %vm909, %v1533, 0
        %1540 = vmatprep.subr.bf16.mxu0 0
        %1541 = vmatpush1.bf16.xpose.msra.mxu0 %v1538
        %1542 = vmatprep.subr.bf16.mxu0 0
        %1543 = vmatpush1.bf16.xpose.msra.mxu0 0
        %1544 = vmatprep.subr.bf16.mxu0 0
        %1545 = vmatpush1.bf16.xpose.msra.mxu0 0
        %1546 = vmatprep.subr.bf16.mxu0 0
        %1547 = vmatpush1.bf16.xpose.msra.mxu0 0
        %1548 = vmatprep.subr.bf16.mxu0 0
        %1549 = vmatpush1.bf16.xpose.msra.mxu0 0
        %1550 = vmatprep.subr.bf16.mxu0 0
        %1551 = vmatpush1.bf16.xpose.msra.mxu0 0
        %1552 = vmatprep.subr.bf16.mxu0 0
        %1553 = vmatpush1.bf16.xpose.msra.mxu0 0
        %1554 = vmatprep.subr.bf16.mxu0 0
        %1555 = vmatpush1.bf16.xpose.msra.mxu0 0
        %1556 = vmatprep.subr.bf16.mxu0 0
        %1557 = vmatpush1.bf16.xpose.msra.mxu0 0
        %1558 = vmatprep.subr.bf16.mxu0 0
        %1559 = vmatpush1.bf16.xpose.msra.mxu0 0
        %1560 = vmatprep.subr.bf16.mxu0 0
        %1561 = vmatpush1.bf16.xpose.msra.mxu0 0
        %1562 = vmatprep.subr.bf16.mxu0 0
        %1563 = vmatpush1.bf16.xpose.msra.mxu0 0
        %1564 = vmatprep.subr.bf16.mxu0 0
        %1565 = vmatpush1.bf16.xpose.msra.mxu0 0
        %1566 = vmatprep.subr.bf16.mxu0 0
        %1567 = vmatpush1.bf16.xpose.msra.mxu0 0
        %1568 = vmatprep.subr.bf16.mxu0 0
        %1569 = vmatpush1.bf16.xpose.msra.mxu0 0
        %1570 = vmatprep.subr.bf16.mxu0 0
        %1571 = vmatpush1.bf16.xpose.msra.mxu0 0
        %1572 = vmatprep.mubr.bf16.mxu0 0
        %1573 = vmatmul.mubr.bf16.gmra.mrb[0].mxu0 %v1535
        %v1574 = vpop.f32.mrb[0].mxu0
        %v1575 = vadd.f32 %v1367, %v1574
        %v1576 = vpop.f32.mrb[0].mxu0
        %v1577 = vpop.f32.mrb[0].mxu0
        %v1578 = vadd.f32 %v1368, %v1577
        %v1579 = vpop.f32.mrb[0].mxu0
        %1580 = vdwg.mxu0
        %v1581 = vsel %vm909, %v1416, -inf
        %1582 = vmax.xlane.f32.xlu0 %v1581
        %v1583 = vpop.xlane.xlu0 %1582
        %v1584 = vsel %vm909, %v1419, -inf
        %1585 = vmax.xlane.f32.xlu0 %v1584
        %v1586 = vpop.xlane.xlu0 %1585
        %v1587 = vsel %vm909, %v1469, -inf
        %1588 = vmax.xlane.f32.xlu0 %v1587
        %v1589 = vpop.xlane.xlu0 %1588
        %v1590 = vsel %vm909, %v1472, -inf
        %1591 = vmax.xlane.f32.xlu0 %v1590
        %v1592 = vpop.xlane.xlu0 %1591
        %v1593 = vsel %vm909, %v1522, -inf
        %1594 = vmax.xlane.f32.xlu0 %v1593
        %v1595 = vpop.xlane.xlu0 %1594
        %v1596 = vsel %vm909, %v1525, -inf
        %1597 = vmax.xlane.f32.xlu0 %v1596
        %v1598 = vpop.xlane.xlu0 %1597
        %v1599 = vsel %vm909, %v1575, -inf
        %1600 = vmax.xlane.f32.xlu0 %v1599
        %v1601 = vpop.xlane.xlu0 %1600
        %v1602 = vsel %vm909, %v1578, -inf
        %1603 = vmax.xlane.f32.xlu0 %v1602
        %v1604 = vpop.xlane.xlu0 %1603
        %v1605 = vsub.f32 %v1416, %v1583
        %v1606 = vsub.f32 %v1419, %v1586
        %v1607 = vsub.f32 %v1469, %v1589
        %v1608 = vsub.f32 %v1472, %v1592
        %v1609 = vsub.f32 %v1522, %v1595
        %v1610 = vsub.f32 %v1525, %v1598
        %v1611 = vsub.f32 %v1575, %v1601
        %v1612 = vsub.f32 %v1578, %v1604
        %v1613 = vmul.f32 %v1605, 1.442695
        %v1614 = vpow.pop %v1613
        %v1615 = vmul.f32 %v1606, 1.442695
        %v1616 = vpow.pop %v1615
        %v1617 = vmul.f32 %v1607, 1.442695
        %v1618 = vpow.pop %v1617
        %v1619 = vmul.f32 %v1608, 1.442695
        %v1620 = vpow.pop %v1619
        %v1621 = vmul.f32 %v1609, 1.442695
        %v1622 = vpow.pop %v1621
        %v1623 = vmul.f32 %v1610, 1.442695
        %v1624 = vpow.pop %v1623
        %v1625 = vmul.f32 %v1611, 1.442695
        %v1626 = vpow.pop %v1625
        %v1627 = vmul.f32 %v1612, 1.442695
        %v1628 = vpow.pop %v1627
        %v1629 = vsel %vm909, %v1614, 0.0
        %1630 = vadd.xlane.f32.xlu0 %v1629
        %v1631 = vpop.xlane.xlu0 %1630
        %v1632 = vsel %vm909, %v1616, 0.0
        %1633 = vadd.xlane.f32.xlu0 %v1632
        %v1634 = vpop.xlane.xlu0 %1633
        %v1635 = vsel %vm909, %v1618, 0.0
        %1636 = vadd.xlane.f32.xlu0 %v1635
        %v1637 = vpop.xlane.xlu0 %1636
        %v1638 = vsel %vm909, %v1620, 0.0
        %1639 = vadd.xlane.f32.xlu0 %v1638
        %v1640 = vpop.xlane.xlu0 %1639
        %v1641 = vsel %vm909, %v1622, 0.0
        %1642 = vadd.xlane.f32.xlu0 %v1641
        %v1643 = vpop.xlane.xlu0 %1642
        %v1644 = vsel %vm909, %v1624, 0.0
        %1645 = vadd.xlane.f32.xlu0 %v1644
        %v1646 = vpop.xlane.xlu0 %1645
        %v1647 = vsel %vm909, %v1626, 0.0
        %1648 = vadd.xlane.f32.xlu0 %v1647
        %v1649 = vpop.xlane.xlu0 %1648
        %v1650 = vsel %vm909, %v1628, 0.0
        %1651 = vadd.xlane.f32.xlu0 %v1650
        %v1652 = vpop.xlane.xlu0 %1651
        %v1653 = vrcp.pop %v1631
        %v1654 = vrcp.pop %v1634
        %v1655 = vrcp.pop %v1637
        %v1656 = vrcp.pop %v1640
        %v1657 = vrcp.pop %v1643
        %v1658 = vrcp.pop %v1646
        %v1659 = vrcp.pop %v1649
        %v1660 = vrcp.pop %v1652
        %v1661 = vmul.f32 %v1614, %v1653
        %v1662 = vmul.f32 %v1616, %v1654
        %v1663 = vmul.f32 %v1618, %v1655
        %v1664 = vmul.f32 %v1620, %v1656
        %v1665 = vmul.f32 %v1622, %v1657
        %v1666 = vmul.f32 %v1624, %v1658
        %v1667 = vmul.f32 %v1626, %v1659
        %v1668 = vmul.f32 %v1628, %v1660
        %v1669 = vpack.c.bf16 %v1662, %v1661
        %v1670 = vpack.c.bf16 %v1664, %v1663
        %v1671 = vpack.c.bf16 %v1666, %v1665
        %v1672 = vpack.c.bf16 %v1668, %v1667
        %1674 = vrot.lane.b32.xlu0 %v903, 112
        %v1675 = vpop.permute.xlu0 %1674
        %v1678 = vsel %vm909, %v1669, 0
        %1680 = vmatprep.subr.bf16.mxu0 0
        %1681 = vmatpush1.bf16.msra.mxu0 %v1675
        %1682 = vmatprep.subr.bf16.mxu0 0
        %1683 = vmatpush1.bf16.msra.mxu0 0
        %1684 = vmatprep.subr.bf16.mxu0 0
        %1685 = vmatpush1.bf16.msra.mxu0 0
        %1686 = vmatprep.subr.bf16.mxu0 0
        %1687 = vmatpush1.bf16.msra.mxu0 0
        %1688 = vmatprep.subr.bf16.mxu0 0
        %1689 = vmatpush1.bf16.msra.mxu0 0
        %1690 = vmatprep.subr.bf16.mxu0 0
        %1691 = vmatpush1.bf16.msra.mxu0 0
        %1692 = vmatprep.subr.bf16.mxu0 0
        %1693 = vmatpush1.bf16.msra.mxu0 0
        %1694 = vmatprep.subr.bf16.mxu0 0
        %1695 = vmatpush1.bf16.msra.mxu0 0
        %1696 = vmatprep.subr.bf16.mxu0 0
        %1697 = vmatpush1.bf16.msra.mxu0 0
        %1698 = vmatprep.subr.bf16.mxu0 0
        %1699 = vmatpush1.bf16.msra.mxu0 0
        %1700 = vmatprep.subr.bf16.mxu0 0
        %1701 = vmatpush1.bf16.msra.mxu0 0
        %1702 = vmatprep.subr.bf16.mxu0 0
        %1703 = vmatpush1.bf16.msra.mxu0 0
        %1704 = vmatprep.subr.bf16.mxu0 0
        %1705 = vmatpush1.bf16.msra.mxu0 0
        %1706 = vmatprep.subr.bf16.mxu0 0
        %1707 = vmatpush1.bf16.msra.mxu0 0
        %1708 = vmatprep.subr.bf16.mxu0 0
        %1709 = vmatpush1.bf16.msra.mxu0 0
        %1710 = vmatprep.subr.bf16.mxu0 0
        %1711 = vmatpush1.bf16.msra.mxu0 0
        %1712 = vmatprep.mubr.bf16.mxu0 0
        %1713 = vmatmul.mubr.bf16.gmra.mrb[0].mxu0 %v1678
        %v1714 = vpop.f32.mrb[0].mxu0
        %v1715 = vadd.f32 0.0, %v1714
        %v1716 = vpop.f32.mrb[0].mxu0
        %v1717 = vpop.f32.mrb[0].mxu0
        %v1718 = vadd.f32 0.0, %v1717
        %v1719 = vpop.f32.mrb[0].mxu0
        %1720 = vdwg.mxu0
        %1722 = vrot.lane.b32.xlu0 %v904, 112
        %v1723 = vpop.permute.xlu0 %1722
        %v1726 = vsel %vm909, %v1670, 0
        %1728 = vmatprep.subr.bf16.mxu0 0
        %1729 = vmatpush1.bf16.msra.mxu0 %v1723
        %1730 = vmatprep.subr.bf16.mxu0 0
        %1731 = vmatpush1.bf16.msra.mxu0 0
        %1732 = vmatprep.subr.bf16.mxu0 0
        %1733 = vmatpush1.bf16.msra.mxu0 0
        %1734 = vmatprep.subr.bf16.mxu0 0
        %1735 = vmatpush1.bf16.msra.mxu0 0
        %1736 = vmatprep.subr.bf16.mxu0 0
        %1737 = vmatpush1.bf16.msra.mxu0 0
        %1738 = vmatprep.subr.bf16.mxu0 0
        %1739 = vmatpush1.bf16.msra.mxu0 0
        %1740 = vmatprep.subr.bf16.mxu0 0
        %1741 = vmatpush1.bf16.msra.mxu0 0
        %1742 = vmatprep.subr.bf16.mxu0 0
        %1743 = vmatpush1.bf16.msra.mxu0 0
        %1744 = vmatprep.subr.bf16.mxu0 0
        %1745 = vmatpush1.bf16.msra.mxu0 0
        %1746 = vmatprep.subr.bf16.mxu0 0
        %1747 = vmatpush1.bf16.msra.mxu0 0
        %1748 = vmatprep.subr.bf16.mxu0 0
        %1749 = vmatpush1.bf16.msra.mxu0 0
        %1750 = vmatprep.subr.bf16.mxu0 0
        %1751 = vmatpush1.bf16.msra.mxu0 0
        %1752 = vmatprep.subr.bf16.mxu0 0
        %1753 = vmatpush1.bf16.msra.mxu0 0
        %1754 = vmatprep.subr.bf16.mxu0 0
        %1755 = vmatpush1.bf16.msra.mxu0 0
        %1756 = vmatprep.subr.bf16.mxu0 0
        %1757 = vmatpush1.bf16.msra.mxu0 0
        %1758 = vmatprep.subr.bf16.mxu0 0
        %1759 = vmatpush1.bf16.msra.mxu0 0
        %1760 = vmatprep.mubr.bf16.mxu0 0
        %1761 = vmatmul.mubr.bf16.gmra.mrb[0].mxu0 %v1726
        %v1762 = vpop.f32.mrb[0].mxu0
        %v1763 = vadd.f32 0.0, %v1762
        %v1764 = vpop.f32.mrb[0].mxu0
        %v1765 = vpop.f32.mrb[0].mxu0
        %v1766 = vadd.f32 0.0, %v1765
        %v1767 = vpop.f32.mrb[0].mxu0
        %1768 = vdwg.mxu0
        %1770 = vrot.lane.b32.xlu0 %v905, 112
        %v1771 = vpop.permute.xlu0 %1770
        %v1774 = vsel %vm909, %v1671, 0
        %1776 = vmatprep.subr.bf16.mxu0 0
        %1777 = vmatpush1.bf16.msra.mxu0 %v1771
        %1778 = vmatprep.subr.bf16.mxu0 0
        %1779 = vmatpush1.bf16.msra.mxu0 0
        %1780 = vmatprep.subr.bf16.mxu0 0
        %1781 = vmatpush1.bf16.msra.mxu0 0
        %1782 = vmatprep.subr.bf16.mxu0 0
        %1783 = vmatpush1.bf16.msra.mxu0 0
        %1784 = vmatprep.subr.bf16.mxu0 0
        %1785 = vmatpush1.bf16.msra.mxu0 0
        %1786 = vmatprep.subr.bf16.mxu0 0
        %1787 = vmatpush1.bf16.msra.mxu0 0
        %1788 = vmatprep.subr.bf16.mxu0 0
        %1789 = vmatpush1.bf16.msra.mxu0 0
        %1790 = vmatprep.subr.bf16.mxu0 0
        %1791 = vmatpush1.bf16.msra.mxu0 0
        %1792 = vmatprep.subr.bf16.mxu0 0
        %1793 = vmatpush1.bf16.msra.mxu0 0
        %1794 = vmatprep.subr.bf16.mxu0 0
        %1795 = vmatpush1.bf16.msra.mxu0 0
        %1796 = vmatprep.subr.bf16.mxu0 0
        %1797 = vmatpush1.bf16.msra.mxu0 0
        %1798 = vmatprep.subr.bf16.mxu0 0
        %1799 = vmatpush1.bf16.msra.mxu0 0
        %1800 = vmatprep.subr.bf16.mxu0 0
        %1801 = vmatpush1.bf16.msra.mxu0 0
        %1802 = vmatprep.subr.bf16.mxu0 0
        %1803 = vmatpush1.bf16.msra.mxu0 0
        %1804 = vmatprep.subr.bf16.mxu0 0
        %1805 = vmatpush1.bf16.msra.mxu0 0
        %1806 = vmatprep.subr.bf16.mxu0 0
        %1807 = vmatpush1.bf16.msra.mxu0 0
        %1808 = vmatprep.mubr.bf16.mxu0 0
        %1809 = vmatmul.mubr.bf16.gmra.mrb[0].mxu0 %v1774
        %v1810 = vpop.f32.mrb[0].mxu0
        %v1811 = vadd.f32 0.0, %v1810
        %v1812 = vpop.f32.mrb[0].mxu0
        %v1813 = vpop.f32.mrb[0].mxu0
        %v1814 = vadd.f32 0.0, %v1813
        %v1815 = vpop.f32.mrb[0].mxu0
        %1816 = vdwg.mxu0
        %1818 = vrot.lane.b32.xlu0 %v906, 112
        %v1819 = vpop.permute.xlu0 %1818
        %v1822 = vsel %vm909, %v1672, 0
        %1824 = vmatprep.subr.bf16.mxu0 0
        %1825 = vmatpush1.bf16.msra.mxu0 %v1819
        %1826 = vmatprep.subr.bf16.mxu0 0
        %1827 = vmatpush1.bf16.msra.mxu0 0
        %1828 = vmatprep.subr.bf16.mxu0 0
        %1829 = vmatpush1.bf16.msra.mxu0 0
        %1830 = vmatprep.subr.bf16.mxu0 0
        %1831 = vmatpush1.bf16.msra.mxu0 0
        %1832 = vmatprep.subr.bf16.mxu0 0
        %1833 = vmatpush1.bf16.msra.mxu0 0
        %1834 = vmatprep.subr.bf16.mxu0 0
        %1835 = vmatpush1.bf16.msra.mxu0 0
        %1836 = vmatprep.subr.bf16.mxu0 0
        %1837 = vmatpush1.bf16.msra.mxu0 0
        %1838 = vmatprep.subr.bf16.mxu0 0
        %1839 = vmatpush1.bf16.msra.mxu0 0
        %1840 = vmatprep.subr.bf16.mxu0 0
        %1841 = vmatpush1.bf16.msra.mxu0 0
        %1842 = vmatprep.subr.bf16.mxu0 0
        %1843 = vmatpush1.bf16.msra.mxu0 0
        %1844 = vmatprep.subr.bf16.mxu0 0
        %1845 = vmatpush1.bf16.msra.mxu0 0
        %1846 = vmatprep.subr.bf16.mxu0 0
        %1847 = vmatpush1.bf16.msra.mxu0 0
        %1848 = vmatprep.subr.bf16.mxu0 0
        %1849 = vmatpush1.bf16.msra.mxu0 0
        %1850 = vmatprep.subr.bf16.mxu0 0
        %1851 = vmatpush1.bf16.msra.mxu0 0
        %1852 = vmatprep.subr.bf16.mxu0 0
        %1853 = vmatpush1.bf16.msra.mxu0 0
        %1854 = vmatprep.subr.bf16.mxu0 0
        %1855 = vmatpush1.bf16.msra.mxu0 0
        %1856 = vmatprep.mubr.bf16.mxu0 0
        %1857 = vmatmul.mubr.bf16.gmra.mrb[0].mxu0 %v1822
        %v1858 = vpop.f32.mrb[0].mxu0
        %v1859 = vadd.f32 0.0, %v1858
        %v1860 = vpop.f32.mrb[0].mxu0
        %v1861 = vpop.f32.mrb[0].mxu0
        %v1862 = vadd.f32 0.0, %v1861
        %v1863 = vpop.f32.mrb[0].mxu0
        %1864 = vdwg.mxu0
        %s1865 = scalar_lea.vmem [#allocation10], 32
        %v1866 = vld [vmem:[%s1865] sm:$0xff]
        %v1867 = vld [vmem:[%s1865 + $0x8] sm:$0xff]
        %1868 = vrot.lane.b32.xlu0 %v895, 96
        %v1869 = vpop.permute.xlu0 %1868
        %1870 = vrot.lane.b32.xlu0 %v899, 96
        %v1871 = vpop.permute.xlu0 %1870
        %v1873 = vsel %vm909, %v1869, 0
        %v1876 = vsel %vm909, %v1871, 0
        %1878 = vmatprep.subr.bf16.mxu0 0
        %1879 = vmatpush1.bf16.xpose.msra.mxu0 %v1876
        %1880 = vmatprep.subr.bf16.mxu0 0
        %1881 = vmatpush1.bf16.xpose.msra.mxu0 0
        %1882 = vmatprep.subr.bf16.mxu0 0
        %1883 = vmatpush1.bf16.xpose.msra.mxu0 0
        %1884 = vmatprep.subr.bf16.mxu0 0
        %1885 = vmatpush1.bf16.xpose.msra.mxu0 0
        %1886 = vmatprep.subr.bf16.mxu0 0
        %1887 = vmatpush1.bf16.xpose.msra.mxu0 0
        %1888 = vmatprep.subr.bf16.mxu0 0
        %1889 = vmatpush1.bf16.xpose.msra.mxu0 0
        %1890 = vmatprep.subr.bf16.mxu0 0
        %1891 = vmatpush1.bf16.xpose.msra.mxu0 0
        %1892 = vmatprep.subr.bf16.mxu0 0
        %1893 = vmatpush1.bf16.xpose.msra.mxu0 0
        %1894 = vmatprep.subr.bf16.mxu0 0
        %1895 = vmatpush1.bf16.xpose.msra.mxu0 0
        %1896 = vmatprep.subr.bf16.mxu0 0
        %1897 = vmatpush1.bf16.xpose.msra.mxu0 0
        %1898 = vmatprep.subr.bf16.mxu0 0
        %1899 = vmatpush1.bf16.xpose.msra.mxu0 0
        %1900 = vmatprep.subr.bf16.mxu0 0
        %1901 = vmatpush1.bf16.xpose.msra.mxu0 0
        %1902 = vmatprep.subr.bf16.mxu0 0
        %1903 = vmatpush1.bf16.xpose.msra.mxu0 0
        %1904 = vmatprep.subr.bf16.mxu0 0
        %1905 = vmatpush1.bf16.xpose.msra.mxu0 0
        %1906 = vmatprep.subr.bf16.mxu0 0
        %1907 = vmatpush1.bf16.xpose.msra.mxu0 0
        %1908 = vmatprep.subr.bf16.mxu0 0
        %1909 = vmatpush1.bf16.xpose.msra.mxu0 0
        %1910 = vmatprep.mubr.bf16.mxu0 0
        %1911 = vmatmul.mubr.bf16.gmra.mrb[0].mxu0 %v1873
        %v1912 = vpop.f32.mrb[0].mxu0
        %v1913 = vadd.f32 %v1866, %v1912
        %v1914 = vpop.f32.mrb[0].mxu0
        %v1915 = vpop.f32.mrb[0].mxu0
        %v1916 = vadd.f32 %v1867, %v1915
        %v1917 = vpop.f32.mrb[0].mxu0
        %1918 = vdwg.mxu0
        %1919 = vrot.lane.b32.xlu0 %v896, 96
        %v1920 = vpop.permute.xlu0 %1919
        %1921 = vrot.lane.b32.xlu0 %v900, 96
        %v1922 = vpop.permute.xlu0 %1921
        %v1924 = vsel %vm909, %v1920, 0
        %v1927 = vsel %vm909, %v1922, 0
        %1929 = vmatprep.subr.bf16.mxu0 0
        %1930 = vmatpush1.bf16.xpose.msra.mxu0 %v1927
        %1931 = vmatprep.subr.bf16.mxu0 0
        %1932 = vmatpush1.bf16.xpose.msra.mxu0 0
        %1933 = vmatprep.subr.bf16.mxu0 0
        %1934 = vmatpush1.bf16.xpose.msra.mxu0 0
        %1935 = vmatprep.subr.bf16.mxu0 0
        %1936 = vmatpush1.bf16.xpose.msra.mxu0 0
        %1937 = vmatprep.subr.bf16.mxu0 0
        %1938 = vmatpush1.bf16.xpose.msra.mxu0 0
        %1939 = vmatprep.subr.bf16.mxu0 0
        %1940 = vmatpush1.bf16.xpose.msra.mxu0 0
        %1941 = vmatprep.subr.bf16.mxu0 0
        %1942 = vmatpush1.bf16.xpose.msra.mxu0 0
        %1943 = vmatprep.subr.bf16.mxu0 0
        %1944 = vmatpush1.bf16.xpose.msra.mxu0 0
        %1945 = vmatprep.subr.bf16.mxu0 0
        %1946 = vmatpush1.bf16.xpose.msra.mxu0 0
        %1947 = vmatprep.subr.bf16.mxu0 0
        %1948 = vmatpush1.bf16.xpose.msra.mxu0 0
        %1949 = vmatprep.subr.bf16.mxu0 0
        %1950 = vmatpush1.bf16.xpose.msra.mxu0 0
        %1951 = vmatprep.subr.bf16.mxu0 0
        %1952 = vmatpush1.bf16.xpose.msra.mxu0 0
        %1953 = vmatprep.subr.bf16.mxu0 0
        %1954 = vmatpush1.bf16.xpose.msra.mxu0 0
        %1955 = vmatprep.subr.bf16.mxu0 0
        %1956 = vmatpush1.bf16.xpose.msra.mxu0 0
        %1957 = vmatprep.subr.bf16.mxu0 0
        %1958 = vmatpush1.bf16.xpose.msra.mxu0 0
        %1959 = vmatprep.subr.bf16.mxu0 0
        %1960 = vmatpush1.bf16.xpose.msra.mxu0 0
        %1961 = vmatprep.mubr.bf16.mxu0 0
        %1962 = vmatmul.mubr.bf16.gmra.mrb[0].mxu0 %v1924
        %v1963 = vpop.f32.mrb[0].mxu0
        %v1964 = vadd.f32 %v1866, %v1963
        %v1965 = vpop.f32.mrb[0].mxu0
        %v1966 = vpop.f32.mrb[0].mxu0
        %v1967 = vadd.f32 %v1867, %v1966
        %v1968 = vpop.f32.mrb[0].mxu0
        %1969 = vdwg.mxu0
        %1970 = vrot.lane.b32.xlu0 %v897, 96
        %v1971 = vpop.permute.xlu0 %1970
        %1972 = vrot.lane.b32.xlu0 %v901, 96
        %v1973 = vpop.permute.xlu0 %1972
        %v1975 = vsel %vm909, %v1971, 0
        %v1978 = vsel %vm909, %v1973, 0
        %1980 = vmatprep.subr.bf16.mxu0 0
        %1981 = vmatpush1.bf16.xpose.msra.mxu0 %v1978
        %1982 = vmatprep.subr.bf16.mxu0 0
        %1983 = vmatpush1.bf16.xpose.msra.mxu0 0
        %1984 = vmatprep.subr.bf16.mxu0 0
        %1985 = vmatpush1.bf16.xpose.msra.mxu0 0
        %1986 = vmatprep.subr.bf16.mxu0 0
        %1987 = vmatpush1.bf16.xpose.msra.mxu0 0
        %1988 = vmatprep.subr.bf16.mxu0 0
        %1989 = vmatpush1.bf16.xpose.msra.mxu0 0
        %1990 = vmatprep.subr.bf16.mxu0 0
        %1991 = vmatpush1.bf16.xpose.msra.mxu0 0
        %1992 = vmatprep.subr.bf16.mxu0 0
        %1993 = vmatpush1.bf16.xpose.msra.mxu0 0
        %1994 = vmatprep.subr.bf16.mxu0 0
        %1995 = vmatpush1.bf16.xpose.msra.mxu0 0
        %1996 = vmatprep.subr.bf16.mxu0 0
        %1997 = vmatpush1.bf16.xpose.msra.mxu0 0
        %1998 = vmatprep.subr.bf16.mxu0 0
        %1999 = vmatpush1.bf16.xpose.msra.mxu0 0
        %2000 = vmatprep.subr.bf16.mxu0 0
        %2001 = vmatpush1.bf16.xpose.msra.mxu0 0
        %2002 = vmatprep.subr.bf16.mxu0 0
        %2003 = vmatpush1.bf16.xpose.msra.mxu0 0
        %2004 = vmatprep.subr.bf16.mxu0 0
        %2005 = vmatpush1.bf16.xpose.msra.mxu0 0
        %2006 = vmatprep.subr.bf16.mxu0 0
        %2007 = vmatpush1.bf16.xpose.msra.mxu0 0
        %2008 = vmatprep.subr.bf16.mxu0 0
        %2009 = vmatpush1.bf16.xpose.msra.mxu0 0
        %2010 = vmatprep.subr.bf16.mxu0 0
        %2011 = vmatpush1.bf16.xpose.msra.mxu0 0
        %2012 = vmatprep.mubr.bf16.mxu0 0
        %2013 = vmatmul.mubr.bf16.gmra.mrb[0].mxu0 %v1975
        %v2014 = vpop.f32.mrb[0].mxu0
        %v2015 = vadd.f32 %v1866, %v2014
        %v2016 = vpop.f32.mrb[0].mxu0
        %v2017 = vpop.f32.mrb[0].mxu0
        %v2018 = vadd.f32 %v1867, %v2017
        %v2019 = vpop.f32.mrb[0].mxu0
        %2020 = vdwg.mxu0
        %2021 = vrot.lane.b32.xlu0 %v898, 96
        %v2022 = vpop.permute.xlu0 %2021
        %2023 = vrot.lane.b32.xlu0 %v902, 96
        %v2024 = vpop.permute.xlu0 %2023
        %v2026 = vsel %vm909, %v2022, 0
        %v2029 = vsel %vm909, %v2024, 0
        %2031 = vmatprep.subr.bf16.mxu0 0
        %2032 = vmatpush1.bf16.xpose.msra.mxu0 %v2029
        %2033 = vmatprep.subr.bf16.mxu0 0
        %2034 = vmatpush1.bf16.xpose.msra.mxu0 0
        %2035 = vmatprep.subr.bf16.mxu0 0
        %2036 = vmatpush1.bf16.xpose.msra.mxu0 0
        %2037 = vmatprep.subr.bf16.mxu0 0
        %2038 = vmatpush1.bf16.xpose.msra.mxu0 0
        %2039 = vmatprep.subr.bf16.mxu0 0
        %2040 = vmatpush1.bf16.xpose.msra.mxu0 0
        %2041 = vmatprep.subr.bf16.mxu0 0
        %2042 = vmatpush1.bf16.xpose.msra.mxu0 0
        %2043 = vmatprep.subr.bf16.mxu0 0
        %2044 = vmatpush1.bf16.xpose.msra.mxu0 0
        %2045 = vmatprep.subr.bf16.mxu0 0
        %2046 = vmatpush1.bf16.xpose.msra.mxu0 0
        %2047 = vmatprep.subr.bf16.mxu0 0
        %2048 = vmatpush1.bf16.xpose.msra.mxu0 0
        %2049 = vmatprep.subr.bf16.mxu0 0
        %2050 = vmatpush1.bf16.xpose.msra.mxu0 0
        %2051 = vmatprep.subr.bf16.mxu0 0
        %2052 = vmatpush1.bf16.xpose.msra.mxu0 0
        %2053 = vmatprep.subr.bf16.mxu0 0
        %2054 = vmatpush1.bf16.xpose.msra.mxu0 0
        %2055 = vmatprep.subr.bf16.mxu0 0
        %2056 = vmatpush1.bf16.xpose.msra.mxu0 0
        %2057 = vmatprep.subr.bf16.mxu0 0
        %2058 = vmatpush1.bf16.xpose.msra.mxu0 0
        %2059 = vmatprep.subr.bf16.mxu0 0
        %2060 = vmatpush1.bf16.xpose.msra.mxu0 0
        %2061 = vmatprep.subr.bf16.mxu0 0
        %2062 = vmatpush1.bf16.xpose.msra.mxu0 0
        %2063 = vmatprep.mubr.bf16.mxu0 0
        %2064 = vmatmul.mubr.bf16.gmra.mrb[0].mxu0 %v2026
        %v2065 = vpop.f32.mrb[0].mxu0
        %v2066 = vadd.f32 %v1866, %v2065
        %v2067 = vpop.f32.mrb[0].mxu0
        %v2068 = vpop.f32.mrb[0].mxu0
        %v2069 = vadd.f32 %v1867, %v2068
        %v2070 = vpop.f32.mrb[0].mxu0
        %2071 = vdwg.mxu0
        %v2072 = vsel %vm909, %v1913, -inf
        %2073 = vmax.xlane.f32.xlu0 %v2072
        %v2074 = vpop.xlane.xlu0 %2073
        %v2075 = vsel %vm909, %v1916, -inf
        %2076 = vmax.xlane.f32.xlu0 %v2075
        %v2077 = vpop.xlane.xlu0 %2076
        %v2078 = vsel %vm909, %v1964, -inf
        %2079 = vmax.xlane.f32.xlu0 %v2078
        %v2080 = vpop.xlane.xlu0 %2079
        %v2081 = vsel %vm909, %v1967, -inf
        %2082 = vmax.xlane.f32.xlu0 %v2081
        %v2083 = vpop.xlane.xlu0 %2082
        %v2084 = vsel %vm909, %v2015, -inf
        %2085 = vmax.xlane.f32.xlu0 %v2084
        %v2086 = vpop.xlane.xlu0 %2085
        %v2087 = vsel %vm909, %v2018, -inf
        %2088 = vmax.xlane.f32.xlu0 %v2087
        %v2089 = vpop.xlane.xlu0 %2088
        %v2090 = vsel %vm909, %v2066, -inf
        %2091 = vmax.xlane.f32.xlu0 %v2090
        %v2092 = vpop.xlane.xlu0 %2091
        %v2093 = vsel %vm909, %v2069, -inf
        %2094 = vmax.xlane.f32.xlu0 %v2093
        %v2095 = vpop.xlane.xlu0 %2094
        %v2096 = vsub.f32 %v1913, %v2074
        %v2097 = vsub.f32 %v1916, %v2077
        %v2098 = vsub.f32 %v1964, %v2080
        %v2099 = vsub.f32 %v1967, %v2083
        %v2100 = vsub.f32 %v2015, %v2086
        %v2101 = vsub.f32 %v2018, %v2089
        %v2102 = vsub.f32 %v2066, %v2092
        %v2103 = vsub.f32 %v2069, %v2095
        %v2104 = vmul.f32 %v2096, 1.442695
        %v2105 = vpow.pop %v2104
        %v2106 = vmul.f32 %v2097, 1.442695
        %v2107 = vpow.pop %v2106
        %v2108 = vmul.f32 %v2098, 1.442695
        %v2109 = vpow.pop %v2108
        %v2110 = vmul.f32 %v2099, 1.442695
        %v2111 = vpow.pop %v2110
        %v2112 = vmul.f32 %v2100, 1.442695
        %v2113 = vpow.pop %v2112
        %v2114 = vmul.f32 %v2101, 1.442695
        %v2115 = vpow.pop %v2114
        %v2116 = vmul.f32 %v2102, 1.442695
        %v2117 = vpow.pop %v2116
        %v2118 = vmul.f32 %v2103, 1.442695
        %v2119 = vpow.pop %v2118
        %v2120 = vsel %vm909, %v2105, 0.0
        %2121 = vadd.xlane.f32.xlu0 %v2120
        %v2122 = vpop.xlane.xlu0 %2121
        %v2123 = vsel %vm909, %v2107, 0.0
        %2124 = vadd.xlane.f32.xlu0 %v2123
        %v2125 = vpop.xlane.xlu0 %2124
        %v2126 = vsel %vm909, %v2109, 0.0
        %2127 = vadd.xlane.f32.xlu0 %v2126
        %v2128 = vpop.xlane.xlu0 %2127
        %v2129 = vsel %vm909, %v2111, 0.0
        %2130 = vadd.xlane.f32.xlu0 %v2129
        %v2131 = vpop.xlane.xlu0 %2130
        %v2132 = vsel %vm909, %v2113, 0.0
        %2133 = vadd.xlane.f32.xlu0 %v2132
        %v2134 = vpop.xlane.xlu0 %2133
        %v2135 = vsel %vm909, %v2115, 0.0
        %2136 = vadd.xlane.f32.xlu0 %v2135
        %v2137 = vpop.xlane.xlu0 %2136
        %v2138 = vsel %vm909, %v2117, 0.0
        %2139 = vadd.xlane.f32.xlu0 %v2138
        %v2140 = vpop.xlane.xlu0 %2139
        %v2141 = vsel %vm909, %v2119, 0.0
        %2142 = vadd.xlane.f32.xlu0 %v2141
        %v2143 = vpop.xlane.xlu0 %2142
        %v2144 = vrcp.pop %v2122
        %v2145 = vrcp.pop %v2125
        %v2146 = vrcp.pop %v2128
        %v2147 = vrcp.pop %v2131
        %v2148 = vrcp.pop %v2134
        %v2149 = vrcp.pop %v2137
        %v2150 = vrcp.pop %v2140
        %v2151 = vrcp.pop %v2143
        %v2152 = vmul.f32 %v2105, %v2144
        %v2153 = vmul.f32 %v2107, %v2145
        %v2154 = vmul.f32 %v2109, %v2146
        %v2155 = vmul.f32 %v2111, %v2147
        %v2156 = vmul.f32 %v2113, %v2148
        %v2157 = vmul.f32 %v2115, %v2149
        %v2158 = vmul.f32 %v2117, %v2150
        %v2159 = vmul.f32 %v2119, %v2151
        %v2160 = vpack.c.bf16 %v2153, %v2152
        %v2161 = vpack.c.bf16 %v2155, %v2154
        %v2162 = vpack.c.bf16 %v2157, %v2156
        %v2163 = vpack.c.bf16 %v2159, %v2158
        %2164 = vrot.lane.b32.xlu0 %v903, 96
        %v2165 = vpop.permute.xlu0 %2164
        %v2168 = vsel %vm909, %v2160, 0
        %2170 = vmatprep.subr.bf16.mxu0 0
        %2171 = vmatpush1.bf16.msra.mxu0 %v2165
        %2172 = vmatprep.subr.bf16.mxu0 0
        %2173 = vmatpush1.bf16.msra.mxu0 0
        %2174 = vmatprep.subr.bf16.mxu0 0
        %2175 = vmatpush1.bf16.msra.mxu0 0
        %2176 = vmatprep.subr.bf16.mxu0 0
        %2177 = vmatpush1.bf16.msra.mxu0 0
        %2178 = vmatprep.subr.bf16.mxu0 0
        %2179 = vmatpush1.bf16.msra.mxu0 0
        %2180 = vmatprep.subr.bf16.mxu0 0
        %2181 = vmatpush1.bf16.msra.mxu0 0
        %2182 = vmatprep.subr.bf16.mxu0 0
        %2183 = vmatpush1.bf16.msra.mxu0 0
        %2184 = vmatprep.subr.bf16.mxu0 0
        %2185 = vmatpush1.bf16.msra.mxu0 0
        %2186 = vmatprep.subr.bf16.mxu0 0
        %2187 = vmatpush1.bf16.msra.mxu0 0
        %2188 = vmatprep.subr.bf16.mxu0 0
        %2189 = vmatpush1.bf16.msra.mxu0 0
        %2190 = vmatprep.subr.bf16.mxu0 0
        %2191 = vmatpush1.bf16.msra.mxu0 0
        %2192 = vmatprep.subr.bf16.mxu0 0
        %2193 = vmatpush1.bf16.msra.mxu0 0
        %2194 = vmatprep.subr.bf16.mxu0 0
        %2195 = vmatpush1.bf16.msra.mxu0 0
        %2196 = vmatprep.subr.bf16.mxu0 0
        %2197 = vmatpush1.bf16.msra.mxu0 0
        %2198 = vmatprep.subr.bf16.mxu0 0
        %2199 = vmatpush1.bf16.msra.mxu0 0
        %2200 = vmatprep.subr.bf16.mxu0 0
        %2201 = vmatpush1.bf16.msra.mxu0 0
        %2202 = vmatprep.mubr.bf16.mxu0 0
        %2203 = vmatmul.mubr.bf16.gmra.mrb[0].mxu0 %v2168
        %v2204 = vpop.f32.mrb[0].mxu0
        %v2205 = vadd.f32 0.0, %v2204
        %v2206 = vpop.f32.mrb[0].mxu0
        %v2207 = vpop.f32.mrb[0].mxu0
        %v2208 = vadd.f32 0.0, %v2207
        %v2209 = vpop.f32.mrb[0].mxu0
        %2210 = vdwg.mxu0
        %2211 = vrot.lane.b32.xlu0 %v904, 96
        %v2212 = vpop.permute.xlu0 %2211
        %v2215 = vsel %vm909, %v2161, 0
        %2217 = vmatprep.subr.bf16.mxu0 0
        %2218 = vmatpush1.bf16.msra.mxu0 %v2212
        %2219 = vmatprep.subr.bf16.mxu0 0
        %2220 = vmatpush1.bf16.msra.mxu0 0
        %2221 = vmatprep.subr.bf16.mxu0 0
        %2222 = vmatpush1.bf16.msra.mxu0 0
        %2223 = vmatprep.subr.bf16.mxu0 0
        %2224 = vmatpush1.bf16.msra.mxu0 0
        %2225 = vmatprep.subr.bf16.mxu0 0
        %2226 = vmatpush1.bf16.msra.mxu0 0
        %2227 = vmatprep.subr.bf16.mxu0 0
        %2228 = vmatpush1.bf16.msra.mxu0 0
        %2229 = vmatprep.subr.bf16.mxu0 0
        %2230 = vmatpush1.bf16.msra.mxu0 0
        %2231 = vmatprep.subr.bf16.mxu0 0
        %2232 = vmatpush1.bf16.msra.mxu0 0
        %2233 = vmatprep.subr.bf16.mxu0 0
        %2234 = vmatpush1.bf16.msra.mxu0 0
        %2235 = vmatprep.subr.bf16.mxu0 0
        %2236 = vmatpush1.bf16.msra.mxu0 0
        %2237 = vmatprep.subr.bf16.mxu0 0
        %2238 = vmatpush1.bf16.msra.mxu0 0
        %2239 = vmatprep.subr.bf16.mxu0 0
        %2240 = vmatpush1.bf16.msra.mxu0 0
        %2241 = vmatprep.subr.bf16.mxu0 0
        %2242 = vmatpush1.bf16.msra.mxu0 0
        %2243 = vmatprep.subr.bf16.mxu0 0
        %2244 = vmatpush1.bf16.msra.mxu0 0
        %2245 = vmatprep.subr.bf16.mxu0 0
        %2246 = vmatpush1.bf16.msra.mxu0 0
        %2247 = vmatprep.subr.bf16.mxu0 0
        %2248 = vmatpush1.bf16.msra.mxu0 0
        %2249 = vmatprep.mubr.bf16.mxu0 0
        %2250 = vmatmul.mubr.bf16.gmra.mrb[0].mxu0 %v2215
        %v2251 = vpop.f32.mrb[0].mxu0
        %v2252 = vadd.f32 0.0, %v2251
        %v2253 = vpop.f32.mrb[0].mxu0
        %v2254 = vpop.f32.mrb[0].mxu0
        %v2255 = vadd.f32 0.0, %v2254
        %v2256 = vpop.f32.mrb[0].mxu0
        %2257 = vdwg.mxu0
        %2258 = vrot.lane.b32.xlu0 %v905, 96
        %v2259 = vpop.permute.xlu0 %2258
        %v2262 = vsel %vm909, %v2162, 0
        %2264 = vmatprep.subr.bf16.mxu0 0
        %2265 = vmatpush1.bf16.msra.mxu0 %v2259
        %2266 = vmatprep.subr.bf16.mxu0 0
        %2267 = vmatpush1.bf16.msra.mxu0 0
        %2268 = vmatprep.subr.bf16.mxu0 0
        %2269 = vmatpush1.bf16.msra.mxu0 0
        %2270 = vmatprep.subr.bf16.mxu0 0
        %2271 = vmatpush1.bf16.msra.mxu0 0
        %2272 = vmatprep.subr.bf16.mxu0 0
        %2273 = vmatpush1.bf16.msra.mxu0 0
        %2274 = vmatprep.subr.bf16.mxu0 0
        %2275 = vmatpush1.bf16.msra.mxu0 0
        %2276 = vmatprep.subr.bf16.mxu0 0
        %2277 = vmatpush1.bf16.msra.mxu0 0
        %2278 = vmatprep.subr.bf16.mxu0 0
        %2279 = vmatpush1.bf16.msra.mxu0 0
        %2280 = vmatprep.subr.bf16.mxu0 0
        %2281 = vmatpush1.bf16.msra.mxu0 0
        %2282 = vmatprep.subr.bf16.mxu0 0
        %2283 = vmatpush1.bf16.msra.mxu0 0
        %2284 = vmatprep.subr.bf16.mxu0 0
        %2285 = vmatpush1.bf16.msra.mxu0 0
        %2286 = vmatprep.subr.bf16.mxu0 0
        %2287 = vmatpush1.bf16.msra.mxu0 0
        %2288 = vmatprep.subr.bf16.mxu0 0
        %2289 = vmatpush1.bf16.msra.mxu0 0
        %2290 = vmatprep.subr.bf16.mxu0 0
        %2291 = vmatpush1.bf16.msra.mxu0 0
        %2292 = vmatprep.subr.bf16.mxu0 0
        %2293 = vmatpush1.bf16.msra.mxu0 0
        %2294 = vmatprep.subr.bf16.mxu0 0
        %2295 = vmatpush1.bf16.msra.mxu0 0
        %2296 = vmatprep.mubr.bf16.mxu0 0
        %2297 = vmatmul.mubr.bf16.gmra.mrb[0].mxu0 %v2262
        %v2298 = vpop.f32.mrb[0].mxu0
        %v2299 = vadd.f32 0.0, %v2298
        %v2300 = vpop.f32.mrb[0].mxu0
        %v2301 = vpop.f32.mrb[0].mxu0
        %v2302 = vadd.f32 0.0, %v2301
        %v2303 = vpop.f32.mrb[0].mxu0
        %2304 = vdwg.mxu0
        %2305 = vrot.lane.b32.xlu0 %v906, 96
        %v2306 = vpop.permute.xlu0 %2305
        %v2309 = vsel %vm909, %v2163, 0
        %2311 = vmatprep.subr.bf16.mxu0 0
        %2312 = vmatpush1.bf16.msra.mxu0 %v2306
        %2313 = vmatprep.subr.bf16.mxu0 0
        %2314 = vmatpush1.bf16.msra.mxu0 0
        %2315 = vmatprep.subr.bf16.mxu0 0
        %2316 = vmatpush1.bf16.msra.mxu0 0
        %2317 = vmatprep.subr.bf16.mxu0 0
        %2318 = vmatpush1.bf16.msra.mxu0 0
        %2319 = vmatprep.subr.bf16.mxu0 0
        %2320 = vmatpush1.bf16.msra.mxu0 0
        %2321 = vmatprep.subr.bf16.mxu0 0
        %2322 = vmatpush1.bf16.msra.mxu0 0
        %2323 = vmatprep.subr.bf16.mxu0 0
        %2324 = vmatpush1.bf16.msra.mxu0 0
        %2325 = vmatprep.subr.bf16.mxu0 0
        %2326 = vmatpush1.bf16.msra.mxu0 0
        %2327 = vmatprep.subr.bf16.mxu0 0
        %2328 = vmatpush1.bf16.msra.mxu0 0
        %2329 = vmatprep.subr.bf16.mxu0 0
        %2330 = vmatpush1.bf16.msra.mxu0 0
        %2331 = vmatprep.subr.bf16.mxu0 0
        %2332 = vmatpush1.bf16.msra.mxu0 0
        %2333 = vmatprep.subr.bf16.mxu0 0
        %2334 = vmatpush1.bf16.msra.mxu0 0
        %2335 = vmatprep.subr.bf16.mxu0 0
        %2336 = vmatpush1.bf16.msra.mxu0 0
        %2337 = vmatprep.subr.bf16.mxu0 0
        %2338 = vmatpush1.bf16.msra.mxu0 0
        %2339 = vmatprep.subr.bf16.mxu0 0
        %2340 = vmatpush1.bf16.msra.mxu0 0
        %2341 = vmatprep.subr.bf16.mxu0 0
        %2342 = vmatpush1.bf16.msra.mxu0 0
        %2343 = vmatprep.mubr.bf16.mxu0 0
        %2344 = vmatmul.mubr.bf16.gmra.mrb[0].mxu0 %v2309
        %v2345 = vpop.f32.mrb[0].mxu0
        %v2346 = vadd.f32 0.0, %v2345
        %v2347 = vpop.f32.mrb[0].mxu0
        %v2348 = vpop.f32.mrb[0].mxu0
        %v2349 = vadd.f32 0.0, %v2348
        %v2350 = vpop.f32.mrb[0].mxu0
        %2351 = vdwg.mxu0
        %s2352 = scalar_lea.vmem [#allocation10], 48
        %v2353 = vld [vmem:[%s2352] sm:$0xff]
        %v2354 = vld [vmem:[%s2352 + $0x8] sm:$0xff]
        %2355 = vrot.lane.b32.xlu0 %v895, 80
        %v2356 = vpop.permute.xlu0 %2355
        %2357 = vrot.lane.b32.xlu0 %v899, 80
        %v2358 = vpop.permute.xlu0 %2357
        %v2360 = vsel %vm909, %v2356, 0
        %v2363 = vsel %vm909, %v2358, 0
        %2365 = vmatprep.subr.bf16.mxu0 0
        %2366 = vmatpush1.bf16.xpose.msra.mxu0 %v2363
        %2367 = vmatprep.subr.bf16.mxu0 0
        %2368 = vmatpush1.bf16.xpose.msra.mxu0 0
        %2369 = vmatprep.subr.bf16.mxu0 0
        %2370 = vmatpush1.bf16.xpose.msra.mxu0 0
        %2371 = vmatprep.subr.bf16.mxu0 0
        %2372 = vmatpush1.bf16.xpose.msra.mxu0 0
        %2373 = vmatprep.subr.bf16.mxu0 0
        %2374 = vmatpush1.bf16.xpose.msra.mxu0 0
        %2375 = vmatprep.subr.bf16.mxu0 0
        %2376 = vmatpush1.bf16.xpose.msra.mxu0 0
        %2377 = vmatprep.subr.bf16.mxu0 0
        %2378 = vmatpush1.bf16.xpose.msra.mxu0 0
        %2379 = vmatprep.subr.bf16.mxu0 0
        %2380 = vmatpush1.bf16.xpose.msra.mxu0 0
        %2381 = vmatprep.subr.bf16.mxu0 0
        %2382 = vmatpush1.bf16.xpose.msra.mxu0 0
        %2383 = vmatprep.subr.bf16.mxu0 0
        %2384 = vmatpush1.bf16.xpose.msra.mxu0 0
        %2385 = vmatprep.subr.bf16.mxu0 0
        %2386 = vmatpush1.bf16.xpose.msra.mxu0 0
        %2387 = vmatprep.subr.bf16.mxu0 0
        %2388 = vmatpush1.bf16.xpose.msra.mxu0 0
        %2389 = vmatprep.subr.bf16.mxu0 0
        %2390 = vmatpush1.bf16.xpose.msra.mxu0 0
        %2391 = vmatprep.subr.bf16.mxu0 0
        %2392 = vmatpush1.bf16.xpose.msra.mxu0 0
        %2393 = vmatprep.subr.bf16.mxu0 0
        %2394 = vmatpush1.bf16.xpose.msra.mxu0 0
        %2395 = vmatprep.subr.bf16.mxu0 0
        %2396 = vmatpush1.bf16.xpose.msra.mxu0 0
        %2397 = vmatprep.mubr.bf16.mxu0 0
        %2398 = vmatmul.mubr.bf16.gmra.mrb[0].mxu0 %v2360
        %v2399 = vpop.f32.mrb[0].mxu0
        %v2400 = vadd.f32 %v2353, %v2399
        %v2401 = vpop.f32.mrb[0].mxu0
        %v2402 = vpop.f32.mrb[0].mxu0
        %v2403 = vadd.f32 %v2354, %v2402
        %v2404 = vpop.f32.mrb[0].mxu0
        %2405 = vdwg.mxu0
        %2406 = vrot.lane.b32.xlu0 %v896, 80
        %v2407 = vpop.permute.xlu0 %2406
        %2408 = vrot.lane.b32.xlu0 %v900, 80
        %v2409 = vpop.permute.xlu0 %2408
        %v2411 = vsel %vm909, %v2407, 0
        %v2414 = vsel %vm909, %v2409, 0
        %2416 = vmatprep.subr.bf16.mxu0 0
        %2417 = vmatpush1.bf16.xpose.msra.mxu0 %v2414
        %2418 = vmatprep.subr.bf16.mxu0 0
        %2419 = vmatpush1.bf16.xpose.msra.mxu0 0
        %2420 = vmatprep.subr.bf16.mxu0 0
        %2421 = vmatpush1.bf16.xpose.msra.mxu0 0
        %2422 = vmatprep.subr.bf16.mxu0 0
        %2423 = vmatpush1.bf16.xpose.msra.mxu0 0
        %2424 = vmatprep.subr.bf16.mxu0 0
        %2425 = vmatpush1.bf16.xpose.msra.mxu0 0
        %2426 = vmatprep.subr.bf16.mxu0 0
        %2427 = vmatpush1.bf16.xpose.msra.mxu0 0
        %2428 = vmatprep.subr.bf16.mxu0 0
        %2429 = vmatpush1.bf16.xpose.msra.mxu0 0
        %2430 = vmatprep.subr.bf16.mxu0 0
        %2431 = vmatpush1.bf16.xpose.msra.mxu0 0
        %2432 = vmatprep.subr.bf16.mxu0 0
        %2433 = vmatpush1.bf16.xpose.msra.mxu0 0
        %2434 = vmatprep.subr.bf16.mxu0 0
        %2435 = vmatpush1.bf16.xpose.msra.mxu0 0
        %2436 = vmatprep.subr.bf16.mxu0 0
        %2437 = vmatpush1.bf16.xpose.msra.mxu0 0
        %2438 = vmatprep.subr.bf16.mxu0 0
        %2439 = vmatpush1.bf16.xpose.msra.mxu0 0
        %2440 = vmatprep.subr.bf16.mxu0 0
        %2441 = vmatpush1.bf16.xpose.msra.mxu0 0
        %2442 = vmatprep.subr.bf16.mxu0 0
        %2443 = vmatpush1.bf16.xpose.msra.mxu0 0
        %2444 = vmatprep.subr.bf16.mxu0 0
        %2445 = vmatpush1.bf16.xpose.msra.mxu0 0
        %2446 = vmatprep.subr.bf16.mxu0 0
        %2447 = vmatpush1.bf16.xpose.msra.mxu0 0
        %2448 = vmatprep.mubr.bf16.mxu0 0
        %2449 = vmatmul.mubr.bf16.gmra.mrb[0].mxu0 %v2411
        %v2450 = vpop.f32.mrb[0].mxu0
        %v2451 = vadd.f32 %v2353, %v2450
        %v2452 = vpop.f32.mrb[0].mxu0
        %v2453 = vpop.f32.mrb[0].mxu0
        %v2454 = vadd.f32 %v2354, %v2453
        %v2455 = vpop.f32.mrb[0].mxu0
        %2456 = vdwg.mxu0
        %2457 = vrot.lane.b32.xlu0 %v897, 80
        %v2458 = vpop.permute.xlu0 %2457
        %2459 = vrot.lane.b32.xlu0 %v901, 80
        %v2460 = vpop.permute.xlu0 %2459
        %v2462 = vsel %vm909, %v2458, 0
        %v2465 = vsel %vm909, %v2460, 0
        %2467 = vmatprep.subr.bf16.mxu0 0
        %2468 = vmatpush1.bf16.xpose.msra.mxu0 %v2465
        %2469 = vmatprep.subr.bf16.mxu0 0
        %2470 = vmatpush1.bf16.xpose.msra.mxu0 0
        %2471 = vmatprep.subr.bf16.mxu0 0
        %2472 = vmatpush1.bf16.xpose.msra.mxu0 0
        %2473 = vmatprep.subr.bf16.mxu0 0
        %2474 = vmatpush1.bf16.xpose.msra.mxu0 0
        %2475 = vmatprep.subr.bf16.mxu0 0
        %2476 = vmatpush1.bf16.xpose.msra.mxu0 0
        %2477 = vmatprep.subr.bf16.mxu0 0
        %2478 = vmatpush1.bf16.xpose.msra.mxu0 0
        %2479 = vmatprep.subr.bf16.mxu0 0
        %2480 = vmatpush1.bf16.xpose.msra.mxu0 0
        %2481 = vmatprep.subr.bf16.mxu0 0
        %2482 = vmatpush1.bf16.xpose.msra.mxu0 0
        %2483 = vmatprep.subr.bf16.mxu0 0
        %2484 = vmatpush1.bf16.xpose.msra.mxu0 0
        %2485 = vmatprep.subr.bf16.mxu0 0
        %2486 = vmatpush1.bf16.xpose.msra.mxu0 0
        %2487 = vmatprep.subr.bf16.mxu0 0
        %2488 = vmatpush1.bf16.xpose.msra.mxu0 0
        %2489 = vmatprep.subr.bf16.mxu0 0
        %2490 = vmatpush1.bf16.xpose.msra.mxu0 0
        %2491 = vmatprep.subr.bf16.mxu0 0
        %2492 = vmatpush1.bf16.xpose.msra.mxu0 0
        %2493 = vmatprep.subr.bf16.mxu0 0
        %2494 = vmatpush1.bf16.xpose.msra.mxu0 0
        %2495 = vmatprep.subr.bf16.mxu0 0
        %2496 = vmatpush1.bf16.xpose.msra.mxu0 0
        %2497 = vmatprep.subr.bf16.mxu0 0
        %2498 = vmatpush1.bf16.xpose.msra.mxu0 0
        %2499 = vmatprep.mubr.bf16.mxu0 0
        %2500 = vmatmul.mubr.bf16.gmra.mrb[0].mxu0 %v2462
        %v2501 = vpop.f32.mrb[0].mxu0
        %v2502 = vadd.f32 %v2353, %v2501
        %v2503 = vpop.f32.mrb[0].mxu0
        %v2504 = vpop.f32.mrb[0].mxu0
        %v2505 = vadd.f32 %v2354, %v2504
        %v2506 = vpop.f32.mrb[0].mxu0
        %2507 = vdwg.mxu0
        %2508 = vrot.lane.b32.xlu0 %v898, 80
        %v2509 = vpop.permute.xlu0 %2508
        %2510 = vrot.lane.b32.xlu0 %v902, 80
        %v2511 = vpop.permute.xlu0 %2510
        %v2513 = vsel %vm909, %v2509, 0
        %v2516 = vsel %vm909, %v2511, 0
        %2518 = vmatprep.subr.bf16.mxu0 0
        %2519 = vmatpush1.bf16.xpose.msra.mxu0 %v2516
        %2520 = vmatprep.subr.bf16.mxu0 0
        %2521 = vmatpush1.bf16.xpose.msra.mxu0 0
        %2522 = vmatprep.subr.bf16.mxu0 0
        %2523 = vmatpush1.bf16.xpose.msra.mxu0 0
        %2524 = vmatprep.subr.bf16.mxu0 0
        %2525 = vmatpush1.bf16.xpose.msra.mxu0 0
        %2526 = vmatprep.subr.bf16.mxu0 0
        %2527 = vmatpush1.bf16.xpose.msra.mxu0 0
        %2528 = vmatprep.subr.bf16.mxu0 0
        %2529 = vmatpush1.bf16.xpose.msra.mxu0 0
        %2530 = vmatprep.subr.bf16.mxu0 0
        %2531 = vmatpush1.bf16.xpose.msra.mxu0 0
        %2532 = vmatprep.subr.bf16.mxu0 0
        %2533 = vmatpush1.bf16.xpose.msra.mxu0 0
        %2534 = vmatprep.subr.bf16.mxu0 0
        %2535 = vmatpush1.bf16.xpose.msra.mxu0 0
        %2536 = vmatprep.subr.bf16.mxu0 0
        %2537 = vmatpush1.bf16.xpose.msra.mxu0 0
        %2538 = vmatprep.subr.bf16.mxu0 0
        %2539 = vmatpush1.bf16.xpose.msra.mxu0 0
        %2540 = vmatprep.subr.bf16.mxu0 0
        %2541 = vmatpush1.bf16.xpose.msra.mxu0 0
        %2542 = vmatprep.subr.bf16.mxu0 0
        %2543 = vmatpush1.bf16.xpose.msra.mxu0 0
        %2544 = vmatprep.subr.bf16.mxu0 0
        %2545 = vmatpush1.bf16.xpose.msra.mxu0 0
        %2546 = vmatprep.subr.bf16.mxu0 0
        %2547 = vmatpush1.bf16.xpose.msra.mxu0 0
        %2548 = vmatprep.subr.bf16.mxu0 0
        %2549 = vmatpush1.bf16.xpose.msra.mxu0 0
        %2550 = vmatprep.mubr.bf16.mxu0 0
        %2551 = vmatmul.mubr.bf16.gmra.mrb[0].mxu0 %v2513
        %v2552 = vpop.f32.mrb[0].mxu0
        %v2553 = vadd.f32 %v2353, %v2552
        %v2554 = vpop.f32.mrb[0].mxu0
        %v2555 = vpop.f32.mrb[0].mxu0
        %v2556 = vadd.f32 %v2354, %v2555
        %v2557 = vpop.f32.mrb[0].mxu0
        %2558 = vdwg.mxu0
        %v2559 = vsel %vm909, %v2400, -inf
        %2560 = vmax.xlane.f32.xlu0 %v2559
        %v2561 = vpop.xlane.xlu0 %2560
        %v2562 = vsel %vm909, %v2403, -inf
        %2563 = vmax.xlane.f32.xlu0 %v2562
        %v2564 = vpop.xlane.xlu0 %2563
        %v2565 = vsel %vm909, %v2451, -inf
        %2566 = vmax.xlane.f32.xlu0 %v2565
        %v2567 = vpop.xlane.xlu0 %2566
        %v2568 = vsel %vm909, %v2454, -inf
        %2569 = vmax.xlane.f32.xlu0 %v2568
        %v2570 = vpop.xlane.xlu0 %2569
        %v2571 = vsel %vm909, %v2502, -inf
        %2572 = vmax.xlane.f32.xlu0 %v2571
        %v2573 = vpop.xlane.xlu0 %2572
        %v2574 = vsel %vm909, %v2505, -inf
        %2575 = vmax.xlane.f32.xlu0 %v2574
        %v2576 = vpop.xlane.xlu0 %2575
        %v2577 = vsel %vm909, %v2553, -inf
        %2578 = vmax.xlane.f32.xlu0 %v2577
        %v2579 = vpop.xlane.xlu0 %2578
        %v2580 = vsel %vm909, %v2556, -inf
        %2581 = vmax.xlane.f32.xlu0 %v2580
        %v2582 = vpop.xlane.xlu0 %2581
        %v2583 = vsub.f32 %v2400, %v2561
        %v2584 = vsub.f32 %v2403, %v2564
        %v2585 = vsub.f32 %v2451, %v2567
        %v2586 = vsub.f32 %v2454, %v2570
        %v2587 = vsub.f32 %v2502, %v2573
        %v2588 = vsub.f32 %v2505, %v2576
        %v2589 = vsub.f32 %v2553, %v2579
        %v2590 = vsub.f32 %v2556, %v2582
        %v2591 = vmul.f32 %v2583, 1.442695
        %v2592 = vpow.pop %v2591
        %v2593 = vmul.f32 %v2584, 1.442695
        %v2594 = vpow.pop %v2593
        %v2595 = vmul.f32 %v2585, 1.442695
        %v2596 = vpow.pop %v2595
        %v2597 = vmul.f32 %v2586, 1.442695
        %v2598 = vpow.pop %v2597
        %v2599 = vmul.f32 %v2587, 1.442695
        %v2600 = vpow.pop %v2599
        %v2601 = vmul.f32 %v2588, 1.442695
        %v2602 = vpow.pop %v2601
        %v2603 = vmul.f32 %v2589, 1.442695
        %v2604 = vpow.pop %v2603
        %v2605 = vmul.f32 %v2590, 1.442695
        %v2606 = vpow.pop %v2605
        %v2607 = vsel %vm909, %v2592, 0.0
        %2608 = vadd.xlane.f32.xlu0 %v2607
        %v2609 = vpop.xlane.xlu0 %2608
        %v2610 = vsel %vm909, %v2594, 0.0
        %2611 = vadd.xlane.f32.xlu0 %v2610
        %v2612 = vpop.xlane.xlu0 %2611
        %v2613 = vsel %vm909, %v2596, 0.0
        %2614 = vadd.xlane.f32.xlu0 %v2613
        %v2615 = vpop.xlane.xlu0 %2614
        %v2616 = vsel %vm909, %v2598, 0.0
        %2617 = vadd.xlane.f32.xlu0 %v2616
        %v2618 = vpop.xlane.xlu0 %2617
        %v2619 = vsel %vm909, %v2600, 0.0
        %2620 = vadd.xlane.f32.xlu0 %v2619
        %v2621 = vpop.xlane.xlu0 %2620
        %v2622 = vsel %vm909, %v2602, 0.0
        %2623 = vadd.xlane.f32.xlu0 %v2622
        %v2624 = vpop.xlane.xlu0 %2623
        %v2625 = vsel %vm909, %v2604, 0.0
        %2626 = vadd.xlane.f32.xlu0 %v2625
        %v2627 = vpop.xlane.xlu0 %2626
        %v2628 = vsel %vm909, %v2606, 0.0
        %2629 = vadd.xlane.f32.xlu0 %v2628
        %v2630 = vpop.xlane.xlu0 %2629
        %v2631 = vrcp.pop %v2609
        %v2632 = vrcp.pop %v2612
        %v2633 = vrcp.pop %v2615
        %v2634 = vrcp.pop %v2618
        %v2635 = vrcp.pop %v2621
        %v2636 = vrcp.pop %v2624
        %v2637 = vrcp.pop %v2627
        %v2638 = vrcp.pop %v2630
        %v2639 = vmul.f32 %v2592, %v2631
        %v2640 = vmul.f32 %v2594, %v2632
        %v2641 = vmul.f32 %v2596, %v2633
        %v2642 = vmul.f32 %v2598, %v2634
        %v2643 = vmul.f32 %v2600, %v2635
        %v2644 = vmul.f32 %v2602, %v2636
        %v2645 = vmul.f32 %v2604, %v2637
        %v2646 = vmul.f32 %v2606, %v2638
        %v2647 = vpack.c.bf16 %v2640, %v2639
        %v2648 = vpack.c.bf16 %v2642, %v2641
        %v2649 = vpack.c.bf16 %v2644, %v2643
        %v2650 = vpack.c.bf16 %v2646, %v2645
        %2651 = vrot.lane.b32.xlu0 %v903, 80
        %v2652 = vpop.permute.xlu0 %2651
        %v2655 = vsel %vm909, %v2647, 0
        %2657 = vmatprep.subr.bf16.mxu0 0
        %2658 = vmatpush1.bf16.msra.mxu0 %v2652
        %2659 = vmatprep.subr.bf16.mxu0 0
        %2660 = vmatpush1.bf16.msra.mxu0 0
        %2661 = vmatprep.subr.bf16.mxu0 0
        %2662 = vmatpush1.bf16.msra.mxu0 0
        %2663 = vmatprep.subr.bf16.mxu0 0
        %2664 = vmatpush1.bf16.msra.mxu0 0
        %2665 = vmatprep.subr.bf16.mxu0 0
        %2666 = vmatpush1.bf16.msra.mxu0 0
        %2667 = vmatprep.subr.bf16.mxu0 0
        %2668 = vmatpush1.bf16.msra.mxu0 0
        %2669 = vmatprep.subr.bf16.mxu0 0
        %2670 = vmatpush1.bf16.msra.mxu0 0
        %2671 = vmatprep.subr.bf16.mxu0 0
        %2672 = vmatpush1.bf16.msra.mxu0 0
        %2673 = vmatprep.subr.bf16.mxu0 0
        %2674 = vmatpush1.bf16.msra.mxu0 0
        %2675 = vmatprep.subr.bf16.mxu0 0
        %2676 = vmatpush1.bf16.msra.mxu0 0
        %2677 = vmatprep.subr.bf16.mxu0 0
        %2678 = vmatpush1.bf16.msra.mxu0 0
        %2679 = vmatprep.subr.bf16.mxu0 0
        %2680 = vmatpush1.bf16.msra.mxu0 0
        %2681 = vmatprep.subr.bf16.mxu0 0
        %2682 = vmatpush1.bf16.msra.mxu0 0
        %2683 = vmatprep.subr.bf16.mxu0 0
        %2684 = vmatpush1.bf16.msra.mxu0 0
        %2685 = vmatprep.subr.bf16.mxu0 0
        %2686 = vmatpush1.bf16.msra.mxu0 0
        %2687 = vmatprep.subr.bf16.mxu0 0
        %2688 = vmatpush1.bf16.msra.mxu0 0
        %2689 = vmatprep.mubr.bf16.mxu0 0
        %2690 = vmatmul.mubr.bf16.gmra.mrb[0].mxu0 %v2655
        %v2691 = vpop.f32.mrb[0].mxu0
        %v2692 = vadd.f32 0.0, %v2691
        %v2693 = vpop.f32.mrb[0].mxu0
        %v2694 = vpop.f32.mrb[0].mxu0
        %v2695 = vadd.f32 0.0, %v2694
        %v2696 = vpop.f32.mrb[0].mxu0
        %2697 = vdwg.mxu0
        %2698 = vrot.lane.b32.xlu0 %v904, 80
        %v2699 = vpop.permute.xlu0 %2698
        %v2702 = vsel %vm909, %v2648, 0
        %2704 = vmatprep.subr.bf16.mxu0 0
        %2705 = vmatpush1.bf16.msra.mxu0 %v2699
        %2706 = vmatprep.subr.bf16.mxu0 0
        %2707 = vmatpush1.bf16.msra.mxu0 0
        %2708 = vmatprep.subr.bf16.mxu0 0
        %2709 = vmatpush1.bf16.msra.mxu0 0
        %2710 = vmatprep.subr.bf16.mxu0 0
        %2711 = vmatpush1.bf16.msra.mxu0 0
        %2712 = vmatprep.subr.bf16.mxu0 0
        %2713 = vmatpush1.bf16.msra.mxu0 0
        %2714 = vmatprep.subr.bf16.mxu0 0
        %2715 = vmatpush1.bf16.msra.mxu0 0
        %2716 = vmatprep.subr.bf16.mxu0 0
        %2717 = vmatpush1.bf16.msra.mxu0 0
        %2718 = vmatprep.subr.bf16.mxu0 0
        %2719 = vmatpush1.bf16.msra.mxu0 0
        %2720 = vmatprep.subr.bf16.mxu0 0
        %2721 = vmatpush1.bf16.msra.mxu0 0
        %2722 = vmatprep.subr.bf16.mxu0 0
        %2723 = vmatpush1.bf16.msra.mxu0 0
        %2724 = vmatprep.subr.bf16.mxu0 0
        %2725 = vmatpush1.bf16.msra.mxu0 0
        %2726 = vmatprep.subr.bf16.mxu0 0
        %2727 = vmatpush1.bf16.msra.mxu0 0
        %2728 = vmatprep.subr.bf16.mxu0 0
        %2729 = vmatpush1.bf16.msra.mxu0 0
        %2730 = vmatprep.subr.bf16.mxu0 0
        %2731 = vmatpush1.bf16.msra.mxu0 0
        %2732 = vmatprep.subr.bf16.mxu0 0
        %2733 = vmatpush1.bf16.msra.mxu0 0
        %2734 = vmatprep.subr.bf16.mxu0 0
        %2735 = vmatpush1.bf16.msra.mxu0 0
        %2736 = vmatprep.mubr.bf16.mxu0 0
        %2737 = vmatmul.mubr.bf16.gmra.mrb[0].mxu0 %v2702
        %v2738 = vpop.f32.mrb[0].mxu0
        %v2739 = vadd.f32 0.0, %v2738
        %v2740 = vpop.f32.mrb[0].mxu0
        %v2741 = vpop.f32.mrb[0].mxu0
        %v2742 = vadd.f32 0.0, %v2741
        %v2743 = vpop.f32.mrb[0].mxu0
        %2744 = vdwg.mxu0
        %2745 = vrot.lane.b32.xlu0 %v905, 80
        %v2746 = vpop.permute.xlu0 %2745
        %v2749 = vsel %vm909, %v2649, 0
        %2751 = vmatprep.subr.bf16.mxu0 0
        %2752 = vmatpush1.bf16.msra.mxu0 %v2746
        %2753 = vmatprep.subr.bf16.mxu0 0
        %2754 = vmatpush1.bf16.msra.mxu0 0
        %2755 = vmatprep.subr.bf16.mxu0 0
        %2756 = vmatpush1.bf16.msra.mxu0 0
        %2757 = vmatprep.subr.bf16.mxu0 0
        %2758 = vmatpush1.bf16.msra.mxu0 0
        %2759 = vmatprep.subr.bf16.mxu0 0
        %2760 = vmatpush1.bf16.msra.mxu0 0
        %2761 = vmatprep.subr.bf16.mxu0 0
        %2762 = vmatpush1.bf16.msra.mxu0 0
        %2763 = vmatprep.subr.bf16.mxu0 0
        %2764 = vmatpush1.bf16.msra.mxu0 0
        %2765 = vmatprep.subr.bf16.mxu0 0
        %2766 = vmatpush1.bf16.msra.mxu0 0
        %2767 = vmatprep.subr.bf16.mxu0 0
        %2768 = vmatpush1.bf16.msra.mxu0 0
        %2769 = vmatprep.subr.bf16.mxu0 0
        %2770 = vmatpush1.bf16.msra.mxu0 0
        %2771 = vmatprep.subr.bf16.mxu0 0
        %2772 = vmatpush1.bf16.msra.mxu0 0
        %2773 = vmatprep.subr.bf16.mxu0 0
        %2774 = vmatpush1.bf16.msra.mxu0 0
        %2775 = vmatprep.subr.bf16.mxu0 0
        %2776 = vmatpush1.bf16.msra.mxu0 0
        %2777 = vmatprep.subr.bf16.mxu0 0
        %2778 = vmatpush1.bf16.msra.mxu0 0
        %2779 = vmatprep.subr.bf16.mxu0 0
        %2780 = vmatpush1.bf16.msra.mxu0 0
        %2781 = vmatprep.subr.bf16.mxu0 0
        %2782 = vmatpush1.bf16.msra.mxu0 0
        %2783 = vmatprep.mubr.bf16.mxu0 0
        %2784 = vmatmul.mubr.bf16.gmra.mrb[0].mxu0 %v2749
        %v2785 = vpop.f32.mrb[0].mxu0
        %v2786 = vadd.f32 0.0, %v2785
        %v2787 = vpop.f32.mrb[0].mxu0
        %v2788 = vpop.f32.mrb[0].mxu0
        %v2789 = vadd.f32 0.0, %v2788
        %v2790 = vpop.f32.mrb[0].mxu0
        %2791 = vdwg.mxu0
        %2792 = vrot.lane.b32.xlu0 %v906, 80
        %v2793 = vpop.permute.xlu0 %2792
        %v2796 = vsel %vm909, %v2650, 0
        %2798 = vmatprep.subr.bf16.mxu0 0
        %2799 = vmatpush1.bf16.msra.mxu0 %v2793
        %2800 = vmatprep.subr.bf16.mxu0 0
        %2801 = vmatpush1.bf16.msra.mxu0 0
        %2802 = vmatprep.subr.bf16.mxu0 0
        %2803 = vmatpush1.bf16.msra.mxu0 0
        %2804 = vmatprep.subr.bf16.mxu0 0
        %2805 = vmatpush1.bf16.msra.mxu0 0
        %2806 = vmatprep.subr.bf16.mxu0 0
        %2807 = vmatpush1.bf16.msra.mxu0 0
        %2808 = vmatprep.subr.bf16.mxu0 0
        %2809 = vmatpush1.bf16.msra.mxu0 0
        %2810 = vmatprep.subr.bf16.mxu0 0
        %2811 = vmatpush1.bf16.msra.mxu0 0
        %2812 = vmatprep.subr.bf16.mxu0 0
        %2813 = vmatpush1.bf16.msra.mxu0 0
        %2814 = vmatprep.subr.bf16.mxu0 0
        %2815 = vmatpush1.bf16.msra.mxu0 0
        %2816 = vmatprep.subr.bf16.mxu0 0
        %2817 = vmatpush1.bf16.msra.mxu0 0
        %2818 = vmatprep.subr.bf16.mxu0 0
        %2819 = vmatpush1.bf16.msra.mxu0 0
        %2820 = vmatprep.subr.bf16.mxu0 0
        %2821 = vmatpush1.bf16.msra.mxu0 0
        %2822 = vmatprep.subr.bf16.mxu0 0
        %2823 = vmatpush1.bf16.msra.mxu0 0
        %2824 = vmatprep.subr.bf16.mxu0 0
        %2825 = vmatpush1.bf16.msra.mxu0 0
        %2826 = vmatprep.subr.bf16.mxu0 0
        %2827 = vmatpush1.bf16.msra.mxu0 0
        %2828 = vmatprep.subr.bf16.mxu0 0
        %2829 = vmatpush1.bf16.msra.mxu0 0
        %2830 = vmatprep.mubr.bf16.mxu0 0
        %2831 = vmatmul.mubr.bf16.gmra.mrb[0].mxu0 %v2796
        %v2832 = vpop.f32.mrb[0].mxu0
        %v2833 = vadd.f32 0.0, %v2832
        %v2834 = vpop.f32.mrb[0].mxu0
        %v2835 = vpop.f32.mrb[0].mxu0
        %v2836 = vadd.f32 0.0, %v2835
        %v2837 = vpop.f32.mrb[0].mxu0
        %2838 = vdwg.mxu0
        %2847 = vrot.lane.b32.xlu0 %v1715, 16
        %v2848 = vpop.permute.xlu0 %2847
        %2849 = vrot.lane.b32.xlu0 %v1718, 16
        %v2850 = vpop.permute.xlu0 %2849
        %2851 = vrot.lane.b32.xlu0 %v1763, 16
        %v2852 = vpop.permute.xlu0 %2851
        %2853 = vrot.lane.b32.xlu0 %v1766, 16
        %v2854 = vpop.permute.xlu0 %2853
        %2855 = vrot.lane.b32.xlu0 %v1811, 16
        %v2856 = vpop.permute.xlu0 %2855
        %2857 = vrot.lane.b32.xlu0 %v1814, 16
        %v2858 = vpop.permute.xlu0 %2857
        %2859 = vrot.lane.b32.xlu0 %v1859, 16
        %v2860 = vpop.permute.xlu0 %2859
        %2861 = vrot.lane.b32.xlu0 %v1862, 16
        %v2862 = vpop.permute.xlu0 %2861
        %2879 = vrot.lane.b32.xlu0 %v2205, 32
        %v2880 = vpop.permute.xlu0 %2879
        %2881 = vrot.lane.b32.xlu0 %v2208, 32
        %v2882 = vpop.permute.xlu0 %2881
        %2883 = vrot.lane.b32.xlu0 %v2252, 32
        %v2884 = vpop.permute.xlu0 %2883
        %2885 = vrot.lane.b32.xlu0 %v2255, 32
        %v2886 = vpop.permute.xlu0 %2885
        %2887 = vrot.lane.b32.xlu0 %v2299, 32
        %v2888 = vpop.permute.xlu0 %2887
        %2889 = vrot.lane.b32.xlu0 %v2302, 32
        %v2890 = vpop.permute.xlu0 %2889
        %2891 = vrot.lane.b32.xlu0 %v2346, 32
        %v2892 = vpop.permute.xlu0 %2891
        %2893 = vrot.lane.b32.xlu0 %v2349, 32
        %v2894 = vpop.permute.xlu0 %2893
        %2911 = vrot.lane.b32.xlu0 %v2692, 48
        %v2912 = vpop.permute.xlu0 %2911
        %2913 = vrot.lane.b32.xlu0 %v2695, 48
        %v2914 = vpop.permute.xlu0 %2913
        %2915 = vrot.lane.b32.xlu0 %v2739, 48
        %v2916 = vpop.permute.xlu0 %2915
        %2917 = vrot.lane.b32.xlu0 %v2742, 48
        %v2918 = vpop.permute.xlu0 %2917
        %2919 = vrot.lane.b32.xlu0 %v2786, 48
        %v2920 = vpop.permute.xlu0 %2919
        %2921 = vrot.lane.b32.xlu0 %v2789, 48
        %v2922 = vpop.permute.xlu0 %2921
        %2923 = vrot.lane.b32.xlu0 %v2833, 48
        %v2924 = vpop.permute.xlu0 %2923
        %2925 = vrot.lane.b32.xlu0 %v2836, 48
        %v2926 = vpop.permute.xlu0 %2925
        %v2935 = vsel %vm909, %v1228, %v2848
        %v2936 = vsel %vm909, %v1231, %v2850
        %v2937 = vsel %vm909, %v1272, %v2852
        %v2938 = vsel %vm909, %v1275, %v2854
        %v2939 = vsel %vm909, %v1316, %v2856
        %v2940 = vsel %vm909, %v1319, %v2858
        %v2941 = vsel %vm909, %v1360, %v2860
        %v2942 = vsel %vm909, %v1363, %v2862
        %vm2943 = vcmask 261120
        %v2944 = vsel %vm2943, %v2935, %v2880
        %v2945 = vsel %vm2943, %v2936, %v2882
        %v2946 = vsel %vm2943, %v2937, %v2884
        %v2947 = vsel %vm2943, %v2938, %v2886
        %v2948 = vsel %vm2943, %v2939, %v2888
        %v2949 = vsel %vm2943, %v2940, %v2890
        %v2950 = vsel %vm2943, %v2941, %v2892
        %v2951 = vsel %vm2943, %v2942, %v2894
        %vm2952 = vcmask 392192
        %v2953 = vsel %vm2952, %v2944, %v2912
        %v2954 = vsel %vm2952, %v2945, %v2914
        %v2955 = vsel %vm2952, %v2946, %v2916
        %v2956 = vsel %vm2952, %v2947, %v2918
        %v2957 = vsel %vm2952, %v2948, %v2920
        %v2958 = vsel %vm2952, %v2949, %v2922
        %v2959 = vsel %vm2952, %v2950, %v2924
        %v2960 = vsel %vm2952, %v2951, %v2926
        %vm2961 = vcmask 523264
        %v2962 = vsel %vm2961, %v2953, 0.0
        %v2963 = vsel %vm2961, %v2954, 0.0
        %v2964 = vsel %vm2961, %v2955, 0.0
        %v2965 = vsel %vm2961, %v2956, 0.0
        %v2966 = vsel %vm2961, %v2957, 0.0
        %v2967 = vsel %vm2961, %v2958, 0.0
        %v2968 = vsel %vm2961, %v2959, 0.0
        %v2969 = vsel %vm2961, %v2960, 0.0
        %v2970 = vpack.c.bf16 %v2963, %v2962
        %v2971 = vpack.c.bf16 %v2965, %v2964
        %v2972 = vpack.c.bf16 %v2967, %v2966
        %v2973 = vpack.c.bf16 %v2969, %v2968
        %v2974 = vld [vmem:[#allocation11] sm:$0xf]
        %v2975 = vld [vmem:[#allocation11 + $0x4] sm:$0xf]
        %v2976 = vld [vmem:[#allocation11 + $0x8] sm:$0xf]
        %v2977 = vld [vmem:[#allocation11 + $0xc] sm:$0xf]
        %v2978 = vld [vmem:[#allocation11 + $0x10] sm:$0xf]
        %v2979 = vld [vmem:[#allocation11 + $0x14] sm:$0xf]
        %v2980 = vld [vmem:[#allocation11 + $0x18] sm:$0xf]
        %v2981 = vld [vmem:[#allocation11 + $0x1c] sm:$0xf]
        %v2982 = vld [vmem:[#allocation11 + $0x20] sm:$0xf]
        %v2983 = vld [vmem:[#allocation11 + $0x24] sm:$0xf]
        %v2984 = vld [vmem:[#allocation11 + $0x28] sm:$0xf]
        %v2985 = vld [vmem:[#allocation11 + $0x2c] sm:$0xf]
        %v2986 = vld [vmem:[#allocation11 + $0x30] sm:$0xf]
        %v2987 = vld [vmem:[#allocation11 + $0x34] sm:$0xf]
        %v2988 = vld [vmem:[#allocation11 + $0x38] sm:$0xf]
        %v2989 = vld [vmem:[#allocation11 + $0x3c] sm:$0xf]
        %v2990 = vld [vmem:[%s9] sm:$0x1]
        %v2992 = vlaneseq
        %v2993 = vshrl.u32 %v2992, 7
        %v2994 = vsub.s32 0, %v2993
        %v2995 = vrot.slane %v2990, %v2994
        %v3013 = vunpack.c.l.b16 %v2974
        %v3014 = vunpack.c.l.b16 %v2975
        %v3015 = vunpack.c.l.b16 %v2976
        %v3016 = vunpack.c.l.b16 %v2977
        %v3017 = vunpack.c.l.b16 %v2978
        %v3018 = vunpack.c.l.b16 %v2979
        %v3019 = vunpack.c.l.b16 %v2980
        %v3020 = vunpack.c.l.b16 %v2981
        %v3021 = vunpack.c.l.b16 %v2982
        %v3022 = vunpack.c.l.b16 %v2983
        %v3023 = vunpack.c.l.b16 %v2984
        %v3024 = vunpack.c.l.b16 %v2985
        %v3025 = vunpack.c.l.b16 %v2986
        %v3026 = vunpack.c.l.b16 %v2987
        %v3027 = vunpack.c.l.b16 %v2988
        %v3028 = vunpack.c.l.b16 %v2989
        %v3029 = vpack.c.b16 %v3014, %v3013
        %v3030 = vpack.c.b16 %v3016, %v3015
        %v3031 = vpack.c.b16 %v3018, %v3017
        %v3032 = vpack.c.b16 %v3020, %v3019
        %v3033 = vpack.c.b16 %v3022, %v3021
        %v3034 = vpack.c.b16 %v3024, %v3023
        %v3035 = vpack.c.b16 %v3026, %v3025
        %v3036 = vpack.c.b16 %v3028, %v3027
        %3045 = vmatprep.subr.bf16.mxu0 0
        %3046 = vmatpush1.bf16.msra.mxu0 %v3029
        %3047 = vmatprep.subr.bf16.mxu0 0
        %3048 = vmatpush1.bf16.msra.mxu0 %v3030
        %3049 = vmatprep.subr.bf16.mxu0 0
        %3050 = vmatpush1.bf16.msra.mxu0 %v3031
        %3051 = vmatprep.subr.bf16.mxu0 0
        %3052 = vmatpush1.bf16.msra.mxu0 %v3032
        %3053 = vmatprep.subr.bf16.mxu0 0
        %3054 = vmatpush1.bf16.msra.mxu0 %v3033
        %3055 = vmatprep.subr.bf16.mxu0 0
        %3056 = vmatpush1.bf16.msra.mxu0 %v3034
        %3057 = vmatprep.subr.bf16.mxu0 0
        %3058 = vmatpush1.bf16.msra.mxu0 %v3035
        %3059 = vmatprep.subr.bf16.mxu0 0
        %3060 = vmatpush1.bf16.msra.mxu0 %v3036
        %3061 = vmatprep.subr.bf16.mxu0 0
        %3062 = vmatpush1.bf16.msra.mxu0 0
        %3063 = vmatprep.subr.bf16.mxu0 0
        %3064 = vmatpush1.bf16.msra.mxu0 0
        %3065 = vmatprep.subr.bf16.mxu0 0
        %3066 = vmatpush1.bf16.msra.mxu0 0
        %3067 = vmatprep.subr.bf16.mxu0 0
        %3068 = vmatpush1.bf16.msra.mxu0 0
        %3069 = vmatprep.subr.bf16.mxu0 0
        %3070 = vmatpush1.bf16.msra.mxu0 0
        %3071 = vmatprep.subr.bf16.mxu0 0
        %3072 = vmatpush1.bf16.msra.mxu0 0
        %3073 = vmatprep.subr.bf16.mxu0 0
        %3074 = vmatpush1.bf16.msra.mxu0 0
        %3075 = vmatprep.subr.bf16.mxu0 0
        %3076 = vmatpush1.bf16.msra.mxu0 0
        %3077 = vmatprep.mubr.bf16.mxu0 0
        %3078 = vmatmul.mubr.bf16.gmra.mrb[0].mxu0 %v2970
        %v3079 = vpop.f32.mrb[0].mxu0
        %v3080 = vadd.f32 %v2995, %v3079
        %v3081 = vpop.f32.mrb[0].mxu0
        %v3082 = vpop.f32.mrb[0].mxu0
        %v3083 = vadd.f32 %v2995, %v3082
        %v3084 = vpop.f32.mrb[0].mxu0
        %3085 = vmatprep.mubr.bf16.mxu0 0
        %3086 = vmatmul.mubr.bf16.gmra.mrb[0].mxu0 %v2971
        %v3087 = vpop.f32.mrb[0].mxu0
        %v3088 = vadd.f32 %v2995, %v3087
        %v3089 = vpop.f32.mrb[0].mxu0
        %v3090 = vpop.f32.mrb[0].mxu0
        %v3091 = vadd.f32 %v2995, %v3090
        %v3092 = vpop.f32.mrb[0].mxu0
        %3093 = vmatprep.mubr.bf16.mxu0 0
        %3094 = vmatmul.mubr.bf16.gmra.mrb[0].mxu0 %v2972
        %v3095 = vpop.f32.mrb[0].mxu0
        %v3096 = vadd.f32 %v2995, %v3095
        %v3097 = vpop.f32.mrb[0].mxu0
        %v3098 = vpop.f32.mrb[0].mxu0
        %v3099 = vadd.f32 %v2995, %v3098
        %v3100 = vpop.f32.mrb[0].mxu0
        %3101 = vmatprep.mubr.bf16.mxu0 0
        %3102 = vmatmul.mubr.bf16.gmra.mrb[0].mxu0 %v2973
        %v3103 = vpop.f32.mrb[0].mxu0
        %v3104 = vadd.f32 %v2995, %v3103
        %v3105 = vpop.f32.mrb[0].mxu0
        %v3106 = vpop.f32.mrb[0].mxu0
        %v3107 = vadd.f32 %v2995, %v3106
        %v3108 = vpop.f32.mrb[0].mxu0
        %3109 = vdwg.mxu0
        %3110 = vst [vmem:[%s451] sm:$0xff] %v3080
        %3111 = vst [vmem:[%s451 + $0x8] sm:$0xff] %v3083
        %3112 = vst [vmem:[%s451 + $0x10] sm:$0xff] %v3088
        %3113 = vst [vmem:[%s451 + $0x18] sm:$0xff] %v3091
        %3114 = vst [vmem:[%s451 + $0x20] sm:$0xff] %v3096
        %3115 = vst [vmem:[%s451 + $0x28] sm:$0xff] %v3099
        %3116 = vst [vmem:[%s451 + $0x30] sm:$0xff] %v3104
        %3117 = vst [vmem:[%s451 + $0x38] sm:$0xff] %v3107
        %s3118 = sand.u32 %s253, 1
        %s3119 = scalar_lea.sflag [#allocation4], %s3118
        %s3120 = sand.u32 %s253, 1
        %s3121 = smul.addr %s3120, 64
        %s3122 = scalar_lea.vmem [#allocation13], %s3121
        // Predicated region
        $region85: #{tpu_custom_call.1} parent=59 // pred_check
          %p3123 = pneg %p263
        $region86: #{tpu_custom_call.1} parent=59 // pred_check_branch
          %3125 = sbr.rel (%p3123) target = $region88
        $region87: #{tpu_custom_call.1} parent=59 // pred_region
          %s3126 = smul.u32 4, %s30
          %s3128 = ssub.s32 1024, 1024
          %3129 = vsyncadd %s3119, %s3128
          %s3130 = smul.addr %s3126, 2
          %s3131 = smul.addr %s3130, 128
          %s3132 = scalar_lea.hbm %s10, %s3131
          %s3133 = sshll.u32 %s3122, 4
          %s3134 = int_to_ptr.vmem [resolvable:$true] %s3133
          %3139 = dma.vmem_to_hbm [thread:$0]  %s3134, 1024, %s3132, %s3119, 128, 128, 8
        $region88: #{tpu_custom_call.1} parent=59 // pred_fallthru
          _
      $region60: #{tpu_custom_call.1} parent=5 // pred_fallthru
        _
      %p3140 = scmp.le.s32.totalorder 2, %s25
      // Predicated region
      $region89: #{tpu_custom_call.1} parent=5 // pred_check
        %p3141 = pneg %p3140
      $region90: #{tpu_custom_call.1} parent=5 // pred_check_branch
        %3143 = sbr.rel (%p3141) target = $region92
      $region91: #{tpu_custom_call.1} parent=5 // pred_region
        %s3144 = ssub.s32 %s25, 2
        // Predicated region
        $region93: #{tpu_custom_call.1} parent=91 // pred_check
          %p3145 = pneg %p269
        $region94: #{tpu_custom_call.1} parent=91 // pred_check_branch
          %3147 = sbr.rel (%p3145) target = $region96
        $region95: #{tpu_custom_call.1} parent=91 // pred_region
          %s3148 = sand.u32 %s254, 1
          %s3149 = scalar_lea.sflag [#allocation4], %s3148
          %s3150 = sand.u32 %s254, 1
          %s3151 = smul.addr %s3150, 64
          %s3152 = scalar_lea.vmem [#allocation13], %s3151
          %3153 = dma.done %s3149, 1024
        $region96: #{tpu_custom_call.1} parent=91 // pred_fallthru
          _
      $region92: #{tpu_custom_call.1} parent=5 // pred_fallthru
        _
    $region6: #{tpu_custom_call.1} parent=1 // loop_footer
      %s29 = sadd.s32 1, %s25
    $region7: #{tpu_custom_call.1} parent=1 // loop_footer_branch
      %24 = sbr.rel target = $region3
    $region8: #{tpu_custom_call.1} parent=1 // loop_exit
      _
    %3154 = vsyncpa [#allocation3], 1
    %s3155 = scalar_lea.sflag [#allocation3], 1
    %3156 = vsyncpa %s3155, 1
    %3157 = vsyncpa [#allocation6], 1
    %3158 = vsyncpa [#allocation9], 1
    %3159 = vsyncpa [#allocation12], 1
    %3160 = vsyncpa [#allocation4], 1
    %s3161 = scalar_lea.sflag [#allocation4], 1
    %3162 = vsyncpa %s3161, 1

</llo_original>
